<compile_context>
chip_gen: v5e
topology: v5e:2x2
jax: 0.10.0
libtpu: 0.0.40
codegen_flags: <defaults>
</compile_context>

<pallas_src>
import functools

import jax
import jax.numpy as jnp
from jax.experimental import pallas as pl
from jax.experimental.pallas import tpu as pltpu

N_FEATURES = 28 * 28            # 784 (kernel ingests this unpadded)
H1, H2, H3 = 1024, 512, 256
N_CLASSES = 10
OUT_PAD = 128                   # fused head: [out_1 | out_2 | zeros] padded to 128 lanes

# Packed-bias layout (all offsets 128-aligned): [b1 | b2 | b3 | b_head | zero pad]
OFF_B1 = 0
OFF_B2 = H1                      # 1024
OFF_B3 = H1 + H2                 # 1536
OFF_BO = H1 + H2 + H3            # 1792
B_PACK = 2048                    # 1920 used, padded to a multiple of 128


def _round_up(n, m):
    return (n + m - 1) // m * m


def _leaky_relu(x, slope=0.2):
    return jnp.where(x > 0, x, slope * x)


def _has_bf16_vpu():
    """bf16 VALU epilogue only pays off on v6e/v7x; keep f32 on v5e and older."""
    try:
        kind = jax.devices()[0].device_kind.lower()
    except Exception:
        return True
    return not any(tag in kind for tag in ("v2", "v3", "v4", "v5"))


def _acdisc_kernel(x_ref, w1_ref, w2_ref, w3_ref, wo_ref, b_ref, out_ref,
                   *, epilogue_dtype):
    """Fused 4-matmul MLP for one batch tile.

    Matmuls take bf16 operands (native MXU rate) and accumulate in f32; the bias-add +
    LeakyReLU(0.2) epilogue runs in `epilogue_dtype` (bf16 on v6e/v7x, f32 on v5e)."""
    edt = epilogue_dtype

    # Cast the raw f32 input tile to bf16 inside the kernel (no wrapper pad/cast pass).
    x = x_ref[...].astype(jnp.bfloat16)                               # (TB, 784)

    # Packed biases, sliced at static 128-aligned offsets.
    b1 = b_ref[:, OFF_B1:OFF_B1 + H1].astype(edt)
    b2 = b_ref[:, OFF_B2:OFF_B2 + H2].astype(edt)
    b3 = b_ref[:, OFF_B3:OFF_B3 + H3].astype(edt)
    bo = b_ref[:, OFF_BO:OFF_BO + OUT_PAD]                            # stays f32

    def hidden(a, w_ref, b):
        acc = jnp.dot(a, w_ref[...], preferred_element_type=jnp.float32)
        return _leaky_relu(acc.astype(edt) + b).astype(jnp.bfloat16)

    h1 = hidden(x, w1_ref, b1)    # Linear(784 -> 1024) + LeakyReLU (+ Dropout == id)
    h2 = hidden(h1, w2_ref, b2)   # Linear(1024 -> 512) + LeakyReLU
    h3 = hidden(h2, w3_ref, b3)   # Linear(512 -> 256)  + LeakyReLU

    # Fused heads: column 0 = out_1 (real/fake logit), columns 1..10 = out_2 (classes),
    # remaining lanes zero.  Single matmul + lane-dense unmasked 128-wide f32 store.
    out_ref[...] = (jnp.dot(h3, wo_ref[...], preferred_element_type=jnp.float32) + bo)


@functools.partial(jax.jit, static_argnames=("tile_b", "bf16_epilogue"))
def _forward_jit(x, params, *, tile_b, bf16_epilogue):
    B = x.shape[0]
    w1, w2, w3, wo, b_all = params

    # Batch tiling: 512-row tiles for large batches; for small/moderate batches split
    # into (at least) two grid steps so both v7x TensorCores get work.
    if B <= tile_b:
        tb = max(16, _round_up(pl.cdiv(B, 2), 16))
        tb = min(tb, _round_up(B, 16))
    else:
        tb = tile_b
    B_pad = _round_up(B, tb)

    if B_pad != B:
        x = jnp.pad(x, ((0, B_pad - B), (0, 0)))   # row-only pad; features stay 784

    edt = jnp.bfloat16 if bf16_epilogue else jnp.float32
    kernel = functools.partial(_acdisc_kernel, epilogue_dtype=edt)

    # Resident weights/biases: block index never changes -> single-buffer them.
    const = lambda shape: pl.BlockSpec(shape, lambda i: (0, 0),
                                       pipeline_mode=pl.Buffered(1))

    out = pl.pallas_call(
        kernel,
        out_shape=jax.ShapeDtypeStruct((B_pad, OUT_PAD), jnp.float32),
        grid_spec=pl.GridSpec(
            grid=(B_pad // tb,),
            in_specs=[
                pl.BlockSpec((tb, N_FEATURES), lambda i: (i, 0)),  # x tile (unpadded K)
                const((N_FEATURES, H1)),                           # hidden_1 weight
                const((H1, H2)),                                   # hidden_2 weight
                const((H2, H3)),                                   # hidden_3 weight
                const((H3, OUT_PAD)),                              # fused head weight
                const((1, B_PACK)),                                # packed biases
            ],
            out_specs=pl.BlockSpec((tb, OUT_PAD), lambda i: (i, 0)),
        ),
        compiler_params=pltpu.CompilerParams(
            dimension_semantics=("parallel",),
            vmem_limit_bytes=32 * 1024 * 1024,
        ),
    )(x, w1, w2, w3, wo, b_all)

    out_1 = out[:B, 0:1]
    out_2 = out[:B, 1:1 + N_CLASSES]
    return out_1, out_2


def acdiscriminator_forward(x, params, *, tile_b=512, bf16_epilogue=None):
    """x: (B, 784) float32 (or bf16).  params: prepared params (see prepare_params).

    Returns (out_1: (B, 1), out_2: (B, 10)) in float32."""
    if bf16_epilogue is None:
        bf16_epilogue = _has_bf16_vpu()
    return _forward_jit(x, params, tile_b=tile_b, bf16_epilogue=bool(bf16_epilogue))


def init_params(key):
    """nn.Linear-style init: U(-1/sqrt(fan_in), 1/sqrt(fan_in)).

    Weights stored as (in_features, out_features) so the forward is x @ W + b,
    equivalent to PyTorch's x @ W_torch.T + b."""
    def linear(key, fan_in, fan_out):
        kw, kb = jax.random.split(key)
        bound = 1.0 / jnp.sqrt(fan_in)
        w = jax.random.uniform(kw, (fan_in, fan_out), jnp.float32, -bound, bound)
        b = jax.random.uniform(kb, (1, fan_out), jnp.float32, -bound, bound)
        return w, b

    k1, k2, k3, k4, k5 = jax.random.split(key, 5)
    w1, b1 = linear(k1, N_FEATURES, H1)
    w2, b2 = linear(k2, H1, H2)
    w3, b3 = linear(k3, H2, H3)
    wo1, bo1 = linear(k4, H3, 1)
    wo2, bo2 = linear(k5, H3, N_CLASSES)
    return (w1, b1, w2, b2, w3, b3, wo1, bo1, wo2, bo2)


def prepare_params(raw):
    """Convert plain f32 params into the kernel layout:
       * weights cast to bf16 (first layer stays (784, 1024) -- no K padding),
       * the two heads fused into one lane-dense (256, 128) bf16 weight,
       * the four biases packed into a single (1, 2048) f32 array at 128-aligned
         offsets (cast to the epilogue dtype inside the kernel)."""
    (w1, b1, w2, b2, w3, b3, wo1, bo1, wo2, bo2) = raw

    wo = jnp.zeros((H3, OUT_PAD), jnp.float32)
    wo = wo.at[:, 0:1].set(wo1).at[:, 1:1 + N_CLASSES].set(wo2)

    b_all = jnp.zeros((1, B_PACK), jnp.float32)
    b_all = b_all.at[:, OFF_B1:OFF_B1 + H1].set(b1)
    b_all = b_all.at[:, OFF_B2:OFF_B2 + H2].set(b2)
    b_all = b_all.at[:, OFF_B3:OFF_B3 + H3].set(b3)
    b_all = b_all.at[:, OFF_BO:OFF_BO + 1].set(bo1)
    b_all = b_all.at[:, OFF_BO + 1:OFF_BO + 1 + N_CLASSES].set(bo2)

    bf = lambda w: w.astype(jnp.bfloat16)
    # TODO(synk): optional int8 (v5e/v6e) / fp8-e4m3 (v7x) weight-quantized variant for
    # the DMA-bound small-batch regime is not implemented (numerics-affecting).
    return (bf(w1), bf(w2), bf(w3), bf(wo), b_all)


def reference_forward(x, raw_params, *, bf16_epilogue):
    """Pure-JAX reference mirroring the kernel numerics (bf16 matmul operands, f32
    accumulation, epilogue in the same dtype as the kernel).  Dropout eval = identity."""
    (w1, b1, w2, b2, w3, b3, wo1, bo1, wo2, bo2) = raw_params
    bf16 = jnp.bfloat16
    edt = bf16 if bf16_epilogue else jnp.float32

    def dot(a, w):
        return jnp.dot(a.astype(bf16), w.astype(bf16), preferred_element_type=jnp.float32)

    def hidden(a, w, b):
        return _leaky_relu(dot(a, w).astype(edt) + b.astype(edt)).astype(jnp.float32)

    h1 = hidden(x, w1, b1)
    h2 = hidden(h1, w2, b2)
    h3 = hidden(h2, w3, b3)
    return dot(h3, wo1) + bo1, dot(h3, wo2) + bo2


if __name__ == "__main__":
    key = jax.random.PRNGKey(0)
    k_params, k_x = jax.random.split(key)

    raw_params = init_params(k_params)
    params = prepare_params(raw_params)

    B = 16  # small batch; flattened 28x28 MNIST images -> (B, 784)
    x = jax.random.normal(k_x, (B, N_FEATURES), jnp.float32)

    bf16_ep = _has_bf16_vpu()
    out1, out2 = acdiscriminator_forward(x, params, bf16_epilogue=bf16_ep)
    out1, out2 = jax.block_until_ready((out1, out2))

    ref1, ref2 = reference_forward(x, raw_params, bf16_epilogue=bf16_ep)
    assert out1.shape == (B, 1) and out2.shape == (B, N_CLASSES)
    assert jnp.allclose(out1, ref1, atol=2e-2, rtol=2e-2), float(jnp.max(jnp.abs(out1 - ref1)))
    assert jnp.allclose(out2, ref2, atol=2e-2, rtol=2e-2), float(jnp.max(jnp.abs(out2 - ref2)))

    # TODO(synk): training-mode Dropout(0.3) (stochastic masking via pltpu.prng_*) not
    # implemented; forward matches module.eval() semantics.
    print("KERNEL_OK")
</pallas_src>

<mosaic_0001>
module attributes {stable_mosaic.version = 11 : i64} {
  func.func @_acdisc_kernel(%arg0: i32, %arg1: memref<16x784xf32, #tpu.memory_space<vmem>>, %arg2: memref<784x1024xbf16, #tpu.memory_space<vmem>>, %arg3: memref<1024x512xbf16, #tpu.memory_space<vmem>>, %arg4: memref<512x256xbf16, #tpu.memory_space<vmem>>, %arg5: memref<256x128xbf16, #tpu.memory_space<vmem>>, %arg6: memref<1x2048xf32, #tpu.memory_space<vmem>>, %arg7: memref<16x128xf32, #tpu.memory_space<vmem>>) attributes {dimension_semantics = [#tpu.dimension_semantics<parallel>], iteration_bounds = array<i64: 1>, scalar_prefetch = 0 : i64, scratch_operands = 0 : i64, tpu.core_type = #tpu.core_type<tc>, window_params = [{transform_indices = @transform_0, window_bounds = array<i64: 16, 784>}, {pipeline_mode = #tpu.pipeline_mode<synchronous>, transform_indices = @transform_1, window_bounds = array<i64: 784, 1024>}, {pipeline_mode = #tpu.pipeline_mode<synchronous>, transform_indices = @transform_2, window_bounds = array<i64: 1024, 512>}, {pipeline_mode = #tpu.pipeline_mode<synchronous>, transform_indices = @transform_3, window_bounds = array<i64: 512, 256>}, {pipeline_mode = #tpu.pipeline_mode<synchronous>, transform_indices = @transform_4, window_bounds = array<i64: 256, 128>}, {pipeline_mode = #tpu.pipeline_mode<synchronous>, transform_indices = @transform_5, window_bounds = array<i64: 1, 2048>}, {transform_indices = @transform_6, window_bounds = array<i64: 16, 128>}]} {
    %c0 = arith.constant 0 : index
    %c0_0 = arith.constant 0 : index
    %0 = vector.load %arg1[%c0, %c0_0] : memref<16x784xf32, #tpu.memory_space<vmem>>, vector<16x784xf32>
    %1 = arith.truncf %0 : vector<16x784xf32> to vector<16x784xbf16>
    %c0_1 = arith.constant 0 : index
    %c0_2 = arith.constant 0 : index
    %2 = vector.load %arg6[%c0_1, %c0_2] : memref<1x2048xf32, #tpu.memory_space<vmem>>, vector<1x1024xf32>
    %3 = arith.truncf %2 : vector<1x1024xf32> to vector<1x1024xbf16>
    %c0_3 = arith.constant 0 : index
    %c1024 = arith.constant 1024 : index
    %4 = vector.load %arg6[%c0_3, %c1024] : memref<1x2048xf32, #tpu.memory_space<vmem>>, vector<1x512xf32>
    %5 = arith.truncf %4 : vector<1x512xf32> to vector<1x512xbf16>
    %c0_4 = arith.constant 0 : index
    %c1536 = arith.constant 1536 : index
    %6 = vector.load %arg6[%c0_4, %c1536] : memref<1x2048xf32, #tpu.memory_space<vmem>>, vector<1x256xf32>
    %7 = arith.truncf %6 : vector<1x256xf32> to vector<1x256xbf16>
    %c0_5 = arith.constant 0 : index
    %c1792 = arith.constant 1792 : index
    %8 = vector.load %arg6[%c0_5, %c1792] : memref<1x2048xf32, #tpu.memory_space<vmem>>, vector<1x128xf32>
    %c0_6 = arith.constant 0 : index
    %c0_7 = arith.constant 0 : index
    %9 = vector.load %arg2[%c0_6, %c0_7] : memref<784x1024xbf16, #tpu.memory_space<vmem>>, vector<784x1024xbf16>
    %cst = arith.constant dense<0.000000e+00> : vector<16x1024xf32>
    %10 = tpu.matmul %1, %9, %cst {dimension_numbers = #tpu.dot_dimension_numbers<[1], [0], [0], [1], [0, 0, 1, 1], [], []>} : vector<16x784xbf16>, vector<784x1024xbf16>, vector<16x1024xf32> -> vector<16x1024xf32>
    %11 = arith.truncf %10 : vector<16x1024xf32> to vector<16x1024xbf16>
    %12 = vector.broadcast %3 : vector<1x1024xbf16> to vector<16x1024xbf16>
    %13 = arith.addf %11, %12 : vector<16x1024xbf16>
    %cst_8 = arith.constant 0.000000e+00 : bf16
    %14 = vector.broadcast %cst_8 : bf16 to vector<16x1024xbf16>
    %15 = arith.cmpf ogt, %13, %14 : vector<16x1024xbf16>
    %cst_9 = arith.constant 2.001950e-01 : bf16
    %16 = vector.broadcast %cst_9 : bf16 to vector<16x1024xbf16>
    %17 = arith.mulf %16, %13 : vector<16x1024xbf16>
    %18 = arith.select %15, %13, %17 : vector<16x1024xi1>, vector<16x1024xbf16>
    %c0_10 = arith.constant 0 : index
    %c0_11 = arith.constant 0 : index
    %19 = vector.load %arg3[%c0_10, %c0_11] : memref<1024x512xbf16, #tpu.memory_space<vmem>>, vector<1024x512xbf16>
    %cst_12 = arith.constant dense<0.000000e+00> : vector<16x512xf32>
    %20 = tpu.matmul %18, %19, %cst_12 {dimension_numbers = #tpu.dot_dimension_numbers<[1], [0], [0], [1], [0, 0, 1, 1], [], []>} : vector<16x1024xbf16>, vector<1024x512xbf16>, vector<16x512xf32> -> vector<16x512xf32>
    %21 = arith.truncf %20 : vector<16x512xf32> to vector<16x512xbf16>
    %22 = vector.broadcast %5 : vector<1x512xbf16> to vector<16x512xbf16>
    %23 = arith.addf %21, %22 : vector<16x512xbf16>
    %cst_13 = arith.constant 0.000000e+00 : bf16
    %24 = vector.broadcast %cst_13 : bf16 to vector<16x512xbf16>
    %25 = arith.cmpf ogt, %23, %24 : vector<16x512xbf16>
    %cst_14 = arith.constant 2.001950e-01 : bf16
    %26 = vector.broadcast %cst_14 : bf16 to vector<16x512xbf16>
    %27 = arith.mulf %26, %23 : vector<16x512xbf16>
    %28 = arith.select %25, %23, %27 : vector<16x512xi1>, vector<16x512xbf16>
    %c0_15 = arith.constant 0 : index
    %c0_16 = arith.constant 0 : index
    %29 = vector.load %arg4[%c0_15, %c0_16] : memref<512x256xbf16, #tpu.memory_space<vmem>>, vector<512x256xbf16>
    %cst_17 = arith.constant dense<0.000000e+00> : vector<16x256xf32>
    %30 = tpu.matmul %28, %29, %cst_17 {dimension_numbers = #tpu.dot_dimension_numbers<[1], [0], [0], [1], [0, 0, 1, 1], [], []>} : vector<16x512xbf16>, vector<512x256xbf16>, vector<16x256xf32> -> vector<16x256xf32>
    %31 = arith.truncf %30 : vector<16x256xf32> to vector<16x256xbf16>
    %32 = vector.broadcast %7 : vector<1x256xbf16> to vector<16x256xbf16>
    %33 = arith.addf %31, %32 : vector<16x256xbf16>
    %cst_18 = arith.constant 0.000000e+00 : bf16
    %34 = vector.broadcast %cst_18 : bf16 to vector<16x256xbf16>
    %35 = arith.cmpf ogt, %33, %34 : vector<16x256xbf16>
    %cst_19 = arith.constant 2.001950e-01 : bf16
    %36 = vector.broadcast %cst_19 : bf16 to vector<16x256xbf16>
    %37 = arith.mulf %36, %33 : vector<16x256xbf16>
    %38 = arith.select %35, %33, %37 : vector<16x256xi1>, vector<16x256xbf16>
    %c0_20 = arith.constant 0 : index
    %c0_21 = arith.constant 0 : index
    %39 = vector.load %arg5[%c0_20, %c0_21] : memref<256x128xbf16, #tpu.memory_space<vmem>>, vector<256x128xbf16>
    %cst_22 = arith.constant dense<0.000000e+00> : vector<16x128xf32>
    %40 = tpu.matmul %38, %39, %cst_22 {dimension_numbers = #tpu.dot_dimension_numbers<[1], [0], [0], [1], [0, 0, 1, 1], [], []>} : vector<16x256xbf16>, vector<256x128xbf16>, vector<16x128xf32> -> vector<16x128xf32>
    %41 = vector.broadcast %8 : vector<1x128xf32> to vector<16x128xf32>
    %42 = arith.addf %40, %41 : vector<16x128xf32>
    %c0_23 = arith.constant 0 : index
    %c0_24 = arith.constant 0 : index
    %43 = vector.load %arg7[%c0_23, %c0_24] : memref<16x128xf32, #tpu.memory_space<vmem>>, vector<16x128xf32>
    tpu.vector_store %arg7[%c0_23, %c0_24], %42 {strides = array<i32>} : memref<16x128xf32, #tpu.memory_space<vmem>>, vector<16x128xf32>,
    return
  }
  func.func @transform_0(%arg0: i32) -> (i32, i32) {
    %c0_i32 = arith.constant 0 : i32
    %c0_i32_0 = arith.constant 0 : i32
    return %arg0, %c0_i32 : i32, i32
  }
  func.func @transform_1(%arg0: i32) -> (i32, i32) {
    %c0_i32 = arith.constant 0 : i32
    %c0_i32_0 = arith.constant 0 : i32
    %c0_i32_1 = arith.constant 0 : i32
    return %c0_i32, %c0_i32_0 : i32, i32
  }
  func.func @transform_2(%arg0: i32) -> (i32, i32) {
    %c0_i32 = arith.constant 0 : i32
    %c0_i32_0 = arith.constant 0 : i32
    %c0_i32_1 = arith.constant 0 : i32
    return %c0_i32, %c0_i32_0 : i32, i32
  }
  func.func @transform_3(%arg0: i32) -> (i32, i32) {
    %c0_i32 = arith.constant 0 : i32
    %c0_i32_0 = arith.constant 0 : i32
    %c0_i32_1 = arith.constant 0 : i32
    return %c0_i32, %c0_i32_0 : i32, i32
  }
  func.func @transform_4(%arg0: i32) -> (i32, i32) {
    %c0_i32 = arith.constant 0 : i32
    %c0_i32_0 = arith.constant 0 : i32
    %c0_i32_1 = arith.constant 0 : i32
    return %c0_i32, %c0_i32_0 : i32, i32
  }
  func.func @transform_5(%arg0: i32) -> (i32, i32) {
    %c0_i32 = arith.constant 0 : i32
    %c0_i32_0 = arith.constant 0 : i32
    %c0_i32_1 = arith.constant 0 : i32
    return %c0_i32, %c0_i32_0 : i32, i32
  }
  func.func @transform_6(%arg0: i32) -> (i32, i32) {
    %c0_i32 = arith.constant 0 : i32
    %c0_i32_0 = arith.constant 0 : i32
    return %arg0, %c0_i32 : i32, i32
  }
}

</mosaic_0001>

<llo_original>
// kernel: _forward_jit.1
$region0: #{_forward_jit.1}
  #allocation0 [shape = 'u32[]', space=smem, size = 0x4, offset = 0x4, fixed_abs, tag = 'smem constant byte address 0x4 - core index']
  #allocation1 [shape = 'u32[72,128]{1,0:T(1,128)}', space=vmem, size = 0x9000, scoped, tag = 'internal scratch']
  %s0 = inlined_call_operand.hbm [shape: f32[16,784], index: 0, kind: input, shape index: {}]
  %s1 = inlined_call_operand.hbm [shape: bf16[784,1024], index: 1, kind: input, shape index: {}]
  %s2 = inlined_call_operand.hbm [shape: bf16[1024,512], index: 2, kind: input, shape index: {}]
  %s3 = inlined_call_operand.hbm [shape: bf16[512,256], index: 3, kind: input, shape index: {}]
  %s4 = inlined_call_operand.hbm [shape: bf16[256,128], index: 4, kind: input, shape index: {}]
  %s5 = inlined_call_operand.hbm [shape: f32[1,2048], index: 5, kind: input, shape index: {}]
  %s6 = inlined_call_operand.vmem [shape: f32[16,128], index: 6, kind: output, shape index: {}]
  %s7 = sld [smem:[#allocation0]]
  $region58: #{_forward_jit.1} parent=0
    _
  %s9 = ssub.s32 1, %s7
  %s10 = scalar_select 0, %s9, %s7
  $region1: #{_forward_jit.1} parent=0
    #allocation2 [shape = 'u8[57344]{0}', space=vmem, size = 0xe000, scoped, tag = 'input window, operand 0, single buffered']
    #allocation3 [shape = 's32[1]{0}', space=sflag, size = 0x4, scoped, tag = 'scoped memory for _forward_jit.1']
    #allocation4 [shape = 'u8[1605632]{0}', space=vmem, size = 0x188000, scoped, tag = 'input window, operand 1, single buffered']
    #allocation5 [shape = 's32[1]{0}', space=sflag, size = 0x4, scoped, tag = 'scoped memory for _forward_jit.1']
    #allocation6 [shape = 'u8[1048576]{0}', space=vmem, size = 0x100000, scoped, tag = 'input window, operand 2, single buffered']
    #allocation7 [shape = 'u8[262144]{0}', space=vmem, size = 0x40000, scoped, tag = 'input window, operand 3, single buffered']
    #allocation8 [shape = 's32[1]{0}', space=sflag, size = 0x4, scoped, tag = 'scoped memory for _forward_jit.1']
    #allocation9 [shape = 'u8[65536]{0}', space=vmem, size = 0x10000, scoped, tag = 'input window, operand 4, single buffered']
    #allocation10 [shape = 'u8[8192]{0}', space=vmem, size = 0x2000, scoped, tag = 'input window, operand 5, single buffered']
    #allocation11 [shape = 's32[1]{0}', space=sflag, size = 0x4, scoped, tag = 'scoped memory for _forward_jit.1']
    %11 = vsyncpa [#allocation3], 0
    %12 = vsyncpa [#allocation5], 0
    %13 = vsyncpa [#allocation8], 0
    %14 = vsyncpa [#allocation11], 0
    // Predicated region
    $region2: #{_forward_jit.1} parent=1 // pred_check
      _
    $region3: #{_forward_jit.1} parent=1 // pred_check_branch
      %16 = sbr.rel (0) target = $region5
    $region4: #{_forward_jit.1} parent=1 // pred_region
      %18 = vsyncadd [#allocation3], 0
      %s19 = sshll.u32 %s0, 4
      %s20 = int_to_ptr.hbm [resolvable:$true] %s19
      %s21 = sshll.u32 [#allocation2], 4
      %s22 = int_to_ptr.vmem [resolvable:$true] %s21
      %27 = dma.hbm_to_vmem [thread:$0]  %s20, 1792, %s22, [#allocation3], 896, 896, 56
    $region5: #{_forward_jit.1} parent=1 // pred_fallthru
      _
    // Predicated region
    $region6: #{_forward_jit.1} parent=1 // pred_check
      _
    $region7: #{_forward_jit.1} parent=1 // pred_check_branch
      %29 = sbr.rel (0) target = $region9
    $region8: #{_forward_jit.1} parent=1 // pred_region
      %31 = vsyncadd [#allocation5], 0
      %s32 = sshll.u32 %s1, 4
      %s33 = int_to_ptr.hbm [resolvable:$true] %s32
      %s34 = sshll.u32 [#allocation4], 4
      %s35 = int_to_ptr.vmem [resolvable:$true] %s34
      %40 = dma.hbm_to_vmem [thread:$0]  %s33, 50176, %s35, [#allocation5], 512, 512, 32
    $region9: #{_forward_jit.1} parent=1 // pred_fallthru
      _
    // Predicated region
    $region10: #{_forward_jit.1} parent=1 // pred_check
      _
    $region11: #{_forward_jit.1} parent=1 // pred_check_branch
      %42 = sbr.rel (0) target = $region13
    $region12: #{_forward_jit.1} parent=1 // pred_region
      %44 = vsyncadd [#allocation5], 0
      %s45 = sshll.u32 %s2, 4
      %s46 = int_to_ptr.hbm [resolvable:$true] %s45
      %s47 = sshll.u32 [#allocation6], 4
      %s48 = int_to_ptr.vmem [resolvable:$true] %s47
      %53 = dma.hbm_to_vmem [thread:$0]  %s46, 32768, %s48, [#allocation5], 256, 256, 16
    $region13: #{_forward_jit.1} parent=1 // pred_fallthru
      _
    // Predicated region
    $region14: #{_forward_jit.1} parent=1 // pred_check
      _
    $region15: #{_forward_jit.1} parent=1 // pred_check_branch
      %55 = sbr.rel (0) target = $region17
    $region16: #{_forward_jit.1} parent=1 // pred_region
      %57 = vsyncadd [#allocation8], 0
      %s58 = sshll.u32 %s3, 4
      %s59 = int_to_ptr.hbm [resolvable:$true] %s58
      %s60 = sshll.u32 [#allocation7], 4
      %s61 = int_to_ptr.vmem [resolvable:$true] %s60
      %66 = dma.hbm_to_vmem [thread:$0]  %s59, 8192, %s61, [#allocation8], 128, 128, 8
    $region17: #{_forward_jit.1} parent=1 // pred_fallthru
      _
    // Predicated region
    $region18: #{_forward_jit.1} parent=1 // pred_check
      _
    $region19: #{_forward_jit.1} parent=1 // pred_check_branch
      %68 = sbr.rel (0) target = $region21
    $region20: #{_forward_jit.1} parent=1 // pred_region
      %70 = vsyncadd [#allocation8], 0
      %s71 = sshll.u32 %s4, 4
      %s72 = int_to_ptr.hbm [resolvable:$true] %s71
      %s73 = sshll.u32 [#allocation9], 4
      %s74 = int_to_ptr.vmem [resolvable:$true] %s73
      %79 = dma.hbm_to_vmem [thread:$0]  %s72, 2048, %s74, [#allocation8], 64, 64, 4
    $region21: #{_forward_jit.1} parent=1 // pred_fallthru
      _
    // Predicated region
    $region22: #{_forward_jit.1} parent=1 // pred_check
      _
    $region23: #{_forward_jit.1} parent=1 // pred_check_branch
      %81 = sbr.rel (0) target = $region25
    $region24: #{_forward_jit.1} parent=1 // pred_region
      %83 = vsyncadd [#allocation11], 0
      %s85 = sshll.u32 %s5, 4
      %s86 = int_to_ptr.hbm [resolvable:$true] %s85
      %s87 = sshll.u32 [#allocation10], 4
      %s88 = int_to_ptr.vmem [resolvable:$true] %s87
      %90 = dma.hbm_to_vmem [thread:$0]  %s86, 256, %s88, [#allocation11]
    $region25: #{_forward_jit.1} parent=1 // pred_fallthru
      _
    // Predicated region
    $region26: #{_forward_jit.1} parent=1 // pred_check
      _
    $region27: #{_forward_jit.1} parent=1 // pred_check_branch
      %92 = sbr.rel (0) target = $region29
    $region28: #{_forward_jit.1} parent=1 // pred_region
      %94 = dma.done [#allocation3], 1792
    $region29: #{_forward_jit.1} parent=1 // pred_fallthru
      _
    // Predicated region
    $region30: #{_forward_jit.1} parent=1 // pred_check
      _
    $region31: #{_forward_jit.1} parent=1 // pred_check_branch
      %96 = sbr.rel (0) target = $region33
    $region32: #{_forward_jit.1} parent=1 // pred_region
      %98 = dma.done [#allocation5], 50176
    $region33: #{_forward_jit.1} parent=1 // pred_fallthru
      _
    // Predicated region
    $region34: #{_forward_jit.1} parent=1 // pred_check
      _
    $region35: #{_forward_jit.1} parent=1 // pred_check_branch
      %100 = sbr.rel (0) target = $region37
    $region36: #{_forward_jit.1} parent=1 // pred_region
      %102 = dma.done [#allocation5], 32768
    $region37: #{_forward_jit.1} parent=1 // pred_fallthru
      _
    // Predicated region
    $region38: #{_forward_jit.1} parent=1 // pred_check
      _
    $region39: #{_forward_jit.1} parent=1 // pred_check_branch
      %104 = sbr.rel (0) target = $region41
    $region40: #{_forward_jit.1} parent=1 // pred_region
      %106 = dma.done [#allocation8], 8192
    $region41: #{_forward_jit.1} parent=1 // pred_fallthru
      _
    // Predicated region
    $region42: #{_forward_jit.1} parent=1 // pred_check
      _
    $region43: #{_forward_jit.1} parent=1 // pred_check_branch
      %108 = sbr.rel (0) target = $region45
    $region44: #{_forward_jit.1} parent=1 // pred_region
      %110 = dma.done [#allocation8], 2048
    $region45: #{_forward_jit.1} parent=1 // pred_fallthru
      _
    // Predicated region
    $region46: #{_forward_jit.1} parent=1 // pred_check
      _
    $region47: #{_forward_jit.1} parent=1 // pred_check_branch
      %112 = sbr.rel (0) target = $region49
    $region48: #{_forward_jit.1} parent=1 // pred_region
      %114 = dma.done [#allocation11], 256
    $region49: #{_forward_jit.1} parent=1 // pred_fallthru
      _
    %v116 = vld [vmem:[#allocation2] sm:$0xff]
    %v117 = vld [vmem:[#allocation2 + $0x8] sm:$0xff]
    %v118 = vld [vmem:[#allocation2 + $0x10] sm:$0xff]
    %v119 = vld [vmem:[#allocation2 + $0x18] sm:$0xff]
    %v120 = vld [vmem:[#allocation2 + $0x20] sm:$0xff]
    %v121 = vld [vmem:[#allocation2 + $0x28] sm:$0xff]
    %v122 = vld [vmem:[#allocation2 + $0x30] sm:$0xff]
    %v123 = vld [vmem:[#allocation2 + $0x38] sm:$0xff]
    %v124 = vld [vmem:[#allocation2 + $0x40] sm:$0xff]
    %v125 = vld [vmem:[#allocation2 + $0x48] sm:$0xff]
    %v126 = vld [vmem:[#allocation2 + $0x50] sm:$0xff]
    %v127 = vld [vmem:[#allocation2 + $0x58] sm:$0xff]
    %v128 = vld [vmem:[#allocation2 + $0x60] sm:$0xff]
    %v129 = vld [vmem:[#allocation2 + $0x68] sm:$0xff]
    %v130 = vpack.c.bf16 %v123, %v116
    %v131 = vpack.c.bf16 %v124, %v117
    %v132 = vpack.c.bf16 %v125, %v118
    %v133 = vpack.c.bf16 %v126, %v119
    %v134 = vpack.c.bf16 %v127, %v120
    %v135 = vpack.c.bf16 %v128, %v121
    %v136 = vpack.c.bf16 %v129, %v122
    %v137 = vld [vmem:[#allocation10] sm:$0xff]
    %v139 = vperm.slane %v137, 0
    %v140 = vperm.slane %v137, 1
    %v141 = vperm.slane %v137, 2
    %v142 = vperm.slane %v137, 3
    %v143 = vperm.slane %v137, 4
    %v144 = vperm.slane %v137, 5
    %v145 = vperm.slane %v137, 6
    %v146 = vperm.slane %v137, 7
    %v155 = vpack.c.bf16 %v140, %v139
    %v156 = vpack.c.bf16 %v142, %v141
    %v157 = vpack.c.bf16 %v144, %v143
    %v158 = vpack.c.bf16 %v146, %v145
    %v159 = vld [vmem:[#allocation10 + $0x8] sm:$0xf]
    %v161 = vperm.slane %v159, 0
    %v162 = vperm.slane %v159, 1
    %v163 = vperm.slane %v159, 2
    %v164 = vperm.slane %v159, 3
    %v169 = vpack.c.bf16 %v162, %v161
    %v170 = vpack.c.bf16 %v164, %v163
    %v171 = vld [vmem:[#allocation10 + $0xc] sm:$0x3]
    %v173 = vperm.slane %v171, 0
    %v174 = vperm.slane %v171, 1
    %v177 = vpack.c.bf16 %v174, %v173
    %v178 = vld [vmem:[#allocation10 + $0xe] sm:$0x1]
    %v179 = vld [vmem:[#allocation4] sm:$0xff]
    %v180 = vld [vmem:[#allocation4 + $0x8] sm:$0xff]
    %v181 = vld [vmem:[#allocation4 + $0x10] sm:$0xff]
    %v182 = vld [vmem:[#allocation4 + $0x18] sm:$0xff]
    %v183 = vld [vmem:[#allocation4 + $0x20] sm:$0xff]
    %v184 = vld [vmem:[#allocation4 + $0x28] sm:$0xff]
    %v185 = vld [vmem:[#allocation4 + $0x30] sm:$0xff]
    %v186 = vld [vmem:[#allocation4 + $0x38] sm:$0xff]
    %v187 = vld [vmem:[#allocation4 + $0x40] sm:$0xff]
    %v188 = vld [vmem:[#allocation4 + $0x48] sm:$0xff]
    %v189 = vld [vmem:[#allocation4 + $0x50] sm:$0xff]
    %v190 = vld [vmem:[#allocation4 + $0x58] sm:$0xff]
    %v191 = vld [vmem:[#allocation4 + $0x60] sm:$0xff]
    %v192 = vld [vmem:[#allocation4 + $0x68] sm:$0xff]
    %v193 = vld [vmem:[#allocation4 + $0x70] sm:$0xff]
    %v194 = vld [vmem:[#allocation4 + $0x78] sm:$0xff]
    %v195 = vld [vmem:[#allocation4 + $0x80] sm:$0xff]
    %v196 = vld [vmem:[#allocation4 + $0x88] sm:$0xff]
    %v197 = vld [vmem:[#allocation4 + $0x90] sm:$0xff]
    %v198 = vld [vmem:[#allocation4 + $0x98] sm:$0xff]
    %v199 = vld [vmem:[#allocation4 + $0xa0] sm:$0xff]
    %v200 = vld [vmem:[#allocation4 + $0xa8] sm:$0xff]
    %v201 = vld [vmem:[#allocation4 + $0xb0] sm:$0xff]
    %v202 = vld [vmem:[#allocation4 + $0xb8] sm:$0xff]
    %v203 = vld [vmem:[#allocation4 + $0xc0] sm:$0xff]
    %v204 = vld [vmem:[#allocation4 + $0xc8] sm:$0xff]
    %v205 = vld [vmem:[#allocation4 + $0xd0] sm:$0xff]
    %v206 = vld [vmem:[#allocation4 + $0xd8] sm:$0xff]
    %v207 = vld [vmem:[#allocation4 + $0xe0] sm:$0xff]
    %v208 = vld [vmem:[#allocation4 + $0xe8] sm:$0xff]
    %v209 = vld [vmem:[#allocation4 + $0xf0] sm:$0xff]
    %v210 = vld [vmem:[#allocation4 + $0xf8] sm:$0xff]
    %v211 = vld [vmem:[#allocation4 + $0x100] sm:$0xff]
    %v212 = vld [vmem:[#allocation4 + $0x108] sm:$0xff]
    %v213 = vld [vmem:[#allocation4 + $0x110] sm:$0xff]
    %v214 = vld [vmem:[#allocation4 + $0x118] sm:$0xff]
    %v215 = vld [vmem:[#allocation4 + $0x120] sm:$0xff]
    %v216 = vld [vmem:[#allocation4 + $0x128] sm:$0xff]
    %v217 = vld [vmem:[#allocation4 + $0x130] sm:$0xff]
    %v218 = vld [vmem:[#allocation4 + $0x138] sm:$0xff]
    %v219 = vld [vmem:[#allocation4 + $0x140] sm:$0xff]
    %v220 = vld [vmem:[#allocation4 + $0x148] sm:$0xff]
    %v221 = vld [vmem:[#allocation4 + $0x150] sm:$0xff]
    %v222 = vld [vmem:[#allocation4 + $0x158] sm:$0xff]
    %v223 = vld [vmem:[#allocation4 + $0x160] sm:$0xff]
    %v224 = vld [vmem:[#allocation4 + $0x168] sm:$0xff]
    %v225 = vld [vmem:[#allocation4 + $0x170] sm:$0xff]
    %v226 = vld [vmem:[#allocation4 + $0x178] sm:$0xff]
    %v227 = vld [vmem:[#allocation4 + $0x180] sm:$0xff]
    %v228 = vld [vmem:[#allocation4 + $0x188] sm:$0xff]
    %v229 = vld [vmem:[#allocation4 + $0x190] sm:$0xff]
    %v230 = vld [vmem:[#allocation4 + $0x198] sm:$0xff]
    %v231 = vld [vmem:[#allocation4 + $0x1a0] sm:$0xff]
    %v232 = vld [vmem:[#allocation4 + $0x1a8] sm:$0xff]
    %v233 = vld [vmem:[#allocation4 + $0x1b0] sm:$0xff]
    %v234 = vld [vmem:[#allocation4 + $0x1b8] sm:$0xff]
    %v235 = vld [vmem:[#allocation4 + $0x1c0] sm:$0xff]
    %v236 = vld [vmem:[#allocation4 + $0x1c8] sm:$0xff]
    %v237 = vld [vmem:[#allocation4 + $0x1d0] sm:$0xff]
    %v238 = vld [vmem:[#allocation4 + $0x1d8] sm:$0xff]
    %v239 = vld [vmem:[#allocation4 + $0x1e0] sm:$0xff]
    %v240 = vld [vmem:[#allocation4 + $0x1e8] sm:$0xff]
    %v241 = vld [vmem:[#allocation4 + $0x1f0] sm:$0xff]
    %v242 = vld [vmem:[#allocation4 + $0x1f8] sm:$0xff]
    %v243 = vld [vmem:[#allocation4 + $0x200] sm:$0xff]
    %v244 = vld [vmem:[#allocation4 + $0x208] sm:$0xff]
    %v245 = vld [vmem:[#allocation4 + $0x210] sm:$0xff]
    %v246 = vld [vmem:[#allocation4 + $0x218] sm:$0xff]
    %v247 = vld [vmem:[#allocation4 + $0x220] sm:$0xff]
    %v248 = vld [vmem:[#allocation4 + $0x228] sm:$0xff]
    %v249 = vld [vmem:[#allocation4 + $0x230] sm:$0xff]
    %v250 = vld [vmem:[#allocation4 + $0x238] sm:$0xff]
    %v251 = vld [vmem:[#allocation4 + $0x240] sm:$0xff]
    %v252 = vld [vmem:[#allocation4 + $0x248] sm:$0xff]
    %v253 = vld [vmem:[#allocation4 + $0x250] sm:$0xff]
    %v254 = vld [vmem:[#allocation4 + $0x258] sm:$0xff]
    %v255 = vld [vmem:[#allocation4 + $0x260] sm:$0xff]
    %v256 = vld [vmem:[#allocation4 + $0x268] sm:$0xff]
    %v257 = vld [vmem:[#allocation4 + $0x270] sm:$0xff]
    %v258 = vld [vmem:[#allocation4 + $0x278] sm:$0xff]
    %v259 = vld [vmem:[#allocation4 + $0x280] sm:$0xff]
    %v260 = vld [vmem:[#allocation4 + $0x288] sm:$0xff]
    %v261 = vld [vmem:[#allocation4 + $0x290] sm:$0xff]
    %v262 = vld [vmem:[#allocation4 + $0x298] sm:$0xff]
    %v263 = vld [vmem:[#allocation4 + $0x2a0] sm:$0xff]
    %v264 = vld [vmem:[#allocation4 + $0x2a8] sm:$0xff]
    %v265 = vld [vmem:[#allocation4 + $0x2b0] sm:$0xff]
    %v266 = vld [vmem:[#allocation4 + $0x2b8] sm:$0xff]
    %v267 = vld [vmem:[#allocation4 + $0x2c0] sm:$0xff]
    %v268 = vld [vmem:[#allocation4 + $0x2c8] sm:$0xff]
    %v269 = vld [vmem:[#allocation4 + $0x2d0] sm:$0xff]
    %v270 = vld [vmem:[#allocation4 + $0x2d8] sm:$0xff]
    %v271 = vld [vmem:[#allocation4 + $0x2e0] sm:$0xff]
    %v272 = vld [vmem:[#allocation4 + $0x2e8] sm:$0xff]
    %v273 = vld [vmem:[#allocation4 + $0x2f0] sm:$0xff]
    %v274 = vld [vmem:[#allocation4 + $0x2f8] sm:$0xff]
    %v275 = vld [vmem:[#allocation4 + $0x300] sm:$0xff]
    %v276 = vld [vmem:[#allocation4 + $0x308] sm:$0xff]
    %v277 = vld [vmem:[#allocation4 + $0x310] sm:$0xff]
    %v278 = vld [vmem:[#allocation4 + $0x318] sm:$0xff]
    %v279 = vld [vmem:[#allocation4 + $0x320] sm:$0xff]
    %v280 = vld [vmem:[#allocation4 + $0x328] sm:$0xff]
    %v281 = vld [vmem:[#allocation4 + $0x330] sm:$0xff]
    %v282 = vld [vmem:[#allocation4 + $0x338] sm:$0xff]
    %v283 = vld [vmem:[#allocation4 + $0x340] sm:$0xff]
    %v284 = vld [vmem:[#allocation4 + $0x348] sm:$0xff]
    %v285 = vld [vmem:[#allocation4 + $0x350] sm:$0xff]
    %v286 = vld [vmem:[#allocation4 + $0x358] sm:$0xff]
    %v287 = vld [vmem:[#allocation4 + $0x360] sm:$0xff]
    %v288 = vld [vmem:[#allocation4 + $0x368] sm:$0xff]
    %v289 = vld [vmem:[#allocation4 + $0x370] sm:$0xff]
    %v290 = vld [vmem:[#allocation4 + $0x378] sm:$0xff]
    %v291 = vld [vmem:[#allocation4 + $0x380] sm:$0xff]
    %v292 = vld [vmem:[#allocation4 + $0x388] sm:$0xff]
    %v293 = vld [vmem:[#allocation4 + $0x390] sm:$0xff]
    %v294 = vld [vmem:[#allocation4 + $0x398] sm:$0xff]
    %v295 = vld [vmem:[#allocation4 + $0x3a0] sm:$0xff]
    %v296 = vld [vmem:[#allocation4 + $0x3a8] sm:$0xff]
    %v297 = vld [vmem:[#allocation4 + $0x3b0] sm:$0xff]
    %v298 = vld [vmem:[#allocation4 + $0x3b8] sm:$0xff]
    %v299 = vld [vmem:[#allocation4 + $0x3c0] sm:$0xff]
    %v300 = vld [vmem:[#allocation4 + $0x3c8] sm:$0xff]
    %v301 = vld [vmem:[#allocation4 + $0x3d0] sm:$0xff]
    %v302 = vld [vmem:[#allocation4 + $0x3d8] sm:$0xff]
    %v303 = vld [vmem:[#allocation4 + $0x3e0] sm:$0xff]
    %v304 = vld [vmem:[#allocation4 + $0x3e8] sm:$0xff]
    %v305 = vld [vmem:[#allocation4 + $0x3f0] sm:$0xff]
    %v306 = vld [vmem:[#allocation4 + $0x3f8] sm:$0xff]
    %v307 = vld [vmem:[#allocation4 + $0x400] sm:$0xff]
    %v308 = vld [vmem:[#allocation4 + $0x408] sm:$0xff]
    %v309 = vld [vmem:[#allocation4 + $0x410] sm:$0xff]
    %v310 = vld [vmem:[#allocation4 + $0x418] sm:$0xff]
    %v311 = vld [vmem:[#allocation4 + $0x420] sm:$0xff]
    %v312 = vld [vmem:[#allocation4 + $0x428] sm:$0xff]
    %v313 = vld [vmem:[#allocation4 + $0x430] sm:$0xff]
    %v314 = vld [vmem:[#allocation4 + $0x438] sm:$0xff]
    %v315 = vld [vmem:[#allocation4 + $0x440] sm:$0xff]
    %v316 = vld [vmem:[#allocation4 + $0x448] sm:$0xff]
    %v317 = vld [vmem:[#allocation4 + $0x450] sm:$0xff]
    %v318 = vld [vmem:[#allocation4 + $0x458] sm:$0xff]
    %v319 = vld [vmem:[#allocation4 + $0x460] sm:$0xff]
    %v320 = vld [vmem:[#allocation4 + $0x468] sm:$0xff]
    %v321 = vld [vmem:[#allocation4 + $0x470] sm:$0xff]
    %v322 = vld [vmem:[#allocation4 + $0x478] sm:$0xff]
    %v323 = vld [vmem:[#allocation4 + $0x480] sm:$0xff]
    %v324 = vld [vmem:[#allocation4 + $0x488] sm:$0xff]
    %v325 = vld [vmem:[#allocation4 + $0x490] sm:$0xff]
    %v326 = vld [vmem:[#allocation4 + $0x498] sm:$0xff]
    %v327 = vld [vmem:[#allocation4 + $0x4a0] sm:$0xff]
    %v328 = vld [vmem:[#allocation4 + $0x4a8] sm:$0xff]
    %v329 = vld [vmem:[#allocation4 + $0x4b0] sm:$0xff]
    %v330 = vld [vmem:[#allocation4 + $0x4b8] sm:$0xff]
    %v331 = vld [vmem:[#allocation4 + $0x4c0] sm:$0xff]
    %v332 = vld [vmem:[#allocation4 + $0x4c8] sm:$0xff]
    %v333 = vld [vmem:[#allocation4 + $0x4d0] sm:$0xff]
    %v334 = vld [vmem:[#allocation4 + $0x4d8] sm:$0xff]
    %v335 = vld [vmem:[#allocation4 + $0x4e0] sm:$0xff]
    %v336 = vld [vmem:[#allocation4 + $0x4e8] sm:$0xff]
    %v337 = vld [vmem:[#allocation4 + $0x4f0] sm:$0xff]
    %v338 = vld [vmem:[#allocation4 + $0x4f8] sm:$0xff]
    %v339 = vld [vmem:[#allocation4 + $0x500] sm:$0xff]
    %v340 = vld [vmem:[#allocation4 + $0x508] sm:$0xff]
    %v341 = vld [vmem:[#allocation4 + $0x510] sm:$0xff]
    %v342 = vld [vmem:[#allocation4 + $0x518] sm:$0xff]
    %v343 = vld [vmem:[#allocation4 + $0x520] sm:$0xff]
    %v344 = vld [vmem:[#allocation4 + $0x528] sm:$0xff]
    %v345 = vld [vmem:[#allocation4 + $0x530] sm:$0xff]
    %v346 = vld [vmem:[#allocation4 + $0x538] sm:$0xff]
    %v347 = vld [vmem:[#allocation4 + $0x540] sm:$0xff]
    %v348 = vld [vmem:[#allocation4 + $0x548] sm:$0xff]
    %v349 = vld [vmem:[#allocation4 + $0x550] sm:$0xff]
    %v350 = vld [vmem:[#allocation4 + $0x558] sm:$0xff]
    %v351 = vld [vmem:[#allocation4 + $0x560] sm:$0xff]
    %v352 = vld [vmem:[#allocation4 + $0x568] sm:$0xff]
    %v353 = vld [vmem:[#allocation4 + $0x570] sm:$0xff]
    %v354 = vld [vmem:[#allocation4 + $0x578] sm:$0xff]
    %v355 = vld [vmem:[#allocation4 + $0x580] sm:$0xff]
    %v356 = vld [vmem:[#allocation4 + $0x588] sm:$0xff]
    %v357 = vld [vmem:[#allocation4 + $0x590] sm:$0xff]
    %v358 = vld [vmem:[#allocation4 + $0x598] sm:$0xff]
    %v359 = vld [vmem:[#allocation4 + $0x5a0] sm:$0xff]
    %v360 = vld [vmem:[#allocation4 + $0x5a8] sm:$0xff]
    %v361 = vld [vmem:[#allocation4 + $0x5b0] sm:$0xff]
    %v362 = vld [vmem:[#allocation4 + $0x5b8] sm:$0xff]
    %v363 = vld [vmem:[#allocation4 + $0x5c0] sm:$0xff]
    %v364 = vld [vmem:[#allocation4 + $0x5c8] sm:$0xff]
    %v365 = vld [vmem:[#allocation4 + $0x5d0] sm:$0xff]
    %v366 = vld [vmem:[#allocation4 + $0x5d8] sm:$0xff]
    %v367 = vld [vmem:[#allocation4 + $0x5e0] sm:$0xff]
    %v368 = vld [vmem:[#allocation4 + $0x5e8] sm:$0xff]
    %v369 = vld [vmem:[#allocation4 + $0x5f0] sm:$0xff]
    %v370 = vld [vmem:[#allocation4 + $0x5f8] sm:$0xff]
    %v371 = vld [vmem:[#allocation4 + $0x600] sm:$0xff]
    %v372 = vld [vmem:[#allocation4 + $0x608] sm:$0xff]
    %v373 = vld [vmem:[#allocation4 + $0x610] sm:$0xff]
    %v374 = vld [vmem:[#allocation4 + $0x618] sm:$0xff]
    %v375 = vld [vmem:[#allocation4 + $0x620] sm:$0xff]
    %v376 = vld [vmem:[#allocation4 + $0x628] sm:$0xff]
    %v377 = vld [vmem:[#allocation4 + $0x630] sm:$0xff]
    %v378 = vld [vmem:[#allocation4 + $0x638] sm:$0xff]
    %v379 = vld [vmem:[#allocation4 + $0x640] sm:$0xff]
    %v380 = vld [vmem:[#allocation4 + $0x648] sm:$0xff]
    %v381 = vld [vmem:[#allocation4 + $0x650] sm:$0xff]
    %v382 = vld [vmem:[#allocation4 + $0x658] sm:$0xff]
    %v383 = vld [vmem:[#allocation4 + $0x660] sm:$0xff]
    %v384 = vld [vmem:[#allocation4 + $0x668] sm:$0xff]
    %v385 = vld [vmem:[#allocation4 + $0x670] sm:$0xff]
    %v386 = vld [vmem:[#allocation4 + $0x678] sm:$0xff]
    %v387 = vld [vmem:[#allocation4 + $0x680] sm:$0xff]
    %v388 = vld [vmem:[#allocation4 + $0x688] sm:$0xff]
    %v389 = vld [vmem:[#allocation4 + $0x690] sm:$0xff]
    %v390 = vld [vmem:[#allocation4 + $0x698] sm:$0xff]
    %v391 = vld [vmem:[#allocation4 + $0x6a0] sm:$0xff]
    %v392 = vld [vmem:[#allocation4 + $0x6a8] sm:$0xff]
    %v393 = vld [vmem:[#allocation4 + $0x6b0] sm:$0xff]
    %v394 = vld [vmem:[#allocation4 + $0x6b8] sm:$0xff]
    %v395 = vld [vmem:[#allocation4 + $0x6c0] sm:$0xff]
    %v396 = vld [vmem:[#allocation4 + $0x6c8] sm:$0xff]
    %v397 = vld [vmem:[#allocation4 + $0x6d0] sm:$0xff]
    %v398 = vld [vmem:[#allocation4 + $0x6d8] sm:$0xff]
    %v399 = vld [vmem:[#allocation4 + $0x6e0] sm:$0xff]
    %v400 = vld [vmem:[#allocation4 + $0x6e8] sm:$0xff]
    %v401 = vld [vmem:[#allocation4 + $0x6f0] sm:$0xff]
    %v402 = vld [vmem:[#allocation4 + $0x6f8] sm:$0xff]
    %v403 = vld [vmem:[#allocation4 + $0x700] sm:$0xff]
    %v404 = vld [vmem:[#allocation4 + $0x708] sm:$0xff]
    %v405 = vld [vmem:[#allocation4 + $0x710] sm:$0xff]
    %v406 = vld [vmem:[#allocation4 + $0x718] sm:$0xff]
    %v407 = vld [vmem:[#allocation4 + $0x720] sm:$0xff]
    %v408 = vld [vmem:[#allocation4 + $0x728] sm:$0xff]
    %v409 = vld [vmem:[#allocation4 + $0x730] sm:$0xff]
    %v410 = vld [vmem:[#allocation4 + $0x738] sm:$0xff]
    %v411 = vld [vmem:[#allocation4 + $0x740] sm:$0xff]
    %v412 = vld [vmem:[#allocation4 + $0x748] sm:$0xff]
    %v413 = vld [vmem:[#allocation4 + $0x750] sm:$0xff]
    %v414 = vld [vmem:[#allocation4 + $0x758] sm:$0xff]
    %v415 = vld [vmem:[#allocation4 + $0x760] sm:$0xff]
    %v416 = vld [vmem:[#allocation4 + $0x768] sm:$0xff]
    %v417 = vld [vmem:[#allocation4 + $0x770] sm:$0xff]
    %v418 = vld [vmem:[#allocation4 + $0x778] sm:$0xff]
    %v419 = vld [vmem:[#allocation4 + $0x780] sm:$0xff]
    %v420 = vld [vmem:[#allocation4 + $0x788] sm:$0xff]
    %v421 = vld [vmem:[#allocation4 + $0x790] sm:$0xff]
    %v422 = vld [vmem:[#allocation4 + $0x798] sm:$0xff]
    %v423 = vld [vmem:[#allocation4 + $0x7a0] sm:$0xff]
    %v424 = vld [vmem:[#allocation4 + $0x7a8] sm:$0xff]
    %v425 = vld [vmem:[#allocation4 + $0x7b0] sm:$0xff]
    %v426 = vld [vmem:[#allocation4 + $0x7b8] sm:$0xff]
    %v427 = vld [vmem:[#allocation4 + $0x7c0] sm:$0xff]
    %v428 = vld [vmem:[#allocation4 + $0x7c8] sm:$0xff]
    %v429 = vld [vmem:[#allocation4 + $0x7d0] sm:$0xff]
    %v430 = vld [vmem:[#allocation4 + $0x7d8] sm:$0xff]
    %v431 = vld [vmem:[#allocation4 + $0x7e0] sm:$0xff]
    %v432 = vld [vmem:[#allocation4 + $0x7e8] sm:$0xff]
    %v433 = vld [vmem:[#allocation4 + $0x7f0] sm:$0xff]
    %v434 = vld [vmem:[#allocation4 + $0x7f8] sm:$0xff]
    %v435 = vld [vmem:[#allocation4 + $0x800] sm:$0xff]
    %v436 = vld [vmem:[#allocation4 + $0x808] sm:$0xff]
    %v437 = vld [vmem:[#allocation4 + $0x810] sm:$0xff]
    %v438 = vld [vmem:[#allocation4 + $0x818] sm:$0xff]
    %v439 = vld [vmem:[#allocation4 + $0x820] sm:$0xff]
    %v440 = vld [vmem:[#allocation4 + $0x828] sm:$0xff]
    %v441 = vld [vmem:[#allocation4 + $0x830] sm:$0xff]
    %v442 = vld [vmem:[#allocation4 + $0x838] sm:$0xff]
    %v443 = vld [vmem:[#allocation4 + $0x840] sm:$0xff]
    %v444 = vld [vmem:[#allocation4 + $0x848] sm:$0xff]
    %v445 = vld [vmem:[#allocation4 + $0x850] sm:$0xff]
    %v446 = vld [vmem:[#allocation4 + $0x858] sm:$0xff]
    %v447 = vld [vmem:[#allocation4 + $0x860] sm:$0xff]
    %v448 = vld [vmem:[#allocation4 + $0x868] sm:$0xff]
    %v449 = vld [vmem:[#allocation4 + $0x870] sm:$0xff]
    %v450 = vld [vmem:[#allocation4 + $0x878] sm:$0xff]
    %v451 = vld [vmem:[#allocation4 + $0x880] sm:$0xff]
    %v452 = vld [vmem:[#allocation4 + $0x888] sm:$0xff]
    %v453 = vld [vmem:[#allocation4 + $0x890] sm:$0xff]
    %v454 = vld [vmem:[#allocation4 + $0x898] sm:$0xff]
    %v455 = vld [vmem:[#allocation4 + $0x8a0] sm:$0xff]
    %v456 = vld [vmem:[#allocation4 + $0x8a8] sm:$0xff]
    %v457 = vld [vmem:[#allocation4 + $0x8b0] sm:$0xff]
    %v458 = vld [vmem:[#allocation4 + $0x8b8] sm:$0xff]
    %v459 = vld [vmem:[#allocation4 + $0x8c0] sm:$0xff]
    %v460 = vld [vmem:[#allocation4 + $0x8c8] sm:$0xff]
    %v461 = vld [vmem:[#allocation4 + $0x8d0] sm:$0xff]
    %v462 = vld [vmem:[#allocation4 + $0x8d8] sm:$0xff]
    %v463 = vld [vmem:[#allocation4 + $0x8e0] sm:$0xff]
    %v464 = vld [vmem:[#allocation4 + $0x8e8] sm:$0xff]
    %v465 = vld [vmem:[#allocation4 + $0x8f0] sm:$0xff]
    %v466 = vld [vmem:[#allocation4 + $0x8f8] sm:$0xff]
    %v467 = vld [vmem:[#allocation4 + $0x900] sm:$0xff]
    %v468 = vld [vmem:[#allocation4 + $0x908] sm:$0xff]
    %v469 = vld [vmem:[#allocation4 + $0x910] sm:$0xff]
    %v470 = vld [vmem:[#allocation4 + $0x918] sm:$0xff]
    %v471 = vld [vmem:[#allocation4 + $0x920] sm:$0xff]
    %v472 = vld [vmem:[#allocation4 + $0x928] sm:$0xff]
    %v473 = vld [vmem:[#allocation4 + $0x930] sm:$0xff]
    %v474 = vld [vmem:[#allocation4 + $0x938] sm:$0xff]
    %v475 = vld [vmem:[#allocation4 + $0x940] sm:$0xff]
    %v476 = vld [vmem:[#allocation4 + $0x948] sm:$0xff]
    %v477 = vld [vmem:[#allocation4 + $0x950] sm:$0xff]
    %v478 = vld [vmem:[#allocation4 + $0x958] sm:$0xff]
    %v479 = vld [vmem:[#allocation4 + $0x960] sm:$0xff]
    %v480 = vld [vmem:[#allocation4 + $0x968] sm:$0xff]
    %v481 = vld [vmem:[#allocation4 + $0x970] sm:$0xff]
    %v482 = vld [vmem:[#allocation4 + $0x978] sm:$0xff]
    %v483 = vld [vmem:[#allocation4 + $0x980] sm:$0xff]
    %v484 = vld [vmem:[#allocation4 + $0x988] sm:$0xff]
    %v485 = vld [vmem:[#allocation4 + $0x990] sm:$0xff]
    %v486 = vld [vmem:[#allocation4 + $0x998] sm:$0xff]
    %v487 = vld [vmem:[#allocation4 + $0x9a0] sm:$0xff]
    %v488 = vld [vmem:[#allocation4 + $0x9a8] sm:$0xff]
    %v489 = vld [vmem:[#allocation4 + $0x9b0] sm:$0xff]
    %v490 = vld [vmem:[#allocation4 + $0x9b8] sm:$0xff]
    %v491 = vld [vmem:[#allocation4 + $0x9c0] sm:$0xff]
    %v492 = vld [vmem:[#allocation4 + $0x9c8] sm:$0xff]
    %v493 = vld [vmem:[#allocation4 + $0x9d0] sm:$0xff]
    %v494 = vld [vmem:[#allocation4 + $0x9d8] sm:$0xff]
    %v495 = vld [vmem:[#allocation4 + $0x9e0] sm:$0xff]
    %v496 = vld [vmem:[#allocation4 + $0x9e8] sm:$0xff]
    %v497 = vld [vmem:[#allocation4 + $0x9f0] sm:$0xff]
    %v498 = vld [vmem:[#allocation4 + $0x9f8] sm:$0xff]
    %v499 = vld [vmem:[#allocation4 + $0xa00] sm:$0xff]
    %v500 = vld [vmem:[#allocation4 + $0xa08] sm:$0xff]
    %v501 = vld [vmem:[#allocation4 + $0xa10] sm:$0xff]
    %v502 = vld [vmem:[#allocation4 + $0xa18] sm:$0xff]
    %v503 = vld [vmem:[#allocation4 + $0xa20] sm:$0xff]
    %v504 = vld [vmem:[#allocation4 + $0xa28] sm:$0xff]
    %v505 = vld [vmem:[#allocation4 + $0xa30] sm:$0xff]
    %v506 = vld [vmem:[#allocation4 + $0xa38] sm:$0xff]
    %v507 = vld [vmem:[#allocation4 + $0xa40] sm:$0xff]
    %v508 = vld [vmem:[#allocation4 + $0xa48] sm:$0xff]
    %v509 = vld [vmem:[#allocation4 + $0xa50] sm:$0xff]
    %v510 = vld [vmem:[#allocation4 + $0xa58] sm:$0xff]
    %v511 = vld [vmem:[#allocation4 + $0xa60] sm:$0xff]
    %v512 = vld [vmem:[#allocation4 + $0xa68] sm:$0xff]
    %v513 = vld [vmem:[#allocation4 + $0xa70] sm:$0xff]
    %v514 = vld [vmem:[#allocation4 + $0xa78] sm:$0xff]
    %v515 = vld [vmem:[#allocation4 + $0xa80] sm:$0xff]
    %v516 = vld [vmem:[#allocation4 + $0xa88] sm:$0xff]
    %v517 = vld [vmem:[#allocation4 + $0xa90] sm:$0xff]
    %v518 = vld [vmem:[#allocation4 + $0xa98] sm:$0xff]
    %v519 = vld [vmem:[#allocation4 + $0xaa0] sm:$0xff]
    %v520 = vld [vmem:[#allocation4 + $0xaa8] sm:$0xff]
    %v521 = vld [vmem:[#allocation4 + $0xab0] sm:$0xff]
    %v522 = vld [vmem:[#allocation4 + $0xab8] sm:$0xff]
    %v523 = vld [vmem:[#allocation4 + $0xac0] sm:$0xff]
    %v524 = vld [vmem:[#allocation4 + $0xac8] sm:$0xff]
    %v525 = vld [vmem:[#allocation4 + $0xad0] sm:$0xff]
    %v526 = vld [vmem:[#allocation4 + $0xad8] sm:$0xff]
    %v527 = vld [vmem:[#allocation4 + $0xae0] sm:$0xff]
    %v528 = vld [vmem:[#allocation4 + $0xae8] sm:$0xff]
    %v529 = vld [vmem:[#allocation4 + $0xaf0] sm:$0xff]
    %v530 = vld [vmem:[#allocation4 + $0xaf8] sm:$0xff]
    %v531 = vld [vmem:[#allocation4 + $0xb00] sm:$0xff]
    %v532 = vld [vmem:[#allocation4 + $0xb08] sm:$0xff]
    %v533 = vld [vmem:[#allocation4 + $0xb10] sm:$0xff]
    %v534 = vld [vmem:[#allocation4 + $0xb18] sm:$0xff]
    %v535 = vld [vmem:[#allocation4 + $0xb20] sm:$0xff]
    %v536 = vld [vmem:[#allocation4 + $0xb28] sm:$0xff]
    %v537 = vld [vmem:[#allocation4 + $0xb30] sm:$0xff]
    %v538 = vld [vmem:[#allocation4 + $0xb38] sm:$0xff]
    %v539 = vld [vmem:[#allocation4 + $0xb40] sm:$0xff]
    %v540 = vld [vmem:[#allocation4 + $0xb48] sm:$0xff]
    %v541 = vld [vmem:[#allocation4 + $0xb50] sm:$0xff]
    %v542 = vld [vmem:[#allocation4 + $0xb58] sm:$0xff]
    %v543 = vld [vmem:[#allocation4 + $0xb60] sm:$0xff]
    %v544 = vld [vmem:[#allocation4 + $0xb68] sm:$0xff]
    %v545 = vld [vmem:[#allocation4 + $0xb70] sm:$0xff]
    %v546 = vld [vmem:[#allocation4 + $0xb78] sm:$0xff]
    %v547 = vld [vmem:[#allocation4 + $0xb80] sm:$0xff]
    %v548 = vld [vmem:[#allocation4 + $0xb88] sm:$0xff]
    %v549 = vld [vmem:[#allocation4 + $0xb90] sm:$0xff]
    %v550 = vld [vmem:[#allocation4 + $0xb98] sm:$0xff]
    %v551 = vld [vmem:[#allocation4 + $0xba0] sm:$0xff]
    %v552 = vld [vmem:[#allocation4 + $0xba8] sm:$0xff]
    %v553 = vld [vmem:[#allocation4 + $0xbb0] sm:$0xff]
    %v554 = vld [vmem:[#allocation4 + $0xbb8] sm:$0xff]
    %v555 = vld [vmem:[#allocation4 + $0xbc0] sm:$0xff]
    %v556 = vld [vmem:[#allocation4 + $0xbc8] sm:$0xff]
    %v557 = vld [vmem:[#allocation4 + $0xbd0] sm:$0xff]
    %v558 = vld [vmem:[#allocation4 + $0xbd8] sm:$0xff]
    %v559 = vld [vmem:[#allocation4 + $0xbe0] sm:$0xff]
    %v560 = vld [vmem:[#allocation4 + $0xbe8] sm:$0xff]
    %v561 = vld [vmem:[#allocation4 + $0xbf0] sm:$0xff]
    %v562 = vld [vmem:[#allocation4 + $0xbf8] sm:$0xff]
    %v563 = vld [vmem:[#allocation4 + $0xc00] sm:$0xff]
    %v564 = vld [vmem:[#allocation4 + $0xc08] sm:$0xff]
    %v565 = vld [vmem:[#allocation4 + $0xc10] sm:$0xff]
    %v566 = vld [vmem:[#allocation4 + $0xc18] sm:$0xff]
    %v567 = vld [vmem:[#allocation4 + $0xc20] sm:$0xff]
    %v568 = vld [vmem:[#allocation4 + $0xc28] sm:$0xff]
    %v569 = vld [vmem:[#allocation4 + $0xc30] sm:$0xff]
    %v570 = vld [vmem:[#allocation4 + $0xc38] sm:$0xff]
    %v963 = vunpack.c.l.b16 %v179
    %v964 = vunpack.c.h.b16 %v179
    %v965 = vunpack.c.l.b16 %v180
    %v966 = vunpack.c.h.b16 %v180
    %v967 = vunpack.c.l.b16 %v181
    %v968 = vunpack.c.h.b16 %v181
    %v969 = vunpack.c.l.b16 %v182
    %v970 = vunpack.c.h.b16 %v182
    %v971 = vunpack.c.l.b16 %v183
    %v972 = vunpack.c.h.b16 %v183
    %v973 = vunpack.c.l.b16 %v184
    %v974 = vunpack.c.h.b16 %v184
    %v975 = vunpack.c.l.b16 %v185
    %v976 = vunpack.c.h.b16 %v185
    %v977 = vunpack.c.l.b16 %v186
    %v978 = vunpack.c.h.b16 %v186
    %v979 = vunpack.c.l.b16 %v187
    %v980 = vunpack.c.h.b16 %v187
    %v981 = vunpack.c.l.b16 %v188
    %v982 = vunpack.c.h.b16 %v188
    %v983 = vunpack.c.l.b16 %v189
    %v984 = vunpack.c.h.b16 %v189
    %v985 = vunpack.c.l.b16 %v190
    %v986 = vunpack.c.h.b16 %v190
    %v987 = vunpack.c.l.b16 %v191
    %v988 = vunpack.c.h.b16 %v191
    %v989 = vunpack.c.l.b16 %v192
    %v990 = vunpack.c.h.b16 %v192
    %v991 = vunpack.c.l.b16 %v193
    %v992 = vunpack.c.h.b16 %v193
    %v993 = vunpack.c.l.b16 %v194
    %v994 = vunpack.c.h.b16 %v194
    %v995 = vunpack.c.l.b16 %v195
    %v996 = vunpack.c.h.b16 %v195
    %v997 = vunpack.c.l.b16 %v196
    %v998 = vunpack.c.h.b16 %v196
    %v999 = vunpack.c.l.b16 %v197
    %v1000 = vunpack.c.h.b16 %v197
    %v1001 = vunpack.c.l.b16 %v198
    %v1002 = vunpack.c.h.b16 %v198
    %v1003 = vunpack.c.l.b16 %v199
    %v1004 = vunpack.c.h.b16 %v199
    %v1005 = vunpack.c.l.b16 %v200
    %v1006 = vunpack.c.h.b16 %v200
    %v1007 = vunpack.c.l.b16 %v201
    %v1008 = vunpack.c.h.b16 %v201
    %v1009 = vunpack.c.l.b16 %v202
    %v1010 = vunpack.c.h.b16 %v202
    %v1011 = vunpack.c.l.b16 %v203
    %v1012 = vunpack.c.h.b16 %v203
    %v1013 = vunpack.c.l.b16 %v204
    %v1014 = vunpack.c.h.b16 %v204
    %v1015 = vunpack.c.l.b16 %v205
    %v1016 = vunpack.c.h.b16 %v205
    %v1017 = vunpack.c.l.b16 %v206
    %v1018 = vunpack.c.h.b16 %v206
    %v1019 = vunpack.c.l.b16 %v207
    %v1020 = vunpack.c.h.b16 %v207
    %v1021 = vunpack.c.l.b16 %v208
    %v1022 = vunpack.c.h.b16 %v208
    %v1023 = vunpack.c.l.b16 %v209
    %v1024 = vunpack.c.h.b16 %v209
    %v1025 = vunpack.c.l.b16 %v210
    %v1026 = vunpack.c.h.b16 %v210
    %v1027 = vunpack.c.l.b16 %v211
    %v1028 = vunpack.c.h.b16 %v211
    %v1029 = vunpack.c.l.b16 %v212
    %v1030 = vunpack.c.h.b16 %v212
    %v1031 = vunpack.c.l.b16 %v213
    %v1032 = vunpack.c.h.b16 %v213
    %v1033 = vunpack.c.l.b16 %v214
    %v1034 = vunpack.c.h.b16 %v214
    %v1035 = vunpack.c.l.b16 %v215
    %v1036 = vunpack.c.h.b16 %v215
    %v1037 = vunpack.c.l.b16 %v216
    %v1038 = vunpack.c.h.b16 %v216
    %v1039 = vunpack.c.l.b16 %v217
    %v1040 = vunpack.c.h.b16 %v217
    %v1041 = vunpack.c.l.b16 %v218
    %v1042 = vunpack.c.h.b16 %v218
    %v1043 = vunpack.c.l.b16 %v219
    %v1044 = vunpack.c.h.b16 %v219
    %v1045 = vunpack.c.l.b16 %v220
    %v1046 = vunpack.c.h.b16 %v220
    %v1047 = vunpack.c.l.b16 %v221
    %v1048 = vunpack.c.h.b16 %v221
    %v1049 = vunpack.c.l.b16 %v222
    %v1050 = vunpack.c.h.b16 %v222
    %v1051 = vunpack.c.l.b16 %v223
    %v1052 = vunpack.c.h.b16 %v223
    %v1053 = vunpack.c.l.b16 %v224
    %v1054 = vunpack.c.h.b16 %v224
    %v1055 = vunpack.c.l.b16 %v225
    %v1056 = vunpack.c.h.b16 %v225
    %v1057 = vunpack.c.l.b16 %v226
    %v1058 = vunpack.c.h.b16 %v226
    %v1059 = vunpack.c.l.b16 %v227
    %v1060 = vunpack.c.h.b16 %v227
    %v1061 = vunpack.c.l.b16 %v228
    %v1062 = vunpack.c.h.b16 %v228
    %v1063 = vunpack.c.l.b16 %v229
    %v1064 = vunpack.c.h.b16 %v229
    %v1065 = vunpack.c.l.b16 %v230
    %v1066 = vunpack.c.h.b16 %v230
    %v1067 = vunpack.c.l.b16 %v231
    %v1068 = vunpack.c.h.b16 %v231
    %v1069 = vunpack.c.l.b16 %v232
    %v1070 = vunpack.c.h.b16 %v232
    %v1071 = vunpack.c.l.b16 %v233
    %v1072 = vunpack.c.h.b16 %v233
    %v1073 = vunpack.c.l.b16 %v234
    %v1074 = vunpack.c.h.b16 %v234
    %v1075 = vunpack.c.l.b16 %v235
    %v1076 = vunpack.c.h.b16 %v235
    %v1077 = vunpack.c.l.b16 %v236
    %v1078 = vunpack.c.h.b16 %v236
    %v1079 = vunpack.c.l.b16 %v237
    %v1080 = vunpack.c.h.b16 %v237
    %v1081 = vunpack.c.l.b16 %v238
    %v1082 = vunpack.c.h.b16 %v238
    %v1083 = vunpack.c.l.b16 %v239
    %v1084 = vunpack.c.h.b16 %v239
    %v1085 = vunpack.c.l.b16 %v240
    %v1086 = vunpack.c.h.b16 %v240
    %v1087 = vunpack.c.l.b16 %v241
    %v1088 = vunpack.c.h.b16 %v241
    %v1089 = vunpack.c.l.b16 %v242
    %v1090 = vunpack.c.h.b16 %v242
    %v1091 = vunpack.c.l.b16 %v243
    %v1092 = vunpack.c.h.b16 %v243
    %v1093 = vunpack.c.l.b16 %v244
    %v1094 = vunpack.c.h.b16 %v244
    %v1095 = vunpack.c.l.b16 %v245
    %v1096 = vunpack.c.h.b16 %v245
    %v1097 = vunpack.c.l.b16 %v246
    %v1098 = vunpack.c.h.b16 %v246
    %v1099 = vunpack.c.l.b16 %v247
    %v1100 = vunpack.c.h.b16 %v247
    %v1101 = vunpack.c.l.b16 %v248
    %v1102 = vunpack.c.h.b16 %v248
    %v1103 = vunpack.c.l.b16 %v249
    %v1104 = vunpack.c.h.b16 %v249
    %v1105 = vunpack.c.l.b16 %v250
    %v1106 = vunpack.c.h.b16 %v250
    %v1107 = vunpack.c.l.b16 %v251
    %v1108 = vunpack.c.h.b16 %v251
    %v1109 = vunpack.c.l.b16 %v252
    %v1110 = vunpack.c.h.b16 %v252
    %v1111 = vunpack.c.l.b16 %v253
    %v1112 = vunpack.c.h.b16 %v253
    %v1113 = vunpack.c.l.b16 %v254
    %v1114 = vunpack.c.h.b16 %v254
    %v1115 = vunpack.c.l.b16 %v255
    %v1116 = vunpack.c.h.b16 %v255
    %v1117 = vunpack.c.l.b16 %v256
    %v1118 = vunpack.c.h.b16 %v256
    %v1119 = vunpack.c.l.b16 %v257
    %v1120 = vunpack.c.h.b16 %v257
    %v1121 = vunpack.c.l.b16 %v258
    %v1122 = vunpack.c.h.b16 %v258
    %v1123 = vunpack.c.l.b16 %v259
    %v1124 = vunpack.c.h.b16 %v259
    %v1125 = vunpack.c.l.b16 %v260
    %v1126 = vunpack.c.h.b16 %v260
    %v1127 = vunpack.c.l.b16 %v261
    %v1128 = vunpack.c.h.b16 %v261
    %v1129 = vunpack.c.l.b16 %v262
    %v1130 = vunpack.c.h.b16 %v262
    %v1131 = vunpack.c.l.b16 %v263
    %v1132 = vunpack.c.h.b16 %v263
    %v1133 = vunpack.c.l.b16 %v264
    %v1134 = vunpack.c.h.b16 %v264
    %v1135 = vunpack.c.l.b16 %v265
    %v1136 = vunpack.c.h.b16 %v265
    %v1137 = vunpack.c.l.b16 %v266
    %v1138 = vunpack.c.h.b16 %v266
    %v1139 = vunpack.c.l.b16 %v267
    %v1140 = vunpack.c.h.b16 %v267
    %v1141 = vunpack.c.l.b16 %v268
    %v1142 = vunpack.c.h.b16 %v268
    %v1143 = vunpack.c.l.b16 %v269
    %v1144 = vunpack.c.h.b16 %v269
    %v1145 = vunpack.c.l.b16 %v270
    %v1146 = vunpack.c.h.b16 %v270
    %v1147 = vunpack.c.l.b16 %v271
    %v1148 = vunpack.c.h.b16 %v271
    %v1149 = vunpack.c.l.b16 %v272
    %v1150 = vunpack.c.h.b16 %v272
    %v1151 = vunpack.c.l.b16 %v273
    %v1152 = vunpack.c.h.b16 %v273
    %v1153 = vunpack.c.l.b16 %v274
    %v1154 = vunpack.c.h.b16 %v274
    %v1155 = vunpack.c.l.b16 %v275
    %v1156 = vunpack.c.h.b16 %v275
    %v1157 = vunpack.c.l.b16 %v276
    %v1158 = vunpack.c.h.b16 %v276
    %v1159 = vunpack.c.l.b16 %v277
    %v1160 = vunpack.c.h.b16 %v277
    %v1161 = vunpack.c.l.b16 %v278
    %v1162 = vunpack.c.h.b16 %v278
    %v1163 = vunpack.c.l.b16 %v279
    %v1164 = vunpack.c.h.b16 %v279
    %v1165 = vunpack.c.l.b16 %v280
    %v1166 = vunpack.c.h.b16 %v280
    %v1167 = vunpack.c.l.b16 %v281
    %v1168 = vunpack.c.h.b16 %v281
    %v1169 = vunpack.c.l.b16 %v282
    %v1170 = vunpack.c.h.b16 %v282
    %v1171 = vunpack.c.l.b16 %v283
    %v1172 = vunpack.c.h.b16 %v283
    %v1173 = vunpack.c.l.b16 %v284
    %v1174 = vunpack.c.h.b16 %v284
    %v1175 = vunpack.c.l.b16 %v285
    %v1176 = vunpack.c.h.b16 %v285
    %v1177 = vunpack.c.l.b16 %v286
    %v1178 = vunpack.c.h.b16 %v286
    %v1179 = vunpack.c.l.b16 %v287
    %v1180 = vunpack.c.h.b16 %v287
    %v1181 = vunpack.c.l.b16 %v288
    %v1182 = vunpack.c.h.b16 %v288
    %v1183 = vunpack.c.l.b16 %v289
    %v1184 = vunpack.c.h.b16 %v289
    %v1185 = vunpack.c.l.b16 %v290
    %v1186 = vunpack.c.h.b16 %v290
    %v1187 = vunpack.c.l.b16 %v291
    %v1188 = vunpack.c.h.b16 %v291
    %v1189 = vunpack.c.l.b16 %v292
    %v1190 = vunpack.c.h.b16 %v292
    %v1191 = vunpack.c.l.b16 %v293
    %v1192 = vunpack.c.h.b16 %v293
    %v1193 = vunpack.c.l.b16 %v294
    %v1194 = vunpack.c.h.b16 %v294
    %v1195 = vunpack.c.l.b16 %v295
    %v1196 = vunpack.c.h.b16 %v295
    %v1197 = vunpack.c.l.b16 %v296
    %v1198 = vunpack.c.h.b16 %v296
    %v1199 = vunpack.c.l.b16 %v297
    %v1200 = vunpack.c.h.b16 %v297
    %v1201 = vunpack.c.l.b16 %v298
    %v1202 = vunpack.c.h.b16 %v298
    %v1203 = vunpack.c.l.b16 %v299
    %v1204 = vunpack.c.h.b16 %v299
    %v1205 = vunpack.c.l.b16 %v300
    %v1206 = vunpack.c.h.b16 %v300
    %v1207 = vunpack.c.l.b16 %v301
    %v1208 = vunpack.c.h.b16 %v301
    %v1209 = vunpack.c.l.b16 %v302
    %v1210 = vunpack.c.h.b16 %v302
    %v1211 = vunpack.c.l.b16 %v303
    %v1212 = vunpack.c.h.b16 %v303
    %v1213 = vunpack.c.l.b16 %v304
    %v1214 = vunpack.c.h.b16 %v304
    %v1215 = vunpack.c.l.b16 %v305
    %v1216 = vunpack.c.h.b16 %v305
    %v1217 = vunpack.c.l.b16 %v306
    %v1218 = vunpack.c.h.b16 %v306
    %v1219 = vunpack.c.l.b16 %v307
    %v1220 = vunpack.c.h.b16 %v307
    %v1221 = vunpack.c.l.b16 %v308
    %v1222 = vunpack.c.h.b16 %v308
    %v1223 = vunpack.c.l.b16 %v309
    %v1224 = vunpack.c.h.b16 %v309
    %v1225 = vunpack.c.l.b16 %v310
    %v1226 = vunpack.c.h.b16 %v310
    %v1227 = vunpack.c.l.b16 %v311
    %v1228 = vunpack.c.h.b16 %v311
    %v1229 = vunpack.c.l.b16 %v312
    %v1230 = vunpack.c.h.b16 %v312
    %v1231 = vunpack.c.l.b16 %v313
    %v1232 = vunpack.c.h.b16 %v313
    %v1233 = vunpack.c.l.b16 %v314
    %v1234 = vunpack.c.h.b16 %v314
    %v1235 = vunpack.c.l.b16 %v315
    %v1236 = vunpack.c.h.b16 %v315
    %v1237 = vunpack.c.l.b16 %v316
    %v1238 = vunpack.c.h.b16 %v316
    %v1239 = vunpack.c.l.b16 %v317
    %v1240 = vunpack.c.h.b16 %v317
    %v1241 = vunpack.c.l.b16 %v318
    %v1242 = vunpack.c.h.b16 %v318
    %v1243 = vunpack.c.l.b16 %v319
    %v1244 = vunpack.c.h.b16 %v319
    %v1245 = vunpack.c.l.b16 %v320
    %v1246 = vunpack.c.h.b16 %v320
    %v1247 = vunpack.c.l.b16 %v321
    %v1248 = vunpack.c.h.b16 %v321
    %v1249 = vunpack.c.l.b16 %v322
    %v1250 = vunpack.c.h.b16 %v322
    %v1251 = vunpack.c.l.b16 %v323
    %v1252 = vunpack.c.h.b16 %v323
    %v1253 = vunpack.c.l.b16 %v324
    %v1254 = vunpack.c.h.b16 %v324
    %v1255 = vunpack.c.l.b16 %v325
    %v1256 = vunpack.c.h.b16 %v325
    %v1257 = vunpack.c.l.b16 %v326
    %v1258 = vunpack.c.h.b16 %v326
    %v1259 = vunpack.c.l.b16 %v327
    %v1260 = vunpack.c.h.b16 %v327
    %v1261 = vunpack.c.l.b16 %v328
    %v1262 = vunpack.c.h.b16 %v328
    %v1263 = vunpack.c.l.b16 %v329
    %v1264 = vunpack.c.h.b16 %v329
    %v1265 = vunpack.c.l.b16 %v330
    %v1266 = vunpack.c.h.b16 %v330
    %v1267 = vunpack.c.l.b16 %v331
    %v1268 = vunpack.c.h.b16 %v331
    %v1269 = vunpack.c.l.b16 %v332
    %v1270 = vunpack.c.h.b16 %v332
    %v1271 = vunpack.c.l.b16 %v333
    %v1272 = vunpack.c.h.b16 %v333
    %v1273 = vunpack.c.l.b16 %v334
    %v1274 = vunpack.c.h.b16 %v334
    %v1275 = vunpack.c.l.b16 %v335
    %v1276 = vunpack.c.h.b16 %v335
    %v1277 = vunpack.c.l.b16 %v336
    %v1278 = vunpack.c.h.b16 %v336
    %v1279 = vunpack.c.l.b16 %v337
    %v1280 = vunpack.c.h.b16 %v337
    %v1281 = vunpack.c.l.b16 %v338
    %v1282 = vunpack.c.h.b16 %v338
    %v1283 = vunpack.c.l.b16 %v339
    %v1284 = vunpack.c.h.b16 %v339
    %v1285 = vunpack.c.l.b16 %v340
    %v1286 = vunpack.c.h.b16 %v340
    %v1287 = vunpack.c.l.b16 %v341
    %v1288 = vunpack.c.h.b16 %v341
    %v1289 = vunpack.c.l.b16 %v342
    %v1290 = vunpack.c.h.b16 %v342
    %v1291 = vunpack.c.l.b16 %v343
    %v1292 = vunpack.c.h.b16 %v343
    %v1293 = vunpack.c.l.b16 %v344
    %v1294 = vunpack.c.h.b16 %v344
    %v1295 = vunpack.c.l.b16 %v345
    %v1296 = vunpack.c.h.b16 %v345
    %v1297 = vunpack.c.l.b16 %v346
    %v1298 = vunpack.c.h.b16 %v346
    %v1299 = vunpack.c.l.b16 %v347
    %v1300 = vunpack.c.h.b16 %v347
    %v1301 = vunpack.c.l.b16 %v348
    %v1302 = vunpack.c.h.b16 %v348
    %v1303 = vunpack.c.l.b16 %v349
    %v1304 = vunpack.c.h.b16 %v349
    %v1305 = vunpack.c.l.b16 %v350
    %v1306 = vunpack.c.h.b16 %v350
    %v1307 = vunpack.c.l.b16 %v351
    %v1308 = vunpack.c.h.b16 %v351
    %v1309 = vunpack.c.l.b16 %v352
    %v1310 = vunpack.c.h.b16 %v352
    %v1311 = vunpack.c.l.b16 %v353
    %v1312 = vunpack.c.h.b16 %v353
    %v1313 = vunpack.c.l.b16 %v354
    %v1314 = vunpack.c.h.b16 %v354
    %v1315 = vunpack.c.l.b16 %v355
    %v1316 = vunpack.c.h.b16 %v355
    %v1317 = vunpack.c.l.b16 %v356
    %v1318 = vunpack.c.h.b16 %v356
    %v1319 = vunpack.c.l.b16 %v357
    %v1320 = vunpack.c.h.b16 %v357
    %v1321 = vunpack.c.l.b16 %v358
    %v1322 = vunpack.c.h.b16 %v358
    %v1323 = vunpack.c.l.b16 %v359
    %v1324 = vunpack.c.h.b16 %v359
    %v1325 = vunpack.c.l.b16 %v360
    %v1326 = vunpack.c.h.b16 %v360
    %v1327 = vunpack.c.l.b16 %v361
    %v1328 = vunpack.c.h.b16 %v361
    %v1329 = vunpack.c.l.b16 %v362
    %v1330 = vunpack.c.h.b16 %v362
    %v1331 = vunpack.c.l.b16 %v363
    %v1332 = vunpack.c.h.b16 %v363
    %v1333 = vunpack.c.l.b16 %v364
    %v1334 = vunpack.c.h.b16 %v364
    %v1335 = vunpack.c.l.b16 %v365
    %v1336 = vunpack.c.h.b16 %v365
    %v1337 = vunpack.c.l.b16 %v366
    %v1338 = vunpack.c.h.b16 %v366
    %v1339 = vunpack.c.l.b16 %v367
    %v1340 = vunpack.c.h.b16 %v367
    %v1341 = vunpack.c.l.b16 %v368
    %v1342 = vunpack.c.h.b16 %v368
    %v1343 = vunpack.c.l.b16 %v369
    %v1344 = vunpack.c.h.b16 %v369
    %v1345 = vunpack.c.l.b16 %v370
    %v1346 = vunpack.c.h.b16 %v370
    %v1347 = vunpack.c.l.b16 %v371
    %v1348 = vunpack.c.h.b16 %v371
    %v1349 = vunpack.c.l.b16 %v372
    %v1350 = vunpack.c.h.b16 %v372
    %v1351 = vunpack.c.l.b16 %v373
    %v1352 = vunpack.c.h.b16 %v373
    %v1353 = vunpack.c.l.b16 %v374
    %v1354 = vunpack.c.h.b16 %v374
    %v1355 = vunpack.c.l.b16 %v375
    %v1356 = vunpack.c.h.b16 %v375
    %v1357 = vunpack.c.l.b16 %v376
    %v1358 = vunpack.c.h.b16 %v376
    %v1359 = vunpack.c.l.b16 %v377
    %v1360 = vunpack.c.h.b16 %v377
    %v1361 = vunpack.c.l.b16 %v378
    %v1362 = vunpack.c.h.b16 %v378
    %v1363 = vunpack.c.l.b16 %v379
    %v1364 = vunpack.c.h.b16 %v379
    %v1365 = vunpack.c.l.b16 %v380
    %v1366 = vunpack.c.h.b16 %v380
    %v1367 = vunpack.c.l.b16 %v381
    %v1368 = vunpack.c.h.b16 %v381
    %v1369 = vunpack.c.l.b16 %v382
    %v1370 = vunpack.c.h.b16 %v382
    %v1371 = vunpack.c.l.b16 %v383
    %v1372 = vunpack.c.h.b16 %v383
    %v1373 = vunpack.c.l.b16 %v384
    %v1374 = vunpack.c.h.b16 %v384
    %v1375 = vunpack.c.l.b16 %v385
    %v1376 = vunpack.c.h.b16 %v385
    %v1377 = vunpack.c.l.b16 %v386
    %v1378 = vunpack.c.h.b16 %v386
    %v1379 = vunpack.c.l.b16 %v387
    %v1380 = vunpack.c.h.b16 %v387
    %v1381 = vunpack.c.l.b16 %v388
    %v1382 = vunpack.c.h.b16 %v388
    %v1383 = vunpack.c.l.b16 %v389
    %v1384 = vunpack.c.h.b16 %v389
    %v1385 = vunpack.c.l.b16 %v390
    %v1386 = vunpack.c.h.b16 %v390
    %v1387 = vunpack.c.l.b16 %v391
    %v1388 = vunpack.c.h.b16 %v391
    %v1389 = vunpack.c.l.b16 %v392
    %v1390 = vunpack.c.h.b16 %v392
    %v1391 = vunpack.c.l.b16 %v393
    %v1392 = vunpack.c.h.b16 %v393
    %v1393 = vunpack.c.l.b16 %v394
    %v1394 = vunpack.c.h.b16 %v394
    %v1395 = vunpack.c.l.b16 %v395
    %v1396 = vunpack.c.h.b16 %v395
    %v1397 = vunpack.c.l.b16 %v396
    %v1398 = vunpack.c.h.b16 %v396
    %v1399 = vunpack.c.l.b16 %v397
    %v1400 = vunpack.c.h.b16 %v397
    %v1401 = vunpack.c.l.b16 %v398
    %v1402 = vunpack.c.h.b16 %v398
    %v1403 = vunpack.c.l.b16 %v399
    %v1404 = vunpack.c.h.b16 %v399
    %v1405 = vunpack.c.l.b16 %v400
    %v1406 = vunpack.c.h.b16 %v400
    %v1407 = vunpack.c.l.b16 %v401
    %v1408 = vunpack.c.h.b16 %v401
    %v1409 = vunpack.c.l.b16 %v402
    %v1410 = vunpack.c.h.b16 %v402
    %v1411 = vunpack.c.l.b16 %v403
    %v1412 = vunpack.c.h.b16 %v403
    %v1413 = vunpack.c.l.b16 %v404
    %v1414 = vunpack.c.h.b16 %v404
    %v1415 = vunpack.c.l.b16 %v405
    %v1416 = vunpack.c.h.b16 %v405
    %v1417 = vunpack.c.l.b16 %v406
    %v1418 = vunpack.c.h.b16 %v406
    %v1419 = vunpack.c.l.b16 %v407
    %v1420 = vunpack.c.h.b16 %v407
    %v1421 = vunpack.c.l.b16 %v408
    %v1422 = vunpack.c.h.b16 %v408
    %v1423 = vunpack.c.l.b16 %v409
    %v1424 = vunpack.c.h.b16 %v409
    %v1425 = vunpack.c.l.b16 %v410
    %v1426 = vunpack.c.h.b16 %v410
    %v1427 = vunpack.c.l.b16 %v411
    %v1428 = vunpack.c.h.b16 %v411
    %v1429 = vunpack.c.l.b16 %v412
    %v1430 = vunpack.c.h.b16 %v412
    %v1431 = vunpack.c.l.b16 %v413
    %v1432 = vunpack.c.h.b16 %v413
    %v1433 = vunpack.c.l.b16 %v414
    %v1434 = vunpack.c.h.b16 %v414
    %v1435 = vunpack.c.l.b16 %v415
    %v1436 = vunpack.c.h.b16 %v415
    %v1437 = vunpack.c.l.b16 %v416
    %v1438 = vunpack.c.h.b16 %v416
    %v1439 = vunpack.c.l.b16 %v417
    %v1440 = vunpack.c.h.b16 %v417
    %v1441 = vunpack.c.l.b16 %v418
    %v1442 = vunpack.c.h.b16 %v418
    %v1443 = vunpack.c.l.b16 %v419
    %v1444 = vunpack.c.h.b16 %v419
    %v1445 = vunpack.c.l.b16 %v420
    %v1446 = vunpack.c.h.b16 %v420
    %v1447 = vunpack.c.l.b16 %v421
    %v1448 = vunpack.c.h.b16 %v421
    %v1449 = vunpack.c.l.b16 %v422
    %v1450 = vunpack.c.h.b16 %v422
    %v1451 = vunpack.c.l.b16 %v423
    %v1452 = vunpack.c.h.b16 %v423
    %v1453 = vunpack.c.l.b16 %v424
    %v1454 = vunpack.c.h.b16 %v424
    %v1455 = vunpack.c.l.b16 %v425
    %v1456 = vunpack.c.h.b16 %v425
    %v1457 = vunpack.c.l.b16 %v426
    %v1458 = vunpack.c.h.b16 %v426
    %v1459 = vunpack.c.l.b16 %v427
    %v1460 = vunpack.c.h.b16 %v427
    %v1461 = vunpack.c.l.b16 %v428
    %v1462 = vunpack.c.h.b16 %v428
    %v1463 = vunpack.c.l.b16 %v429
    %v1464 = vunpack.c.h.b16 %v429
    %v1465 = vunpack.c.l.b16 %v430
    %v1466 = vunpack.c.h.b16 %v430
    %v1467 = vunpack.c.l.b16 %v431
    %v1468 = vunpack.c.h.b16 %v431
    %v1469 = vunpack.c.l.b16 %v432
    %v1470 = vunpack.c.h.b16 %v432
    %v1471 = vunpack.c.l.b16 %v433
    %v1472 = vunpack.c.h.b16 %v433
    %v1473 = vunpack.c.l.b16 %v434
    %v1474 = vunpack.c.h.b16 %v434
    %v1475 = vunpack.c.l.b16 %v435
    %v1476 = vunpack.c.h.b16 %v435
    %v1477 = vunpack.c.l.b16 %v436
    %v1478 = vunpack.c.h.b16 %v436
    %v1479 = vunpack.c.l.b16 %v437
    %v1480 = vunpack.c.h.b16 %v437
    %v1481 = vunpack.c.l.b16 %v438
    %v1482 = vunpack.c.h.b16 %v438
    %v1483 = vunpack.c.l.b16 %v439
    %v1484 = vunpack.c.h.b16 %v439
    %v1485 = vunpack.c.l.b16 %v440
    %v1486 = vunpack.c.h.b16 %v440
    %v1487 = vunpack.c.l.b16 %v441
    %v1488 = vunpack.c.h.b16 %v441
    %v1489 = vunpack.c.l.b16 %v442
    %v1490 = vunpack.c.h.b16 %v442
    %v1491 = vunpack.c.l.b16 %v443
    %v1492 = vunpack.c.h.b16 %v443
    %v1493 = vunpack.c.l.b16 %v444
    %v1494 = vunpack.c.h.b16 %v444
    %v1495 = vunpack.c.l.b16 %v445
    %v1496 = vunpack.c.h.b16 %v445
    %v1497 = vunpack.c.l.b16 %v446
    %v1498 = vunpack.c.h.b16 %v446
    %v1499 = vunpack.c.l.b16 %v447
    %v1500 = vunpack.c.h.b16 %v447
    %v1501 = vunpack.c.l.b16 %v448
    %v1502 = vunpack.c.h.b16 %v448
    %v1503 = vunpack.c.l.b16 %v449
    %v1504 = vunpack.c.h.b16 %v449
    %v1505 = vunpack.c.l.b16 %v450
    %v1506 = vunpack.c.h.b16 %v450
    %v1507 = vunpack.c.l.b16 %v451
    %v1508 = vunpack.c.h.b16 %v451
    %v1509 = vunpack.c.l.b16 %v452
    %v1510 = vunpack.c.h.b16 %v452
    %v1511 = vunpack.c.l.b16 %v453
    %v1512 = vunpack.c.h.b16 %v453
    %v1513 = vunpack.c.l.b16 %v454
    %v1514 = vunpack.c.h.b16 %v454
    %v1515 = vunpack.c.l.b16 %v455
    %v1516 = vunpack.c.h.b16 %v455
    %v1517 = vunpack.c.l.b16 %v456
    %v1518 = vunpack.c.h.b16 %v456
    %v1519 = vunpack.c.l.b16 %v457
    %v1520 = vunpack.c.h.b16 %v457
    %v1521 = vunpack.c.l.b16 %v458
    %v1522 = vunpack.c.h.b16 %v458
    %v1523 = vunpack.c.l.b16 %v459
    %v1524 = vunpack.c.h.b16 %v459
    %v1525 = vunpack.c.l.b16 %v460
    %v1526 = vunpack.c.h.b16 %v460
    %v1527 = vunpack.c.l.b16 %v461
    %v1528 = vunpack.c.h.b16 %v461
    %v1529 = vunpack.c.l.b16 %v462
    %v1530 = vunpack.c.h.b16 %v462
    %v1531 = vunpack.c.l.b16 %v463
    %v1532 = vunpack.c.h.b16 %v463
    %v1533 = vunpack.c.l.b16 %v464
    %v1534 = vunpack.c.h.b16 %v464
    %v1535 = vunpack.c.l.b16 %v465
    %v1536 = vunpack.c.h.b16 %v465
    %v1537 = vunpack.c.l.b16 %v466
    %v1538 = vunpack.c.h.b16 %v466
    %v1539 = vunpack.c.l.b16 %v467
    %v1540 = vunpack.c.h.b16 %v467
    %v1541 = vunpack.c.l.b16 %v468
    %v1542 = vunpack.c.h.b16 %v468
    %v1543 = vunpack.c.l.b16 %v469
    %v1544 = vunpack.c.h.b16 %v469
    %v1545 = vunpack.c.l.b16 %v470
    %v1546 = vunpack.c.h.b16 %v470
    %v1547 = vunpack.c.l.b16 %v471
    %v1548 = vunpack.c.h.b16 %v471
    %v1549 = vunpack.c.l.b16 %v472
    %v1550 = vunpack.c.h.b16 %v472
    %v1551 = vunpack.c.l.b16 %v473
    %v1552 = vunpack.c.h.b16 %v473
    %v1553 = vunpack.c.l.b16 %v474
    %v1554 = vunpack.c.h.b16 %v474
    %v1555 = vunpack.c.l.b16 %v475
    %v1556 = vunpack.c.h.b16 %v475
    %v1557 = vunpack.c.l.b16 %v476
    %v1558 = vunpack.c.h.b16 %v476
    %v1559 = vunpack.c.l.b16 %v477
    %v1560 = vunpack.c.h.b16 %v477
    %v1561 = vunpack.c.l.b16 %v478
    %v1562 = vunpack.c.h.b16 %v478
    %v1563 = vunpack.c.l.b16 %v479
    %v1564 = vunpack.c.h.b16 %v479
    %v1565 = vunpack.c.l.b16 %v480
    %v1566 = vunpack.c.h.b16 %v480
    %v1567 = vunpack.c.l.b16 %v481
    %v1568 = vunpack.c.h.b16 %v481
    %v1569 = vunpack.c.l.b16 %v482
    %v1570 = vunpack.c.h.b16 %v482
    %v1571 = vunpack.c.l.b16 %v483
    %v1572 = vunpack.c.h.b16 %v483
    %v1573 = vunpack.c.l.b16 %v484
    %v1574 = vunpack.c.h.b16 %v484
    %v1575 = vunpack.c.l.b16 %v485
    %v1576 = vunpack.c.h.b16 %v485
    %v1577 = vunpack.c.l.b16 %v486
    %v1578 = vunpack.c.h.b16 %v486
    %v1579 = vunpack.c.l.b16 %v487
    %v1580 = vunpack.c.h.b16 %v487
    %v1581 = vunpack.c.l.b16 %v488
    %v1582 = vunpack.c.h.b16 %v488
    %v1583 = vunpack.c.l.b16 %v489
    %v1584 = vunpack.c.h.b16 %v489
    %v1585 = vunpack.c.l.b16 %v490
    %v1586 = vunpack.c.h.b16 %v490
    %v1587 = vunpack.c.l.b16 %v491
    %v1588 = vunpack.c.h.b16 %v491
    %v1589 = vunpack.c.l.b16 %v492
    %v1590 = vunpack.c.h.b16 %v492
    %v1591 = vunpack.c.l.b16 %v493
    %v1592 = vunpack.c.h.b16 %v493
    %v1593 = vunpack.c.l.b16 %v494
    %v1594 = vunpack.c.h.b16 %v494
    %v1595 = vunpack.c.l.b16 %v495
    %v1596 = vunpack.c.h.b16 %v495
    %v1597 = vunpack.c.l.b16 %v496
    %v1598 = vunpack.c.h.b16 %v496
    %v1599 = vunpack.c.l.b16 %v497
    %v1600 = vunpack.c.h.b16 %v497
    %v1601 = vunpack.c.l.b16 %v498
    %v1602 = vunpack.c.h.b16 %v498
    %v1603 = vunpack.c.l.b16 %v499
    %v1604 = vunpack.c.h.b16 %v499
    %v1605 = vunpack.c.l.b16 %v500
    %v1606 = vunpack.c.h.b16 %v500
    %v1607 = vunpack.c.l.b16 %v501
    %v1608 = vunpack.c.h.b16 %v501
    %v1609 = vunpack.c.l.b16 %v502
    %v1610 = vunpack.c.h.b16 %v502
    %v1611 = vunpack.c.l.b16 %v503
    %v1612 = vunpack.c.h.b16 %v503
    %v1613 = vunpack.c.l.b16 %v504
    %v1614 = vunpack.c.h.b16 %v504
    %v1615 = vunpack.c.l.b16 %v505
    %v1616 = vunpack.c.h.b16 %v505
    %v1617 = vunpack.c.l.b16 %v506
    %v1618 = vunpack.c.h.b16 %v506
    %v1619 = vunpack.c.l.b16 %v507
    %v1620 = vunpack.c.h.b16 %v507
    %v1621 = vunpack.c.l.b16 %v508
    %v1622 = vunpack.c.h.b16 %v508
    %v1623 = vunpack.c.l.b16 %v509
    %v1624 = vunpack.c.h.b16 %v509
    %v1625 = vunpack.c.l.b16 %v510
    %v1626 = vunpack.c.h.b16 %v510
    %v1627 = vunpack.c.l.b16 %v511
    %v1628 = vunpack.c.h.b16 %v511
    %v1629 = vunpack.c.l.b16 %v512
    %v1630 = vunpack.c.h.b16 %v512
    %v1631 = vunpack.c.l.b16 %v513
    %v1632 = vunpack.c.h.b16 %v513
    %v1633 = vunpack.c.l.b16 %v514
    %v1634 = vunpack.c.h.b16 %v514
    %v1635 = vunpack.c.l.b16 %v515
    %v1636 = vunpack.c.h.b16 %v515
    %v1637 = vunpack.c.l.b16 %v516
    %v1638 = vunpack.c.h.b16 %v516
    %v1639 = vunpack.c.l.b16 %v517
    %v1640 = vunpack.c.h.b16 %v517
    %v1641 = vunpack.c.l.b16 %v518
    %v1642 = vunpack.c.h.b16 %v518
    %v1643 = vunpack.c.l.b16 %v519
    %v1644 = vunpack.c.h.b16 %v519
    %v1645 = vunpack.c.l.b16 %v520
    %v1646 = vunpack.c.h.b16 %v520
    %v1647 = vunpack.c.l.b16 %v521
    %v1648 = vunpack.c.h.b16 %v521
    %v1649 = vunpack.c.l.b16 %v522
    %v1650 = vunpack.c.h.b16 %v522
    %v1651 = vunpack.c.l.b16 %v523
    %v1652 = vunpack.c.h.b16 %v523
    %v1653 = vunpack.c.l.b16 %v524
    %v1654 = vunpack.c.h.b16 %v524
    %v1655 = vunpack.c.l.b16 %v525
    %v1656 = vunpack.c.h.b16 %v525
    %v1657 = vunpack.c.l.b16 %v526
    %v1658 = vunpack.c.h.b16 %v526
    %v1659 = vunpack.c.l.b16 %v527
    %v1660 = vunpack.c.h.b16 %v527
    %v1661 = vunpack.c.l.b16 %v528
    %v1662 = vunpack.c.h.b16 %v528
    %v1663 = vunpack.c.l.b16 %v529
    %v1664 = vunpack.c.h.b16 %v529
    %v1665 = vunpack.c.l.b16 %v530
    %v1666 = vunpack.c.h.b16 %v530
    %v1667 = vunpack.c.l.b16 %v531
    %v1668 = vunpack.c.h.b16 %v531
    %v1669 = vunpack.c.l.b16 %v532
    %v1670 = vunpack.c.h.b16 %v532
    %v1671 = vunpack.c.l.b16 %v533
    %v1672 = vunpack.c.h.b16 %v533
    %v1673 = vunpack.c.l.b16 %v534
    %v1674 = vunpack.c.h.b16 %v534
    %v1675 = vunpack.c.l.b16 %v535
    %v1676 = vunpack.c.h.b16 %v535
    %v1677 = vunpack.c.l.b16 %v536
    %v1678 = vunpack.c.h.b16 %v536
    %v1679 = vunpack.c.l.b16 %v537
    %v1680 = vunpack.c.h.b16 %v537
    %v1681 = vunpack.c.l.b16 %v538
    %v1682 = vunpack.c.h.b16 %v538
    %v1683 = vunpack.c.l.b16 %v539
    %v1684 = vunpack.c.h.b16 %v539
    %v1685 = vunpack.c.l.b16 %v540
    %v1686 = vunpack.c.h.b16 %v540
    %v1687 = vunpack.c.l.b16 %v541
    %v1688 = vunpack.c.h.b16 %v541
    %v1689 = vunpack.c.l.b16 %v542
    %v1690 = vunpack.c.h.b16 %v542
    %v1691 = vunpack.c.l.b16 %v543
    %v1692 = vunpack.c.h.b16 %v543
    %v1693 = vunpack.c.l.b16 %v544
    %v1694 = vunpack.c.h.b16 %v544
    %v1695 = vunpack.c.l.b16 %v545
    %v1696 = vunpack.c.h.b16 %v545
    %v1697 = vunpack.c.l.b16 %v546
    %v1698 = vunpack.c.h.b16 %v546
    %v1699 = vunpack.c.l.b16 %v547
    %v1700 = vunpack.c.h.b16 %v547
    %v1701 = vunpack.c.l.b16 %v548
    %v1702 = vunpack.c.h.b16 %v548
    %v1703 = vunpack.c.l.b16 %v549
    %v1704 = vunpack.c.h.b16 %v549
    %v1705 = vunpack.c.l.b16 %v550
    %v1706 = vunpack.c.h.b16 %v550
    %v1707 = vunpack.c.l.b16 %v551
    %v1708 = vunpack.c.h.b16 %v551
    %v1709 = vunpack.c.l.b16 %v552
    %v1710 = vunpack.c.h.b16 %v552
    %v1711 = vunpack.c.l.b16 %v553
    %v1712 = vunpack.c.h.b16 %v553
    %v1713 = vunpack.c.l.b16 %v554
    %v1714 = vunpack.c.h.b16 %v554
    %v1715 = vunpack.c.l.b16 %v555
    %v1716 = vunpack.c.h.b16 %v555
    %v1717 = vunpack.c.l.b16 %v556
    %v1718 = vunpack.c.h.b16 %v556
    %v1719 = vunpack.c.l.b16 %v557
    %v1720 = vunpack.c.h.b16 %v557
    %v1721 = vunpack.c.l.b16 %v558
    %v1722 = vunpack.c.h.b16 %v558
    %v1723 = vunpack.c.l.b16 %v559
    %v1724 = vunpack.c.h.b16 %v559
    %v1725 = vunpack.c.l.b16 %v560
    %v1726 = vunpack.c.h.b16 %v560
    %v1727 = vunpack.c.l.b16 %v561
    %v1728 = vunpack.c.h.b16 %v561
    %v1729 = vunpack.c.l.b16 %v562
    %v1730 = vunpack.c.h.b16 %v562
    %v1731 = vunpack.c.l.b16 %v563
    %v1732 = vunpack.c.h.b16 %v563
    %v1733 = vunpack.c.l.b16 %v564
    %v1734 = vunpack.c.h.b16 %v564
    %v1735 = vunpack.c.l.b16 %v565
    %v1736 = vunpack.c.h.b16 %v565
    %v1737 = vunpack.c.l.b16 %v566
    %v1738 = vunpack.c.h.b16 %v566
    %v1739 = vunpack.c.l.b16 %v567
    %v1740 = vunpack.c.h.b16 %v567
    %v1741 = vunpack.c.l.b16 %v568
    %v1742 = vunpack.c.h.b16 %v568
    %v1743 = vunpack.c.l.b16 %v569
    %v1744 = vunpack.c.h.b16 %v569
    %v1745 = vunpack.c.l.b16 %v570
    %v1746 = vunpack.c.h.b16 %v570
    %v1747 = vpack.c.b16 %v971, %v963
    %v1748 = vpack.c.b16 %v972, %v964
    %v1749 = vpack.c.b16 %v973, %v965
    %v1750 = vpack.c.b16 %v974, %v966
    %v1751 = vpack.c.b16 %v975, %v967
    %v1752 = vpack.c.b16 %v976, %v968
    %v1753 = vpack.c.b16 %v977, %v969
    %v1754 = vpack.c.b16 %v978, %v970
    %v1755 = vpack.c.b16 %v987, %v979
    %v1756 = vpack.c.b16 %v988, %v980
    %v1757 = vpack.c.b16 %v989, %v981
    %v1758 = vpack.c.b16 %v990, %v982
    %v1759 = vpack.c.b16 %v991, %v983
    %v1760 = vpack.c.b16 %v992, %v984
    %v1761 = vpack.c.b16 %v993, %v985
    %v1762 = vpack.c.b16 %v994, %v986
    %v1763 = vpack.c.b16 %v1003, %v995
    %v1764 = vpack.c.b16 %v1004, %v996
    %v1765 = vpack.c.b16 %v1005, %v997
    %v1766 = vpack.c.b16 %v1006, %v998
    %v1767 = vpack.c.b16 %v1007, %v999
    %v1768 = vpack.c.b16 %v1008, %v1000
    %v1769 = vpack.c.b16 %v1009, %v1001
    %v1770 = vpack.c.b16 %v1010, %v1002
    %v1771 = vpack.c.b16 %v1019, %v1011
    %v1772 = vpack.c.b16 %v1020, %v1012
    %v1773 = vpack.c.b16 %v1021, %v1013
    %v1774 = vpack.c.b16 %v1022, %v1014
    %v1775 = vpack.c.b16 %v1023, %v1015
    %v1776 = vpack.c.b16 %v1024, %v1016
    %v1777 = vpack.c.b16 %v1025, %v1017
    %v1778 = vpack.c.b16 %v1026, %v1018
    %v1779 = vpack.c.b16 %v1035, %v1027
    %v1780 = vpack.c.b16 %v1036, %v1028
    %v1781 = vpack.c.b16 %v1037, %v1029
    %v1782 = vpack.c.b16 %v1038, %v1030
    %v1783 = vpack.c.b16 %v1039, %v1031
    %v1784 = vpack.c.b16 %v1040, %v1032
    %v1785 = vpack.c.b16 %v1041, %v1033
    %v1786 = vpack.c.b16 %v1042, %v1034
    %v1787 = vpack.c.b16 %v1051, %v1043
    %v1788 = vpack.c.b16 %v1052, %v1044
    %v1789 = vpack.c.b16 %v1053, %v1045
    %v1790 = vpack.c.b16 %v1054, %v1046
    %v1791 = vpack.c.b16 %v1055, %v1047
    %v1792 = vpack.c.b16 %v1056, %v1048
    %v1793 = vpack.c.b16 %v1057, %v1049
    %v1794 = vpack.c.b16 %v1058, %v1050
    %v1795 = vpack.c.b16 %v1067, %v1059
    %v1796 = vpack.c.b16 %v1068, %v1060
    %v1797 = vpack.c.b16 %v1069, %v1061
    %v1798 = vpack.c.b16 %v1070, %v1062
    %v1799 = vpack.c.b16 %v1071, %v1063
    %v1800 = vpack.c.b16 %v1072, %v1064
    %v1801 = vpack.c.b16 %v1073, %v1065
    %v1802 = vpack.c.b16 %v1074, %v1066
    %v1803 = vpack.c.b16 %v1083, %v1075
    %v1804 = vpack.c.b16 %v1084, %v1076
    %v1805 = vpack.c.b16 %v1085, %v1077
    %v1806 = vpack.c.b16 %v1086, %v1078
    %v1807 = vpack.c.b16 %v1087, %v1079
    %v1808 = vpack.c.b16 %v1088, %v1080
    %v1809 = vpack.c.b16 %v1089, %v1081
    %v1810 = vpack.c.b16 %v1090, %v1082
    %v1811 = vpack.c.b16 %v1099, %v1091
    %v1812 = vpack.c.b16 %v1100, %v1092
    %v1813 = vpack.c.b16 %v1101, %v1093
    %v1814 = vpack.c.b16 %v1102, %v1094
    %v1815 = vpack.c.b16 %v1103, %v1095
    %v1816 = vpack.c.b16 %v1104, %v1096
    %v1817 = vpack.c.b16 %v1105, %v1097
    %v1818 = vpack.c.b16 %v1106, %v1098
    %v1819 = vpack.c.b16 %v1115, %v1107
    %v1820 = vpack.c.b16 %v1116, %v1108
    %v1821 = vpack.c.b16 %v1117, %v1109
    %v1822 = vpack.c.b16 %v1118, %v1110
    %v1823 = vpack.c.b16 %v1119, %v1111
    %v1824 = vpack.c.b16 %v1120, %v1112
    %v1825 = vpack.c.b16 %v1121, %v1113
    %v1826 = vpack.c.b16 %v1122, %v1114
    %v1827 = vpack.c.b16 %v1131, %v1123
    %v1828 = vpack.c.b16 %v1132, %v1124
    %v1829 = vpack.c.b16 %v1133, %v1125
    %v1830 = vpack.c.b16 %v1134, %v1126
    %v1831 = vpack.c.b16 %v1135, %v1127
    %v1832 = vpack.c.b16 %v1136, %v1128
    %v1833 = vpack.c.b16 %v1137, %v1129
    %v1834 = vpack.c.b16 %v1138, %v1130
    %v1835 = vpack.c.b16 %v1147, %v1139
    %v1836 = vpack.c.b16 %v1148, %v1140
    %v1837 = vpack.c.b16 %v1149, %v1141
    %v1838 = vpack.c.b16 %v1150, %v1142
    %v1839 = vpack.c.b16 %v1151, %v1143
    %v1840 = vpack.c.b16 %v1152, %v1144
    %v1841 = vpack.c.b16 %v1153, %v1145
    %v1842 = vpack.c.b16 %v1154, %v1146
    %v1843 = vpack.c.b16 %v1163, %v1155
    %v1844 = vpack.c.b16 %v1164, %v1156
    %v1845 = vpack.c.b16 %v1165, %v1157
    %v1846 = vpack.c.b16 %v1166, %v1158
    %v1847 = vpack.c.b16 %v1167, %v1159
    %v1848 = vpack.c.b16 %v1168, %v1160
    %v1849 = vpack.c.b16 %v1169, %v1161
    %v1850 = vpack.c.b16 %v1170, %v1162
    %v1851 = vpack.c.b16 %v1179, %v1171
    %v1852 = vpack.c.b16 %v1180, %v1172
    %v1853 = vpack.c.b16 %v1181, %v1173
    %v1854 = vpack.c.b16 %v1182, %v1174
    %v1855 = vpack.c.b16 %v1183, %v1175
    %v1856 = vpack.c.b16 %v1184, %v1176
    %v1857 = vpack.c.b16 %v1185, %v1177
    %v1858 = vpack.c.b16 %v1186, %v1178
    %v1859 = vpack.c.b16 %v1195, %v1187
    %v1860 = vpack.c.b16 %v1196, %v1188
    %v1861 = vpack.c.b16 %v1197, %v1189
    %v1862 = vpack.c.b16 %v1198, %v1190
    %v1863 = vpack.c.b16 %v1199, %v1191
    %v1864 = vpack.c.b16 %v1200, %v1192
    %v1865 = vpack.c.b16 %v1201, %v1193
    %v1866 = vpack.c.b16 %v1202, %v1194
    %v1867 = vpack.c.b16 %v1211, %v1203
    %v1868 = vpack.c.b16 %v1212, %v1204
    %v1869 = vpack.c.b16 %v1213, %v1205
    %v1870 = vpack.c.b16 %v1214, %v1206
    %v1871 = vpack.c.b16 %v1215, %v1207
    %v1872 = vpack.c.b16 %v1216, %v1208
    %v1873 = vpack.c.b16 %v1217, %v1209
    %v1874 = vpack.c.b16 %v1218, %v1210
    %v1875 = vpack.c.b16 %v1227, %v1219
    %v1876 = vpack.c.b16 %v1228, %v1220
    %v1877 = vpack.c.b16 %v1229, %v1221
    %v1878 = vpack.c.b16 %v1230, %v1222
    %v1879 = vpack.c.b16 %v1231, %v1223
    %v1880 = vpack.c.b16 %v1232, %v1224
    %v1881 = vpack.c.b16 %v1233, %v1225
    %v1882 = vpack.c.b16 %v1234, %v1226
    %v1883 = vpack.c.b16 %v1243, %v1235
    %v1884 = vpack.c.b16 %v1244, %v1236
    %v1885 = vpack.c.b16 %v1245, %v1237
    %v1886 = vpack.c.b16 %v1246, %v1238
    %v1887 = vpack.c.b16 %v1247, %v1239
    %v1888 = vpack.c.b16 %v1248, %v1240
    %v1889 = vpack.c.b16 %v1249, %v1241
    %v1890 = vpack.c.b16 %v1250, %v1242
    %v1891 = vpack.c.b16 %v1259, %v1251
    %v1892 = vpack.c.b16 %v1260, %v1252
    %v1893 = vpack.c.b16 %v1261, %v1253
    %v1894 = vpack.c.b16 %v1262, %v1254
    %v1895 = vpack.c.b16 %v1263, %v1255
    %v1896 = vpack.c.b16 %v1264, %v1256
    %v1897 = vpack.c.b16 %v1265, %v1257
    %v1898 = vpack.c.b16 %v1266, %v1258
    %v1899 = vpack.c.b16 %v1275, %v1267
    %v1900 = vpack.c.b16 %v1276, %v1268
    %v1901 = vpack.c.b16 %v1277, %v1269
    %v1902 = vpack.c.b16 %v1278, %v1270
    %v1903 = vpack.c.b16 %v1279, %v1271
    %v1904 = vpack.c.b16 %v1280, %v1272
    %v1905 = vpack.c.b16 %v1281, %v1273
    %v1906 = vpack.c.b16 %v1282, %v1274
    %v1907 = vpack.c.b16 %v1291, %v1283
    %v1908 = vpack.c.b16 %v1292, %v1284
    %v1909 = vpack.c.b16 %v1293, %v1285
    %v1910 = vpack.c.b16 %v1294, %v1286
    %v1911 = vpack.c.b16 %v1295, %v1287
    %v1912 = vpack.c.b16 %v1296, %v1288
    %v1913 = vpack.c.b16 %v1297, %v1289
    %v1914 = vpack.c.b16 %v1298, %v1290
    %v1915 = vpack.c.b16 %v1307, %v1299
    %v1916 = vpack.c.b16 %v1308, %v1300
    %v1917 = vpack.c.b16 %v1309, %v1301
    %v1918 = vpack.c.b16 %v1310, %v1302
    %v1919 = vpack.c.b16 %v1311, %v1303
    %v1920 = vpack.c.b16 %v1312, %v1304
    %v1921 = vpack.c.b16 %v1313, %v1305
    %v1922 = vpack.c.b16 %v1314, %v1306
    %v1923 = vpack.c.b16 %v1323, %v1315
    %v1924 = vpack.c.b16 %v1324, %v1316
    %v1925 = vpack.c.b16 %v1325, %v1317
    %v1926 = vpack.c.b16 %v1326, %v1318
    %v1927 = vpack.c.b16 %v1327, %v1319
    %v1928 = vpack.c.b16 %v1328, %v1320
    %v1929 = vpack.c.b16 %v1329, %v1321
    %v1930 = vpack.c.b16 %v1330, %v1322
    %v1931 = vpack.c.b16 %v1339, %v1331
    %v1932 = vpack.c.b16 %v1340, %v1332
    %v1933 = vpack.c.b16 %v1341, %v1333
    %v1934 = vpack.c.b16 %v1342, %v1334
    %v1935 = vpack.c.b16 %v1343, %v1335
    %v1936 = vpack.c.b16 %v1344, %v1336
    %v1937 = vpack.c.b16 %v1345, %v1337
    %v1938 = vpack.c.b16 %v1346, %v1338
    %v1939 = vpack.c.b16 %v1355, %v1347
    %v1940 = vpack.c.b16 %v1356, %v1348
    %v1941 = vpack.c.b16 %v1357, %v1349
    %v1942 = vpack.c.b16 %v1358, %v1350
    %v1943 = vpack.c.b16 %v1359, %v1351
    %v1944 = vpack.c.b16 %v1360, %v1352
    %v1945 = vpack.c.b16 %v1361, %v1353
    %v1946 = vpack.c.b16 %v1362, %v1354
    %v1947 = vpack.c.b16 %v1371, %v1363
    %v1948 = vpack.c.b16 %v1372, %v1364
    %v1949 = vpack.c.b16 %v1373, %v1365
    %v1950 = vpack.c.b16 %v1374, %v1366
    %v1951 = vpack.c.b16 %v1375, %v1367
    %v1952 = vpack.c.b16 %v1376, %v1368
    %v1953 = vpack.c.b16 %v1377, %v1369
    %v1954 = vpack.c.b16 %v1378, %v1370
    %v1955 = vpack.c.b16 %v1387, %v1379
    %v1956 = vpack.c.b16 %v1388, %v1380
    %v1957 = vpack.c.b16 %v1389, %v1381
    %v1958 = vpack.c.b16 %v1390, %v1382
    %v1959 = vpack.c.b16 %v1391, %v1383
    %v1960 = vpack.c.b16 %v1392, %v1384
    %v1961 = vpack.c.b16 %v1393, %v1385
    %v1962 = vpack.c.b16 %v1394, %v1386
    %v1963 = vpack.c.b16 %v1403, %v1395
    %v1964 = vpack.c.b16 %v1404, %v1396
    %v1965 = vpack.c.b16 %v1405, %v1397
    %v1966 = vpack.c.b16 %v1406, %v1398
    %v1967 = vpack.c.b16 %v1407, %v1399
    %v1968 = vpack.c.b16 %v1408, %v1400
    %v1969 = vpack.c.b16 %v1409, %v1401
    %v1970 = vpack.c.b16 %v1410, %v1402
    %v1971 = vpack.c.b16 %v1419, %v1411
    %v1972 = vpack.c.b16 %v1420, %v1412
    %v1973 = vpack.c.b16 %v1421, %v1413
    %v1974 = vpack.c.b16 %v1422, %v1414
    %v1975 = vpack.c.b16 %v1423, %v1415
    %v1976 = vpack.c.b16 %v1424, %v1416
    %v1977 = vpack.c.b16 %v1425, %v1417
    %v1978 = vpack.c.b16 %v1426, %v1418
    %v1979 = vpack.c.b16 %v1435, %v1427
    %v1980 = vpack.c.b16 %v1436, %v1428
    %v1981 = vpack.c.b16 %v1437, %v1429
    %v1982 = vpack.c.b16 %v1438, %v1430
    %v1983 = vpack.c.b16 %v1439, %v1431
    %v1984 = vpack.c.b16 %v1440, %v1432
    %v1985 = vpack.c.b16 %v1441, %v1433
    %v1986 = vpack.c.b16 %v1442, %v1434
    %v1987 = vpack.c.b16 %v1451, %v1443
    %v1988 = vpack.c.b16 %v1452, %v1444
    %v1989 = vpack.c.b16 %v1453, %v1445
    %v1990 = vpack.c.b16 %v1454, %v1446
    %v1991 = vpack.c.b16 %v1455, %v1447
    %v1992 = vpack.c.b16 %v1456, %v1448
    %v1993 = vpack.c.b16 %v1457, %v1449
    %v1994 = vpack.c.b16 %v1458, %v1450
    %v1995 = vpack.c.b16 %v1467, %v1459
    %v1996 = vpack.c.b16 %v1468, %v1460
    %v1997 = vpack.c.b16 %v1469, %v1461
    %v1998 = vpack.c.b16 %v1470, %v1462
    %v1999 = vpack.c.b16 %v1471, %v1463
    %v2000 = vpack.c.b16 %v1472, %v1464
    %v2001 = vpack.c.b16 %v1473, %v1465
    %v2002 = vpack.c.b16 %v1474, %v1466
    %v2003 = vpack.c.b16 %v1483, %v1475
    %v2004 = vpack.c.b16 %v1484, %v1476
    %v2005 = vpack.c.b16 %v1485, %v1477
    %v2006 = vpack.c.b16 %v1486, %v1478
    %v2007 = vpack.c.b16 %v1487, %v1479
    %v2008 = vpack.c.b16 %v1488, %v1480
    %v2009 = vpack.c.b16 %v1489, %v1481
    %v2010 = vpack.c.b16 %v1490, %v1482
    %v2011 = vpack.c.b16 %v1499, %v1491
    %v2012 = vpack.c.b16 %v1500, %v1492
    %v2013 = vpack.c.b16 %v1501, %v1493
    %v2014 = vpack.c.b16 %v1502, %v1494
    %v2015 = vpack.c.b16 %v1503, %v1495
    %v2016 = vpack.c.b16 %v1504, %v1496
    %v2017 = vpack.c.b16 %v1505, %v1497
    %v2018 = vpack.c.b16 %v1506, %v1498
    %v2019 = vpack.c.b16 %v1515, %v1507
    %v2020 = vpack.c.b16 %v1516, %v1508
    %v2021 = vpack.c.b16 %v1517, %v1509
    %v2022 = vpack.c.b16 %v1518, %v1510
    %v2023 = vpack.c.b16 %v1519, %v1511
    %v2024 = vpack.c.b16 %v1520, %v1512
    %v2025 = vpack.c.b16 %v1521, %v1513
    %v2026 = vpack.c.b16 %v1522, %v1514
    %v2027 = vpack.c.b16 %v1531, %v1523
    %v2028 = vpack.c.b16 %v1532, %v1524
    %v2029 = vpack.c.b16 %v1533, %v1525
    %v2030 = vpack.c.b16 %v1534, %v1526
    %v2031 = vpack.c.b16 %v1535, %v1527
    %v2032 = vpack.c.b16 %v1536, %v1528
    %v2033 = vpack.c.b16 %v1537, %v1529
    %v2034 = vpack.c.b16 %v1538, %v1530
    %v2035 = vpack.c.b16 %v1547, %v1539
    %v2036 = vpack.c.b16 %v1548, %v1540
    %v2037 = vpack.c.b16 %v1549, %v1541
    %v2038 = vpack.c.b16 %v1550, %v1542
    %v2039 = vpack.c.b16 %v1551, %v1543
    %v2040 = vpack.c.b16 %v1552, %v1544
    %v2041 = vpack.c.b16 %v1553, %v1545
    %v2042 = vpack.c.b16 %v1554, %v1546
    %v2043 = vpack.c.b16 %v1563, %v1555
    %v2044 = vpack.c.b16 %v1564, %v1556
    %v2045 = vpack.c.b16 %v1565, %v1557
    %v2046 = vpack.c.b16 %v1566, %v1558
    %v2047 = vpack.c.b16 %v1567, %v1559
    %v2048 = vpack.c.b16 %v1568, %v1560
    %v2049 = vpack.c.b16 %v1569, %v1561
    %v2050 = vpack.c.b16 %v1570, %v1562
    %v2051 = vpack.c.b16 %v1579, %v1571
    %v2052 = vpack.c.b16 %v1580, %v1572
    %v2053 = vpack.c.b16 %v1581, %v1573
    %v2054 = vpack.c.b16 %v1582, %v1574
    %v2055 = vpack.c.b16 %v1583, %v1575
    %v2056 = vpack.c.b16 %v1584, %v1576
    %v2057 = vpack.c.b16 %v1585, %v1577
    %v2058 = vpack.c.b16 %v1586, %v1578
    %v2059 = vpack.c.b16 %v1595, %v1587
    %v2060 = vpack.c.b16 %v1596, %v1588
    %v2061 = vpack.c.b16 %v1597, %v1589
    %v2062 = vpack.c.b16 %v1598, %v1590
    %v2063 = vpack.c.b16 %v1599, %v1591
    %v2064 = vpack.c.b16 %v1600, %v1592
    %v2065 = vpack.c.b16 %v1601, %v1593
    %v2066 = vpack.c.b16 %v1602, %v1594
    %v2067 = vpack.c.b16 %v1611, %v1603
    %v2068 = vpack.c.b16 %v1612, %v1604
    %v2069 = vpack.c.b16 %v1613, %v1605
    %v2070 = vpack.c.b16 %v1614, %v1606
    %v2071 = vpack.c.b16 %v1615, %v1607
    %v2072 = vpack.c.b16 %v1616, %v1608
    %v2073 = vpack.c.b16 %v1617, %v1609
    %v2074 = vpack.c.b16 %v1618, %v1610
    %v2075 = vpack.c.b16 %v1627, %v1619
    %v2076 = vpack.c.b16 %v1628, %v1620
    %v2077 = vpack.c.b16 %v1629, %v1621
    %v2078 = vpack.c.b16 %v1630, %v1622
    %v2079 = vpack.c.b16 %v1631, %v1623
    %v2080 = vpack.c.b16 %v1632, %v1624
    %v2081 = vpack.c.b16 %v1633, %v1625
    %v2082 = vpack.c.b16 %v1634, %v1626
    %v2083 = vpack.c.b16 %v1643, %v1635
    %v2084 = vpack.c.b16 %v1644, %v1636
    %v2085 = vpack.c.b16 %v1645, %v1637
    %v2086 = vpack.c.b16 %v1646, %v1638
    %v2087 = vpack.c.b16 %v1647, %v1639
    %v2088 = vpack.c.b16 %v1648, %v1640
    %v2089 = vpack.c.b16 %v1649, %v1641
    %v2090 = vpack.c.b16 %v1650, %v1642
    %v2091 = vpack.c.b16 %v1659, %v1651
    %v2092 = vpack.c.b16 %v1660, %v1652
    %v2093 = vpack.c.b16 %v1661, %v1653
    %v2094 = vpack.c.b16 %v1662, %v1654
    %v2095 = vpack.c.b16 %v1663, %v1655
    %v2096 = vpack.c.b16 %v1664, %v1656
    %v2097 = vpack.c.b16 %v1665, %v1657
    %v2098 = vpack.c.b16 %v1666, %v1658
    %v2099 = vpack.c.b16 %v1675, %v1667
    %v2100 = vpack.c.b16 %v1676, %v1668
    %v2101 = vpack.c.b16 %v1677, %v1669
    %v2102 = vpack.c.b16 %v1678, %v1670
    %v2103 = vpack.c.b16 %v1679, %v1671
    %v2104 = vpack.c.b16 %v1680, %v1672
    %v2105 = vpack.c.b16 %v1681, %v1673
    %v2106 = vpack.c.b16 %v1682, %v1674
    %v2107 = vpack.c.b16 %v1691, %v1683
    %v2108 = vpack.c.b16 %v1692, %v1684
    %v2109 = vpack.c.b16 %v1693, %v1685
    %v2110 = vpack.c.b16 %v1694, %v1686
    %v2111 = vpack.c.b16 %v1695, %v1687
    %v2112 = vpack.c.b16 %v1696, %v1688
    %v2113 = vpack.c.b16 %v1697, %v1689
    %v2114 = vpack.c.b16 %v1698, %v1690
    %v2115 = vpack.c.b16 %v1707, %v1699
    %v2116 = vpack.c.b16 %v1708, %v1700
    %v2117 = vpack.c.b16 %v1709, %v1701
    %v2118 = vpack.c.b16 %v1710, %v1702
    %v2119 = vpack.c.b16 %v1711, %v1703
    %v2120 = vpack.c.b16 %v1712, %v1704
    %v2121 = vpack.c.b16 %v1713, %v1705
    %v2122 = vpack.c.b16 %v1714, %v1706
    %v2123 = vpack.c.b16 %v1723, %v1715
    %v2124 = vpack.c.b16 %v1724, %v1716
    %v2125 = vpack.c.b16 %v1725, %v1717
    %v2126 = vpack.c.b16 %v1726, %v1718
    %v2127 = vpack.c.b16 %v1727, %v1719
    %v2128 = vpack.c.b16 %v1728, %v1720
    %v2129 = vpack.c.b16 %v1729, %v1721
    %v2130 = vpack.c.b16 %v1730, %v1722
    %v2131 = vpack.c.b16 %v1739, %v1731
    %v2132 = vpack.c.b16 %v1740, %v1732
    %v2133 = vpack.c.b16 %v1741, %v1733
    %v2134 = vpack.c.b16 %v1742, %v1734
    %v2135 = vpack.c.b16 %v1743, %v1735
    %v2136 = vpack.c.b16 %v1744, %v1736
    %v2137 = vpack.c.b16 %v1745, %v1737
    %v2138 = vpack.c.b16 %v1746, %v1738
    %vm2531 = vcmask 130048
    %v2533 = vsel %vm2531, %v136, 0
    %2535 = vmatpush.bf16.msra.mxu0 %v1803
    %2536 = vmatpush.bf16.msra.mxu0 %v1795
    %2537 = vmatpush.bf16.msra.mxu0 %v1787
    %2538 = vmatpush.bf16.msra.mxu0 %v1779
    %2539 = vmatpush.bf16.msra.mxu0 %v1771
    %2540 = vmatpush.bf16.msra.mxu0 %v1763
    %2541 = vmatpush.bf16.msra.mxu0 %v1755
    %2542 = vmatpush.bf16.msra.mxu0 %v1747
    %2543 = vmatmul.bf16.gmra.mxu0 %v130
    %v2544 = vpop.f32.mrf.mxu0
    %v2545 = vadd.f32 0.0, %v2544
    %v2546 = vpop.f32.mrf.mxu0
    %v2547 = vadd.f32 0.0, %v2546
    %2548 = vdwg.mxu0
    %2549 = vmatpush.bf16.msra.mxu0 %v1867
    %2550 = vmatpush.bf16.msra.mxu0 %v1859
    %2551 = vmatpush.bf16.msra.mxu0 %v1851
    %2552 = vmatpush.bf16.msra.mxu0 %v1843
    %2553 = vmatpush.bf16.msra.mxu0 %v1835
    %2554 = vmatpush.bf16.msra.mxu0 %v1827
    %2555 = vmatpush.bf16.msra.mxu0 %v1819
    %2556 = vmatpush.bf16.msra.mxu0 %v1811
    %2557 = vmatmul.bf16.gmra.mxu0 %v131
    %v2558 = vpop.f32.mrf.mxu0
    %v2559 = vadd.f32 %v2545, %v2558
    %v2560 = vpop.f32.mrf.mxu0
    %v2561 = vadd.f32 %v2547, %v2560
    %2562 = vdwg.mxu0
    %2563 = vmatpush.bf16.msra.mxu0 %v1931
    %2564 = vmatpush.bf16.msra.mxu0 %v1923
    %2565 = vmatpush.bf16.msra.mxu0 %v1915
    %2566 = vmatpush.bf16.msra.mxu0 %v1907
    %2567 = vmatpush.bf16.msra.mxu0 %v1899
    %2568 = vmatpush.bf16.msra.mxu0 %v1891
    %2569 = vmatpush.bf16.msra.mxu0 %v1883
    %2570 = vmatpush.bf16.msra.mxu0 %v1875
    %2571 = vmatmul.bf16.gmra.mxu0 %v132
    %v2572 = vpop.f32.mrf.mxu0
    %v2573 = vadd.f32 %v2559, %v2572
    %v2574 = vpop.f32.mrf.mxu0
    %v2575 = vadd.f32 %v2561, %v2574
    %2576 = vdwg.mxu0
    %2577 = vmatpush.bf16.msra.mxu0 %v1995
    %2578 = vmatpush.bf16.msra.mxu0 %v1987
    %2579 = vmatpush.bf16.msra.mxu0 %v1979
    %2580 = vmatpush.bf16.msra.mxu0 %v1971
    %2581 = vmatpush.bf16.msra.mxu0 %v1963
    %2582 = vmatpush.bf16.msra.mxu0 %v1955
    %2583 = vmatpush.bf16.msra.mxu0 %v1947
    %2584 = vmatpush.bf16.msra.mxu0 %v1939
    %2585 = vmatmul.bf16.gmra.mxu0 %v133
    %v2586 = vpop.f32.mrf.mxu0
    %v2587 = vadd.f32 %v2573, %v2586
    %v2588 = vpop.f32.mrf.mxu0
    %v2589 = vadd.f32 %v2575, %v2588
    %2590 = vdwg.mxu0
    %2591 = vmatpush.bf16.msra.mxu0 %v2059
    %2592 = vmatpush.bf16.msra.mxu0 %v2051
    %2593 = vmatpush.bf16.msra.mxu0 %v2043
    %2594 = vmatpush.bf16.msra.mxu0 %v2035
    %2595 = vmatpush.bf16.msra.mxu0 %v2027
    %2596 = vmatpush.bf16.msra.mxu0 %v2019
    %2597 = vmatpush.bf16.msra.mxu0 %v2011
    %2598 = vmatpush.bf16.msra.mxu0 %v2003
    %2599 = vmatmul.bf16.gmra.mxu0 %v134
    %v2600 = vpop.f32.mrf.mxu0
    %v2601 = vadd.f32 %v2587, %v2600
    %v2602 = vpop.f32.mrf.mxu0
    %v2603 = vadd.f32 %v2589, %v2602
    %2604 = vdwg.mxu0
    %2605 = vmatpush.bf16.msra.mxu0 %v2123
    %2606 = vmatpush.bf16.msra.mxu0 %v2115
    %2607 = vmatpush.bf16.msra.mxu0 %v2107
    %2608 = vmatpush.bf16.msra.mxu0 %v2099
    %2609 = vmatpush.bf16.msra.mxu0 %v2091
    %2610 = vmatpush.bf16.msra.mxu0 %v2083
    %2611 = vmatpush.bf16.msra.mxu0 %v2075
    %2612 = vmatpush.bf16.msra.mxu0 %v2067
    %2613 = vmatmul.bf16.gmra.mxu0 %v135
    %v2614 = vpop.f32.mrf.mxu0
    %v2615 = vadd.f32 %v2601, %v2614
    %v2616 = vpop.f32.mrf.mxu0
    %v2617 = vadd.f32 %v2603, %v2616
    %2618 = vdwg.mxu0
    %2619 = vmatpush.bf16.msra.mxu0 0
    %2620 = vmatpush.bf16.msra.mxu0 0
    %2621 = vmatpush.bf16.msra.mxu0 0
    %2622 = vmatpush.bf16.msra.mxu0 0
    %2623 = vmatpush.bf16.msra.mxu0 0
    %2624 = vmatpush.bf16.msra.mxu0 0
    %2625 = vmatpush.bf16.msra.mxu0 0
    %2626 = vmatpush.bf16.msra.mxu0 %v2131
    %2627 = vmatmul.bf16.gmra.mxu0 %v2533
    %v2628 = vpop.f32.mrf.mxu0
    %v2629 = vadd.f32 %v2615, %v2628
    %v2630 = vpop.f32.mrf.mxu0
    %v2631 = vadd.f32 %v2617, %v2630
    %2632 = vdwg.mxu0
    %2633 = vmatpush.bf16.msra.mxu0 %v1804
    %2634 = vmatpush.bf16.msra.mxu0 %v1796
    %2635 = vmatpush.bf16.msra.mxu0 %v1788
    %2636 = vmatpush.bf16.msra.mxu0 %v1780
    %2637 = vmatpush.bf16.msra.mxu0 %v1772
    %2638 = vmatpush.bf16.msra.mxu0 %v1764
    %2639 = vmatpush.bf16.msra.mxu0 %v1756
    %2640 = vmatpush.bf16.msra.mxu0 %v1748
    %2641 = vmatmul.bf16.gmra.mxu0 %v130
    %v2642 = vpop.f32.mrf.mxu0
    %v2643 = vadd.f32 0.0, %v2642
    %v2644 = vpop.f32.mrf.mxu0
    %v2645 = vadd.f32 0.0, %v2644
    %2646 = vdwg.mxu0
    %2647 = vmatpush.bf16.msra.mxu0 %v1868
    %2648 = vmatpush.bf16.msra.mxu0 %v1860
    %2649 = vmatpush.bf16.msra.mxu0 %v1852
    %2650 = vmatpush.bf16.msra.mxu0 %v1844
    %2651 = vmatpush.bf16.msra.mxu0 %v1836
    %2652 = vmatpush.bf16.msra.mxu0 %v1828
    %2653 = vmatpush.bf16.msra.mxu0 %v1820
    %2654 = vmatpush.bf16.msra.mxu0 %v1812
    %2655 = vmatmul.bf16.gmra.mxu0 %v131
    %v2656 = vpop.f32.mrf.mxu0
    %v2657 = vadd.f32 %v2643, %v2656
    %v2658 = vpop.f32.mrf.mxu0
    %v2659 = vadd.f32 %v2645, %v2658
    %2660 = vdwg.mxu0
    %2661 = vmatpush.bf16.msra.mxu0 %v1932
    %2662 = vmatpush.bf16.msra.mxu0 %v1924
    %2663 = vmatpush.bf16.msra.mxu0 %v1916
    %2664 = vmatpush.bf16.msra.mxu0 %v1908
    %2665 = vmatpush.bf16.msra.mxu0 %v1900
    %2666 = vmatpush.bf16.msra.mxu0 %v1892
    %2667 = vmatpush.bf16.msra.mxu0 %v1884
    %2668 = vmatpush.bf16.msra.mxu0 %v1876
    %2669 = vmatmul.bf16.gmra.mxu0 %v132
    %v2670 = vpop.f32.mrf.mxu0
    %v2671 = vadd.f32 %v2657, %v2670
    %v2672 = vpop.f32.mrf.mxu0
    %v2673 = vadd.f32 %v2659, %v2672
    %2674 = vdwg.mxu0
    %2675 = vmatpush.bf16.msra.mxu0 %v1996
    %2676 = vmatpush.bf16.msra.mxu0 %v1988
    %2677 = vmatpush.bf16.msra.mxu0 %v1980
    %2678 = vmatpush.bf16.msra.mxu0 %v1972
    %2679 = vmatpush.bf16.msra.mxu0 %v1964
    %2680 = vmatpush.bf16.msra.mxu0 %v1956
    %2681 = vmatpush.bf16.msra.mxu0 %v1948
    %2682 = vmatpush.bf16.msra.mxu0 %v1940
    %2683 = vmatmul.bf16.gmra.mxu0 %v133
    %v2684 = vpop.f32.mrf.mxu0
    %v2685 = vadd.f32 %v2671, %v2684
    %v2686 = vpop.f32.mrf.mxu0
    %v2687 = vadd.f32 %v2673, %v2686
    %2688 = vdwg.mxu0
    %2689 = vmatpush.bf16.msra.mxu0 %v2060
    %2690 = vmatpush.bf16.msra.mxu0 %v2052
    %2691 = vmatpush.bf16.msra.mxu0 %v2044
    %2692 = vmatpush.bf16.msra.mxu0 %v2036
    %2693 = vmatpush.bf16.msra.mxu0 %v2028
    %2694 = vmatpush.bf16.msra.mxu0 %v2020
    %2695 = vmatpush.bf16.msra.mxu0 %v2012
    %2696 = vmatpush.bf16.msra.mxu0 %v2004
    %2697 = vmatmul.bf16.gmra.mxu0 %v134
    %v2698 = vpop.f32.mrf.mxu0
    %v2699 = vadd.f32 %v2685, %v2698
    %v2700 = vpop.f32.mrf.mxu0
    %v2701 = vadd.f32 %v2687, %v2700
    %2702 = vdwg.mxu0
    %2703 = vmatpush.bf16.msra.mxu0 %v2124
    %2704 = vmatpush.bf16.msra.mxu0 %v2116
    %2705 = vmatpush.bf16.msra.mxu0 %v2108
    %2706 = vmatpush.bf16.msra.mxu0 %v2100
    %2707 = vmatpush.bf16.msra.mxu0 %v2092
    %2708 = vmatpush.bf16.msra.mxu0 %v2084
    %2709 = vmatpush.bf16.msra.mxu0 %v2076
    %2710 = vmatpush.bf16.msra.mxu0 %v2068
    %2711 = vmatmul.bf16.gmra.mxu0 %v135
    %v2712 = vpop.f32.mrf.mxu0
    %v2713 = vadd.f32 %v2699, %v2712
    %v2714 = vpop.f32.mrf.mxu0
    %v2715 = vadd.f32 %v2701, %v2714
    %2716 = vdwg.mxu0
    %2717 = vmatpush.bf16.msra.mxu0 0
    %2718 = vmatpush.bf16.msra.mxu0 0
    %2719 = vmatpush.bf16.msra.mxu0 0
    %2720 = vmatpush.bf16.msra.mxu0 0
    %2721 = vmatpush.bf16.msra.mxu0 0
    %2722 = vmatpush.bf16.msra.mxu0 0
    %2723 = vmatpush.bf16.msra.mxu0 0
    %2724 = vmatpush.bf16.msra.mxu0 %v2132
    %2725 = vmatmul.bf16.gmra.mxu0 %v2533
    %v2726 = vpop.f32.mrf.mxu0
    %v2727 = vadd.f32 %v2713, %v2726
    %v2728 = vpop.f32.mrf.mxu0
    %v2729 = vadd.f32 %v2715, %v2728
    %2730 = vdwg.mxu0
    %2731 = vmatpush.bf16.msra.mxu0 %v1805
    %2732 = vmatpush.bf16.msra.mxu0 %v1797
    %2733 = vmatpush.bf16.msra.mxu0 %v1789
    %2734 = vmatpush.bf16.msra.mxu0 %v1781
    %2735 = vmatpush.bf16.msra.mxu0 %v1773
    %2736 = vmatpush.bf16.msra.mxu0 %v1765
    %2737 = vmatpush.bf16.msra.mxu0 %v1757
    %2738 = vmatpush.bf16.msra.mxu0 %v1749
    %2739 = vmatmul.bf16.gmra.mxu0 %v130
    %v2740 = vpop.f32.mrf.mxu0
    %v2741 = vadd.f32 0.0, %v2740
    %v2742 = vpop.f32.mrf.mxu0
    %v2743 = vadd.f32 0.0, %v2742
    %2744 = vdwg.mxu0
    %2745 = vmatpush.bf16.msra.mxu0 %v1869
    %2746 = vmatpush.bf16.msra.mxu0 %v1861
    %2747 = vmatpush.bf16.msra.mxu0 %v1853
    %2748 = vmatpush.bf16.msra.mxu0 %v1845
    %2749 = vmatpush.bf16.msra.mxu0 %v1837
    %2750 = vmatpush.bf16.msra.mxu0 %v1829
    %2751 = vmatpush.bf16.msra.mxu0 %v1821
    %2752 = vmatpush.bf16.msra.mxu0 %v1813
    %2753 = vmatmul.bf16.gmra.mxu0 %v131
    %v2754 = vpop.f32.mrf.mxu0
    %v2755 = vadd.f32 %v2741, %v2754
    %v2756 = vpop.f32.mrf.mxu0
    %v2757 = vadd.f32 %v2743, %v2756
    %2758 = vdwg.mxu0
    %2759 = vmatpush.bf16.msra.mxu0 %v1933
    %2760 = vmatpush.bf16.msra.mxu0 %v1925
    %2761 = vmatpush.bf16.msra.mxu0 %v1917
    %2762 = vmatpush.bf16.msra.mxu0 %v1909
    %2763 = vmatpush.bf16.msra.mxu0 %v1901
    %2764 = vmatpush.bf16.msra.mxu0 %v1893
    %2765 = vmatpush.bf16.msra.mxu0 %v1885
    %2766 = vmatpush.bf16.msra.mxu0 %v1877
    %2767 = vmatmul.bf16.gmra.mxu0 %v132
    %v2768 = vpop.f32.mrf.mxu0
    %v2769 = vadd.f32 %v2755, %v2768
    %v2770 = vpop.f32.mrf.mxu0
    %v2771 = vadd.f32 %v2757, %v2770
    %2772 = vdwg.mxu0
    %2773 = vmatpush.bf16.msra.mxu0 %v1997
    %2774 = vmatpush.bf16.msra.mxu0 %v1989
    %2775 = vmatpush.bf16.msra.mxu0 %v1981
    %2776 = vmatpush.bf16.msra.mxu0 %v1973
    %2777 = vmatpush.bf16.msra.mxu0 %v1965
    %2778 = vmatpush.bf16.msra.mxu0 %v1957
    %2779 = vmatpush.bf16.msra.mxu0 %v1949
    %2780 = vmatpush.bf16.msra.mxu0 %v1941
    %2781 = vmatmul.bf16.gmra.mxu0 %v133
    %v2782 = vpop.f32.mrf.mxu0
    %v2783 = vadd.f32 %v2769, %v2782
    %v2784 = vpop.f32.mrf.mxu0
    %v2785 = vadd.f32 %v2771, %v2784
    %2786 = vdwg.mxu0
    %2787 = vmatpush.bf16.msra.mxu0 %v2061
    %2788 = vmatpush.bf16.msra.mxu0 %v2053
    %2789 = vmatpush.bf16.msra.mxu0 %v2045
    %2790 = vmatpush.bf16.msra.mxu0 %v2037
    %2791 = vmatpush.bf16.msra.mxu0 %v2029
    %2792 = vmatpush.bf16.msra.mxu0 %v2021
    %2793 = vmatpush.bf16.msra.mxu0 %v2013
    %2794 = vmatpush.bf16.msra.mxu0 %v2005
    %2795 = vmatmul.bf16.gmra.mxu0 %v134
    %v2796 = vpop.f32.mrf.mxu0
    %v2797 = vadd.f32 %v2783, %v2796
    %v2798 = vpop.f32.mrf.mxu0
    %v2799 = vadd.f32 %v2785, %v2798
    %2800 = vdwg.mxu0
    %2801 = vmatpush.bf16.msra.mxu0 %v2125
    %2802 = vmatpush.bf16.msra.mxu0 %v2117
    %2803 = vmatpush.bf16.msra.mxu0 %v2109
    %2804 = vmatpush.bf16.msra.mxu0 %v2101
    %2805 = vmatpush.bf16.msra.mxu0 %v2093
    %2806 = vmatpush.bf16.msra.mxu0 %v2085
    %2807 = vmatpush.bf16.msra.mxu0 %v2077
    %2808 = vmatpush.bf16.msra.mxu0 %v2069
    %2809 = vmatmul.bf16.gmra.mxu0 %v135
    %v2810 = vpop.f32.mrf.mxu0
    %v2811 = vadd.f32 %v2797, %v2810
    %v2812 = vpop.f32.mrf.mxu0
    %v2813 = vadd.f32 %v2799, %v2812
    %2814 = vdwg.mxu0
    %2815 = vmatpush.bf16.msra.mxu0 0
    %2816 = vmatpush.bf16.msra.mxu0 0
    %2817 = vmatpush.bf16.msra.mxu0 0
    %2818 = vmatpush.bf16.msra.mxu0 0
    %2819 = vmatpush.bf16.msra.mxu0 0
    %2820 = vmatpush.bf16.msra.mxu0 0
    %2821 = vmatpush.bf16.msra.mxu0 0
    %2822 = vmatpush.bf16.msra.mxu0 %v2133
    %2823 = vmatmul.bf16.gmra.mxu0 %v2533
    %v2824 = vpop.f32.mrf.mxu0
    %v2825 = vadd.f32 %v2811, %v2824
    %v2826 = vpop.f32.mrf.mxu0
    %v2827 = vadd.f32 %v2813, %v2826
    %2828 = vdwg.mxu0
    %2829 = vmatpush.bf16.msra.mxu0 %v1806
    %2830 = vmatpush.bf16.msra.mxu0 %v1798
    %2831 = vmatpush.bf16.msra.mxu0 %v1790
    %2832 = vmatpush.bf16.msra.mxu0 %v1782
    %2833 = vmatpush.bf16.msra.mxu0 %v1774
    %2834 = vmatpush.bf16.msra.mxu0 %v1766
    %2835 = vmatpush.bf16.msra.mxu0 %v1758
    %2836 = vmatpush.bf16.msra.mxu0 %v1750
    %2837 = vmatmul.bf16.gmra.mxu0 %v130
    %v2838 = vpop.f32.mrf.mxu0
    %v2839 = vadd.f32 0.0, %v2838
    %v2840 = vpop.f32.mrf.mxu0
    %v2841 = vadd.f32 0.0, %v2840
    %2842 = vdwg.mxu0
    %2843 = vmatpush.bf16.msra.mxu0 %v1870
    %2844 = vmatpush.bf16.msra.mxu0 %v1862
    %2845 = vmatpush.bf16.msra.mxu0 %v1854
    %2846 = vmatpush.bf16.msra.mxu0 %v1846
    %2847 = vmatpush.bf16.msra.mxu0 %v1838
    %2848 = vmatpush.bf16.msra.mxu0 %v1830
    %2849 = vmatpush.bf16.msra.mxu0 %v1822
    %2850 = vmatpush.bf16.msra.mxu0 %v1814
    %2851 = vmatmul.bf16.gmra.mxu0 %v131
    %v2852 = vpop.f32.mrf.mxu0
    %v2853 = vadd.f32 %v2839, %v2852
    %v2854 = vpop.f32.mrf.mxu0
    %v2855 = vadd.f32 %v2841, %v2854
    %2856 = vdwg.mxu0
    %2857 = vmatpush.bf16.msra.mxu0 %v1934
    %2858 = vmatpush.bf16.msra.mxu0 %v1926
    %2859 = vmatpush.bf16.msra.mxu0 %v1918
    %2860 = vmatpush.bf16.msra.mxu0 %v1910
    %2861 = vmatpush.bf16.msra.mxu0 %v1902
    %2862 = vmatpush.bf16.msra.mxu0 %v1894
    %2863 = vmatpush.bf16.msra.mxu0 %v1886
    %2864 = vmatpush.bf16.msra.mxu0 %v1878
    %2865 = vmatmul.bf16.gmra.mxu0 %v132
    %v2866 = vpop.f32.mrf.mxu0
    %v2867 = vadd.f32 %v2853, %v2866
    %v2868 = vpop.f32.mrf.mxu0
    %v2869 = vadd.f32 %v2855, %v2868
    %2870 = vdwg.mxu0
    %2871 = vmatpush.bf16.msra.mxu0 %v1998
    %2872 = vmatpush.bf16.msra.mxu0 %v1990
    %2873 = vmatpush.bf16.msra.mxu0 %v1982
    %2874 = vmatpush.bf16.msra.mxu0 %v1974
    %2875 = vmatpush.bf16.msra.mxu0 %v1966
    %2876 = vmatpush.bf16.msra.mxu0 %v1958
    %2877 = vmatpush.bf16.msra.mxu0 %v1950
    %2878 = vmatpush.bf16.msra.mxu0 %v1942
    %2879 = vmatmul.bf16.gmra.mxu0 %v133
    %v2880 = vpop.f32.mrf.mxu0
    %v2881 = vadd.f32 %v2867, %v2880
    %v2882 = vpop.f32.mrf.mxu0
    %v2883 = vadd.f32 %v2869, %v2882
    %2884 = vdwg.mxu0
    %2885 = vmatpush.bf16.msra.mxu0 %v2062
    %2886 = vmatpush.bf16.msra.mxu0 %v2054
    %2887 = vmatpush.bf16.msra.mxu0 %v2046
    %2888 = vmatpush.bf16.msra.mxu0 %v2038
    %2889 = vmatpush.bf16.msra.mxu0 %v2030
    %2890 = vmatpush.bf16.msra.mxu0 %v2022
    %2891 = vmatpush.bf16.msra.mxu0 %v2014
    %2892 = vmatpush.bf16.msra.mxu0 %v2006
    %2893 = vmatmul.bf16.gmra.mxu0 %v134
    %v2894 = vpop.f32.mrf.mxu0
    %v2895 = vadd.f32 %v2881, %v2894
    %v2896 = vpop.f32.mrf.mxu0
    %v2897 = vadd.f32 %v2883, %v2896
    %2898 = vdwg.mxu0
    %2899 = vmatpush.bf16.msra.mxu0 %v2126
    %2900 = vmatpush.bf16.msra.mxu0 %v2118
    %2901 = vmatpush.bf16.msra.mxu0 %v2110
    %2902 = vmatpush.bf16.msra.mxu0 %v2102
    %2903 = vmatpush.bf16.msra.mxu0 %v2094
    %2904 = vmatpush.bf16.msra.mxu0 %v2086
    %2905 = vmatpush.bf16.msra.mxu0 %v2078
    %2906 = vmatpush.bf16.msra.mxu0 %v2070
    %2907 = vmatmul.bf16.gmra.mxu0 %v135
    %v2908 = vpop.f32.mrf.mxu0
    %v2909 = vadd.f32 %v2895, %v2908
    %v2910 = vpop.f32.mrf.mxu0
    %v2911 = vadd.f32 %v2897, %v2910
    %2912 = vdwg.mxu0
    %2913 = vmatpush.bf16.msra.mxu0 0
    %2914 = vmatpush.bf16.msra.mxu0 0
    %2915 = vmatpush.bf16.msra.mxu0 0
    %2916 = vmatpush.bf16.msra.mxu0 0
    %2917 = vmatpush.bf16.msra.mxu0 0
    %2918 = vmatpush.bf16.msra.mxu0 0
    %2919 = vmatpush.bf16.msra.mxu0 0
    %2920 = vmatpush.bf16.msra.mxu0 %v2134
    %2921 = vmatmul.bf16.gmra.mxu0 %v2533
    %v2922 = vpop.f32.mrf.mxu0
    %v2923 = vadd.f32 %v2909, %v2922
    %v2924 = vpop.f32.mrf.mxu0
    %v2925 = vadd.f32 %v2911, %v2924
    %2926 = vdwg.mxu0
    %2927 = vmatpush.bf16.msra.mxu0 %v1807
    %2928 = vmatpush.bf16.msra.mxu0 %v1799
    %2929 = vmatpush.bf16.msra.mxu0 %v1791
    %2930 = vmatpush.bf16.msra.mxu0 %v1783
    %2931 = vmatpush.bf16.msra.mxu0 %v1775
    %2932 = vmatpush.bf16.msra.mxu0 %v1767
    %2933 = vmatpush.bf16.msra.mxu0 %v1759
    %2934 = vmatpush.bf16.msra.mxu0 %v1751
    %2935 = vmatmul.bf16.gmra.mxu0 %v130
    %v2936 = vpop.f32.mrf.mxu0
    %v2937 = vadd.f32 0.0, %v2936
    %v2938 = vpop.f32.mrf.mxu0
    %v2939 = vadd.f32 0.0, %v2938
    %2940 = vdwg.mxu0
    %2941 = vmatpush.bf16.msra.mxu0 %v1871
    %2942 = vmatpush.bf16.msra.mxu0 %v1863
    %2943 = vmatpush.bf16.msra.mxu0 %v1855
    %2944 = vmatpush.bf16.msra.mxu0 %v1847
    %2945 = vmatpush.bf16.msra.mxu0 %v1839
    %2946 = vmatpush.bf16.msra.mxu0 %v1831
    %2947 = vmatpush.bf16.msra.mxu0 %v1823
    %2948 = vmatpush.bf16.msra.mxu0 %v1815
    %2949 = vmatmul.bf16.gmra.mxu0 %v131
    %v2950 = vpop.f32.mrf.mxu0
    %v2951 = vadd.f32 %v2937, %v2950
    %v2952 = vpop.f32.mrf.mxu0
    %v2953 = vadd.f32 %v2939, %v2952
    %2954 = vdwg.mxu0
    %2955 = vmatpush.bf16.msra.mxu0 %v1935
    %2956 = vmatpush.bf16.msra.mxu0 %v1927
    %2957 = vmatpush.bf16.msra.mxu0 %v1919
    %2958 = vmatpush.bf16.msra.mxu0 %v1911
    %2959 = vmatpush.bf16.msra.mxu0 %v1903
    %2960 = vmatpush.bf16.msra.mxu0 %v1895
    %2961 = vmatpush.bf16.msra.mxu0 %v1887
    %2962 = vmatpush.bf16.msra.mxu0 %v1879
    %2963 = vmatmul.bf16.gmra.mxu0 %v132
    %v2964 = vpop.f32.mrf.mxu0
    %v2965 = vadd.f32 %v2951, %v2964
    %v2966 = vpop.f32.mrf.mxu0
    %v2967 = vadd.f32 %v2953, %v2966
    %2968 = vdwg.mxu0
    %2969 = vmatpush.bf16.msra.mxu0 %v1999
    %2970 = vmatpush.bf16.msra.mxu0 %v1991
    %2971 = vmatpush.bf16.msra.mxu0 %v1983
    %2972 = vmatpush.bf16.msra.mxu0 %v1975
    %2973 = vmatpush.bf16.msra.mxu0 %v1967
    %2974 = vmatpush.bf16.msra.mxu0 %v1959
    %2975 = vmatpush.bf16.msra.mxu0 %v1951
    %2976 = vmatpush.bf16.msra.mxu0 %v1943
    %2977 = vmatmul.bf16.gmra.mxu0 %v133
    %v2978 = vpop.f32.mrf.mxu0
    %v2979 = vadd.f32 %v2965, %v2978
    %v2980 = vpop.f32.mrf.mxu0
    %v2981 = vadd.f32 %v2967, %v2980
    %2982 = vdwg.mxu0
    %2983 = vmatpush.bf16.msra.mxu0 %v2063
    %2984 = vmatpush.bf16.msra.mxu0 %v2055
    %2985 = vmatpush.bf16.msra.mxu0 %v2047
    %2986 = vmatpush.bf16.msra.mxu0 %v2039
    %2987 = vmatpush.bf16.msra.mxu0 %v2031
    %2988 = vmatpush.bf16.msra.mxu0 %v2023
    %2989 = vmatpush.bf16.msra.mxu0 %v2015
    %2990 = vmatpush.bf16.msra.mxu0 %v2007
    %2991 = vmatmul.bf16.gmra.mxu0 %v134
    %v2992 = vpop.f32.mrf.mxu0
    %v2993 = vadd.f32 %v2979, %v2992
    %v2994 = vpop.f32.mrf.mxu0
    %v2995 = vadd.f32 %v2981, %v2994
    %2996 = vdwg.mxu0
    %2997 = vmatpush.bf16.msra.mxu0 %v2127
    %2998 = vmatpush.bf16.msra.mxu0 %v2119
    %2999 = vmatpush.bf16.msra.mxu0 %v2111
    %3000 = vmatpush.bf16.msra.mxu0 %v2103
    %3001 = vmatpush.bf16.msra.mxu0 %v2095
    %3002 = vmatpush.bf16.msra.mxu0 %v2087
    %3003 = vmatpush.bf16.msra.mxu0 %v2079
    %3004 = vmatpush.bf16.msra.mxu0 %v2071
    %3005 = vmatmul.bf16.gmra.mxu0 %v135
    %v3006 = vpop.f32.mrf.mxu0
    %v3007 = vadd.f32 %v2993, %v3006
    %v3008 = vpop.f32.mrf.mxu0
    %v3009 = vadd.f32 %v2995, %v3008
    %3010 = vdwg.mxu0
    %3011 = vmatpush.bf16.msra.mxu0 0
    %3012 = vmatpush.bf16.msra.mxu0 0
    %3013 = vmatpush.bf16.msra.mxu0 0
    %3014 = vmatpush.bf16.msra.mxu0 0
    %3015 = vmatpush.bf16.msra.mxu0 0
    %3016 = vmatpush.bf16.msra.mxu0 0
    %3017 = vmatpush.bf16.msra.mxu0 0
    %3018 = vmatpush.bf16.msra.mxu0 %v2135
    %3019 = vmatmul.bf16.gmra.mxu0 %v2533
    %v3020 = vpop.f32.mrf.mxu0
    %v3021 = vadd.f32 %v3007, %v3020
    %v3022 = vpop.f32.mrf.mxu0
    %v3023 = vadd.f32 %v3009, %v3022
    %3024 = vdwg.mxu0
    %3025 = vmatpush.bf16.msra.mxu0 %v1808
    %3026 = vmatpush.bf16.msra.mxu0 %v1800
    %3027 = vmatpush.bf16.msra.mxu0 %v1792
    %3028 = vmatpush.bf16.msra.mxu0 %v1784
    %3029 = vmatpush.bf16.msra.mxu0 %v1776
    %3030 = vmatpush.bf16.msra.mxu0 %v1768
    %3031 = vmatpush.bf16.msra.mxu0 %v1760
    %3032 = vmatpush.bf16.msra.mxu0 %v1752
    %3033 = vmatmul.bf16.gmra.mxu0 %v130
    %v3034 = vpop.f32.mrf.mxu0
    %v3035 = vadd.f32 0.0, %v3034
    %v3036 = vpop.f32.mrf.mxu0
    %v3037 = vadd.f32 0.0, %v3036
    %3038 = vdwg.mxu0
    %3039 = vmatpush.bf16.msra.mxu0 %v1872
    %3040 = vmatpush.bf16.msra.mxu0 %v1864
    %3041 = vmatpush.bf16.msra.mxu0 %v1856
    %3042 = vmatpush.bf16.msra.mxu0 %v1848
    %3043 = vmatpush.bf16.msra.mxu0 %v1840
    %3044 = vmatpush.bf16.msra.mxu0 %v1832
    %3045 = vmatpush.bf16.msra.mxu0 %v1824
    %3046 = vmatpush.bf16.msra.mxu0 %v1816
    %3047 = vmatmul.bf16.gmra.mxu0 %v131
    %v3048 = vpop.f32.mrf.mxu0
    %v3049 = vadd.f32 %v3035, %v3048
    %v3050 = vpop.f32.mrf.mxu0
    %v3051 = vadd.f32 %v3037, %v3050
    %3052 = vdwg.mxu0
    %3053 = vmatpush.bf16.msra.mxu0 %v1936
    %3054 = vmatpush.bf16.msra.mxu0 %v1928
    %3055 = vmatpush.bf16.msra.mxu0 %v1920
    %3056 = vmatpush.bf16.msra.mxu0 %v1912
    %3057 = vmatpush.bf16.msra.mxu0 %v1904
    %3058 = vmatpush.bf16.msra.mxu0 %v1896
    %3059 = vmatpush.bf16.msra.mxu0 %v1888
    %3060 = vmatpush.bf16.msra.mxu0 %v1880
    %3061 = vmatmul.bf16.gmra.mxu0 %v132
    %v3062 = vpop.f32.mrf.mxu0
    %v3063 = vadd.f32 %v3049, %v3062
    %v3064 = vpop.f32.mrf.mxu0
    %v3065 = vadd.f32 %v3051, %v3064
    %3066 = vdwg.mxu0
    %3067 = vmatpush.bf16.msra.mxu0 %v2000
    %3068 = vmatpush.bf16.msra.mxu0 %v1992
    %3069 = vmatpush.bf16.msra.mxu0 %v1984
    %3070 = vmatpush.bf16.msra.mxu0 %v1976
    %3071 = vmatpush.bf16.msra.mxu0 %v1968
    %3072 = vmatpush.bf16.msra.mxu0 %v1960
    %3073 = vmatpush.bf16.msra.mxu0 %v1952
    %3074 = vmatpush.bf16.msra.mxu0 %v1944
    %3075 = vmatmul.bf16.gmra.mxu0 %v133
    %v3076 = vpop.f32.mrf.mxu0
    %v3077 = vadd.f32 %v3063, %v3076
    %v3078 = vpop.f32.mrf.mxu0
    %v3079 = vadd.f32 %v3065, %v3078
    %3080 = vdwg.mxu0
    %3081 = vmatpush.bf16.msra.mxu0 %v2064
    %3082 = vmatpush.bf16.msra.mxu0 %v2056
    %3083 = vmatpush.bf16.msra.mxu0 %v2048
    %3084 = vmatpush.bf16.msra.mxu0 %v2040
    %3085 = vmatpush.bf16.msra.mxu0 %v2032
    %3086 = vmatpush.bf16.msra.mxu0 %v2024
    %3087 = vmatpush.bf16.msra.mxu0 %v2016
    %3088 = vmatpush.bf16.msra.mxu0 %v2008
    %3089 = vmatmul.bf16.gmra.mxu0 %v134
    %v3090 = vpop.f32.mrf.mxu0
    %v3091 = vadd.f32 %v3077, %v3090
    %v3092 = vpop.f32.mrf.mxu0
    %v3093 = vadd.f32 %v3079, %v3092
    %3094 = vdwg.mxu0
    %3095 = vmatpush.bf16.msra.mxu0 %v2128
    %3096 = vmatpush.bf16.msra.mxu0 %v2120
    %3097 = vmatpush.bf16.msra.mxu0 %v2112
    %3098 = vmatpush.bf16.msra.mxu0 %v2104
    %3099 = vmatpush.bf16.msra.mxu0 %v2096
    %3100 = vmatpush.bf16.msra.mxu0 %v2088
    %3101 = vmatpush.bf16.msra.mxu0 %v2080
    %3102 = vmatpush.bf16.msra.mxu0 %v2072
    %3103 = vmatmul.bf16.gmra.mxu0 %v135
    %v3104 = vpop.f32.mrf.mxu0
    %v3105 = vadd.f32 %v3091, %v3104
    %v3106 = vpop.f32.mrf.mxu0
    %v3107 = vadd.f32 %v3093, %v3106
    %3108 = vdwg.mxu0
    %3109 = vmatpush.bf16.msra.mxu0 0
    %3110 = vmatpush.bf16.msra.mxu0 0
    %3111 = vmatpush.bf16.msra.mxu0 0
    %3112 = vmatpush.bf16.msra.mxu0 0
    %3113 = vmatpush.bf16.msra.mxu0 0
    %3114 = vmatpush.bf16.msra.mxu0 0
    %3115 = vmatpush.bf16.msra.mxu0 0
    %3116 = vmatpush.bf16.msra.mxu0 %v2136
    %3117 = vmatmul.bf16.gmra.mxu0 %v2533
    %v3118 = vpop.f32.mrf.mxu0
    %v3119 = vadd.f32 %v3105, %v3118
    %v3120 = vpop.f32.mrf.mxu0
    %v3121 = vadd.f32 %v3107, %v3120
    %3122 = vdwg.mxu0
    %3123 = vmatpush.bf16.msra.mxu0 %v1809
    %3124 = vmatpush.bf16.msra.mxu0 %v1801
    %3125 = vmatpush.bf16.msra.mxu0 %v1793
    %3126 = vmatpush.bf16.msra.mxu0 %v1785
    %3127 = vmatpush.bf16.msra.mxu0 %v1777
    %3128 = vmatpush.bf16.msra.mxu0 %v1769
    %3129 = vmatpush.bf16.msra.mxu0 %v1761
    %3130 = vmatpush.bf16.msra.mxu0 %v1753
    %3131 = vmatmul.bf16.gmra.mxu0 %v130
    %v3132 = vpop.f32.mrf.mxu0
    %v3133 = vadd.f32 0.0, %v3132
    %v3134 = vpop.f32.mrf.mxu0
    %v3135 = vadd.f32 0.0, %v3134
    %3136 = vdwg.mxu0
    %3137 = vmatpush.bf16.msra.mxu0 %v1873
    %3138 = vmatpush.bf16.msra.mxu0 %v1865
    %3139 = vmatpush.bf16.msra.mxu0 %v1857
    %3140 = vmatpush.bf16.msra.mxu0 %v1849
    %3141 = vmatpush.bf16.msra.mxu0 %v1841
    %3142 = vmatpush.bf16.msra.mxu0 %v1833
    %3143 = vmatpush.bf16.msra.mxu0 %v1825
    %3144 = vmatpush.bf16.msra.mxu0 %v1817
    %3145 = vmatmul.bf16.gmra.mxu0 %v131
    %v3146 = vpop.f32.mrf.mxu0
    %v3147 = vadd.f32 %v3133, %v3146
    %v3148 = vpop.f32.mrf.mxu0
    %v3149 = vadd.f32 %v3135, %v3148
    %3150 = vdwg.mxu0
    %3151 = vmatpush.bf16.msra.mxu0 %v1937
    %3152 = vmatpush.bf16.msra.mxu0 %v1929
    %3153 = vmatpush.bf16.msra.mxu0 %v1921
    %3154 = vmatpush.bf16.msra.mxu0 %v1913
    %3155 = vmatpush.bf16.msra.mxu0 %v1905
    %3156 = vmatpush.bf16.msra.mxu0 %v1897
    %3157 = vmatpush.bf16.msra.mxu0 %v1889
    %3158 = vmatpush.bf16.msra.mxu0 %v1881
    %3159 = vmatmul.bf16.gmra.mxu0 %v132
    %v3160 = vpop.f32.mrf.mxu0
    %v3161 = vadd.f32 %v3147, %v3160
    %v3162 = vpop.f32.mrf.mxu0
    %v3163 = vadd.f32 %v3149, %v3162
    %3164 = vdwg.mxu0
    %3165 = vmatpush.bf16.msra.mxu0 %v2001
    %3166 = vmatpush.bf16.msra.mxu0 %v1993
    %3167 = vmatpush.bf16.msra.mxu0 %v1985
    %3168 = vmatpush.bf16.msra.mxu0 %v1977
    %3169 = vmatpush.bf16.msra.mxu0 %v1969
    %3170 = vmatpush.bf16.msra.mxu0 %v1961
    %3171 = vmatpush.bf16.msra.mxu0 %v1953
    %3172 = vmatpush.bf16.msra.mxu0 %v1945
    %3173 = vmatmul.bf16.gmra.mxu0 %v133
    %v3174 = vpop.f32.mrf.mxu0
    %v3175 = vadd.f32 %v3161, %v3174
    %v3176 = vpop.f32.mrf.mxu0
    %v3177 = vadd.f32 %v3163, %v3176
    %3178 = vdwg.mxu0
    %3179 = vmatpush.bf16.msra.mxu0 %v2065
    %3180 = vmatpush.bf16.msra.mxu0 %v2057
    %3181 = vmatpush.bf16.msra.mxu0 %v2049
    %3182 = vmatpush.bf16.msra.mxu0 %v2041
    %3183 = vmatpush.bf16.msra.mxu0 %v2033
    %3184 = vmatpush.bf16.msra.mxu0 %v2025
    %3185 = vmatpush.bf16.msra.mxu0 %v2017
    %3186 = vmatpush.bf16.msra.mxu0 %v2009
    %3187 = vmatmul.bf16.gmra.mxu0 %v134
    %v3188 = vpop.f32.mrf.mxu0
    %v3189 = vadd.f32 %v3175, %v3188
    %v3190 = vpop.f32.mrf.mxu0
    %v3191 = vadd.f32 %v3177, %v3190
    %3192 = vdwg.mxu0
    %3193 = vmatpush.bf16.msra.mxu0 %v2129
    %3194 = vmatpush.bf16.msra.mxu0 %v2121
    %3195 = vmatpush.bf16.msra.mxu0 %v2113
    %3196 = vmatpush.bf16.msra.mxu0 %v2105
    %3197 = vmatpush.bf16.msra.mxu0 %v2097
    %3198 = vmatpush.bf16.msra.mxu0 %v2089
    %3199 = vmatpush.bf16.msra.mxu0 %v2081
    %3200 = vmatpush.bf16.msra.mxu0 %v2073
    %3201 = vmatmul.bf16.gmra.mxu0 %v135
    %v3202 = vpop.f32.mrf.mxu0
    %v3203 = vadd.f32 %v3189, %v3202
    %v3204 = vpop.f32.mrf.mxu0
    %v3205 = vadd.f32 %v3191, %v3204
    %3206 = vdwg.mxu0
    %3207 = vmatpush.bf16.msra.mxu0 0
    %3208 = vmatpush.bf16.msra.mxu0 0
    %3209 = vmatpush.bf16.msra.mxu0 0
    %3210 = vmatpush.bf16.msra.mxu0 0
    %3211 = vmatpush.bf16.msra.mxu0 0
    %3212 = vmatpush.bf16.msra.mxu0 0
    %3213 = vmatpush.bf16.msra.mxu0 0
    %3214 = vmatpush.bf16.msra.mxu0 %v2137
    %3215 = vmatmul.bf16.gmra.mxu0 %v2533
    %v3216 = vpop.f32.mrf.mxu0
    %v3217 = vadd.f32 %v3203, %v3216
    %v3218 = vpop.f32.mrf.mxu0
    %v3219 = vadd.f32 %v3205, %v3218
    %3220 = vdwg.mxu0
    %3221 = vmatpush.bf16.msra.mxu0 %v1810
    %3222 = vmatpush.bf16.msra.mxu0 %v1802
    %3223 = vmatpush.bf16.msra.mxu0 %v1794
    %3224 = vmatpush.bf16.msra.mxu0 %v1786
    %3225 = vmatpush.bf16.msra.mxu0 %v1778
    %3226 = vmatpush.bf16.msra.mxu0 %v1770
    %3227 = vmatpush.bf16.msra.mxu0 %v1762
    %3228 = vmatpush.bf16.msra.mxu0 %v1754
    %3229 = vmatmul.bf16.gmra.mxu0 %v130
    %v3230 = vpop.f32.mrf.mxu0
    %v3231 = vadd.f32 0.0, %v3230
    %v3232 = vpop.f32.mrf.mxu0
    %v3233 = vadd.f32 0.0, %v3232
    %3234 = vdwg.mxu0
    %3235 = vmatpush.bf16.msra.mxu0 %v1874
    %3236 = vmatpush.bf16.msra.mxu0 %v1866
    %3237 = vmatpush.bf16.msra.mxu0 %v1858
    %3238 = vmatpush.bf16.msra.mxu0 %v1850
    %3239 = vmatpush.bf16.msra.mxu0 %v1842
    %3240 = vmatpush.bf16.msra.mxu0 %v1834
    %3241 = vmatpush.bf16.msra.mxu0 %v1826
    %3242 = vmatpush.bf16.msra.mxu0 %v1818
    %3243 = vmatmul.bf16.gmra.mxu0 %v131
    %v3244 = vpop.f32.mrf.mxu0
    %v3245 = vadd.f32 %v3231, %v3244
    %v3246 = vpop.f32.mrf.mxu0
    %v3247 = vadd.f32 %v3233, %v3246
    %3248 = vdwg.mxu0
    %3249 = vmatpush.bf16.msra.mxu0 %v1938
    %3250 = vmatpush.bf16.msra.mxu0 %v1930
    %3251 = vmatpush.bf16.msra.mxu0 %v1922
    %3252 = vmatpush.bf16.msra.mxu0 %v1914
    %3253 = vmatpush.bf16.msra.mxu0 %v1906
    %3254 = vmatpush.bf16.msra.mxu0 %v1898
    %3255 = vmatpush.bf16.msra.mxu0 %v1890
    %3256 = vmatpush.bf16.msra.mxu0 %v1882
    %3257 = vmatmul.bf16.gmra.mxu0 %v132
    %v3258 = vpop.f32.mrf.mxu0
    %v3259 = vadd.f32 %v3245, %v3258
    %v3260 = vpop.f32.mrf.mxu0
    %v3261 = vadd.f32 %v3247, %v3260
    %3262 = vdwg.mxu0
    %3263 = vmatpush.bf16.msra.mxu0 %v2002
    %3264 = vmatpush.bf16.msra.mxu0 %v1994
    %3265 = vmatpush.bf16.msra.mxu0 %v1986
    %3266 = vmatpush.bf16.msra.mxu0 %v1978
    %3267 = vmatpush.bf16.msra.mxu0 %v1970
    %3268 = vmatpush.bf16.msra.mxu0 %v1962
    %3269 = vmatpush.bf16.msra.mxu0 %v1954
    %3270 = vmatpush.bf16.msra.mxu0 %v1946
    %3271 = vmatmul.bf16.gmra.mxu0 %v133
    %v3272 = vpop.f32.mrf.mxu0
    %v3273 = vadd.f32 %v3259, %v3272
    %v3274 = vpop.f32.mrf.mxu0
    %v3275 = vadd.f32 %v3261, %v3274
    %3276 = vdwg.mxu0
    %3277 = vmatpush.bf16.msra.mxu0 %v2066
    %3278 = vmatpush.bf16.msra.mxu0 %v2058
    %3279 = vmatpush.bf16.msra.mxu0 %v2050
    %3280 = vmatpush.bf16.msra.mxu0 %v2042
    %3281 = vmatpush.bf16.msra.mxu0 %v2034
    %3282 = vmatpush.bf16.msra.mxu0 %v2026
    %3283 = vmatpush.bf16.msra.mxu0 %v2018
    %3284 = vmatpush.bf16.msra.mxu0 %v2010
    %3285 = vmatmul.bf16.gmra.mxu0 %v134
    %v3286 = vpop.f32.mrf.mxu0
    %v3287 = vadd.f32 %v3273, %v3286
    %v3288 = vpop.f32.mrf.mxu0
    %v3289 = vadd.f32 %v3275, %v3288
    %3290 = vdwg.mxu0
    %3291 = vmatpush.bf16.msra.mxu0 %v2130
    %3292 = vmatpush.bf16.msra.mxu0 %v2122
    %3293 = vmatpush.bf16.msra.mxu0 %v2114
    %3294 = vmatpush.bf16.msra.mxu0 %v2106
    %3295 = vmatpush.bf16.msra.mxu0 %v2098
    %3296 = vmatpush.bf16.msra.mxu0 %v2090
    %3297 = vmatpush.bf16.msra.mxu0 %v2082
    %3298 = vmatpush.bf16.msra.mxu0 %v2074
    %3299 = vmatmul.bf16.gmra.mxu0 %v135
    %v3300 = vpop.f32.mrf.mxu0
    %v3301 = vadd.f32 %v3287, %v3300
    %v3302 = vpop.f32.mrf.mxu0
    %v3303 = vadd.f32 %v3289, %v3302
    %3304 = vdwg.mxu0
    %3305 = vmatpush.bf16.msra.mxu0 0
    %3306 = vmatpush.bf16.msra.mxu0 0
    %3307 = vmatpush.bf16.msra.mxu0 0
    %3308 = vmatpush.bf16.msra.mxu0 0
    %3309 = vmatpush.bf16.msra.mxu0 0
    %3310 = vmatpush.bf16.msra.mxu0 0
    %3311 = vmatpush.bf16.msra.mxu0 0
    %3312 = vmatpush.bf16.msra.mxu0 %v2138
    %3313 = vmatmul.bf16.gmra.mxu0 %v2533
    %v3314 = vpop.f32.mrf.mxu0
    %v3315 = vadd.f32 %v3301, %v3314
    %v3316 = vpop.f32.mrf.mxu0
    %v3317 = vadd.f32 %v3303, %v3316
    %3318 = vdwg.mxu0
    %v3319 = vpack.c.bf16 %v2727, %v2629
    %v3320 = vpack.c.bf16 %v2923, %v2825
    %v3321 = vpack.c.bf16 %v3119, %v3021
    %v3322 = vpack.c.bf16 %v3315, %v3217
    %v3323 = vpack.c.bf16 %v2729, %v2631
    %v3324 = vpack.c.bf16 %v2925, %v2827
    %v3325 = vpack.c.bf16 %v3121, %v3023
    %v3326 = vpack.c.bf16 %v3317, %v3219
    %v3331 = vunpack.c.l.b16 %v155
    %v3332 = vunpack.c.h.b16 %v155
    %v3333 = vunpack.c.l.b16 %v156
    %v3334 = vunpack.c.h.b16 %v156
    %v3335 = vunpack.c.l.b16 %v157
    %v3336 = vunpack.c.h.b16 %v157
    %v3337 = vunpack.c.l.b16 %v158
    %v3338 = vunpack.c.h.b16 %v158
    %v3339 = vpack.c.b16 %v3331, %v3331
    %v3340 = vpack.c.b16 %v3332, %v3332
    %v3341 = vpack.c.b16 %v3333, %v3333
    %v3342 = vpack.c.b16 %v3334, %v3334
    %v3343 = vpack.c.b16 %v3335, %v3335
    %v3344 = vpack.c.b16 %v3336, %v3336
    %v3345 = vpack.c.b16 %v3337, %v3337
    %v3346 = vpack.c.b16 %v3338, %v3338
    %v3348 = vpack.i.b16 %v3339, %v3339
    %v3350 = vperm.slane %v3348, 0
    %v3352 = vpack.i.b16 %v3340, %v3340
    %v3354 = vperm.slane %v3352, 0
    %v3356 = vpack.i.b16 %v3341, %v3341
    %v3358 = vperm.slane %v3356, 0
    %v3360 = vpack.i.b16 %v3342, %v3342
    %v3362 = vperm.slane %v3360, 0
    %v3364 = vpack.i.b16 %v3343, %v3343
    %v3366 = vperm.slane %v3364, 0
    %v3368 = vpack.i.b16 %v3344, %v3344
    %v3370 = vperm.slane %v3368, 0
    %v3372 = vpack.i.b16 %v3345, %v3345
    %v3374 = vperm.slane %v3372, 0
    %v3376 = vpack.i.b16 %v3346, %v3346
    %v3378 = vperm.slane %v3376, 0
    %v3379 = vunpack.c.l.bf16 %v3319
    %v3380 = vunpack.c.h.bf16 %v3319
    %v3381 = vunpack.c.l.bf16 %v3320
    %v3382 = vunpack.c.h.bf16 %v3320
    %v3383 = vunpack.c.l.bf16 %v3321
    %v3384 = vunpack.c.h.bf16 %v3321
    %v3385 = vunpack.c.l.bf16 %v3322
    %v3386 = vunpack.c.h.bf16 %v3322
    %v3387 = vunpack.c.l.bf16 %v3323
    %v3388 = vunpack.c.h.bf16 %v3323
    %v3389 = vunpack.c.l.bf16 %v3324
    %v3390 = vunpack.c.h.bf16 %v3324
    %v3391 = vunpack.c.l.bf16 %v3325
    %v3392 = vunpack.c.h.bf16 %v3325
    %v3393 = vunpack.c.l.bf16 %v3326
    %v3394 = vunpack.c.h.bf16 %v3326
    %v3395 = vunpack.c.l.bf16 %v3350
    %v3396 = vunpack.c.l.bf16 %v3354
    %v3397 = vunpack.c.l.bf16 %v3358
    %v3398 = vunpack.c.l.bf16 %v3362
    %v3399 = vunpack.c.l.bf16 %v3366
    %v3400 = vunpack.c.l.bf16 %v3370
    %v3401 = vunpack.c.l.bf16 %v3374
    %v3402 = vunpack.c.l.bf16 %v3378
    %v3403 = vadd.f32 %v3379, %v3395
    %v3404 = vadd.f32 %v3380, %v3396
    %v3405 = vadd.f32 %v3381, %v3397
    %v3406 = vadd.f32 %v3382, %v3398
    %v3407 = vadd.f32 %v3383, %v3399
    %v3408 = vadd.f32 %v3384, %v3400
    %v3409 = vadd.f32 %v3385, %v3401
    %v3410 = vadd.f32 %v3386, %v3402
    %v3411 = vadd.f32 %v3387, %v3395
    %v3412 = vadd.f32 %v3388, %v3396
    %v3413 = vadd.f32 %v3389, %v3397
    %v3414 = vadd.f32 %v3390, %v3398
    %v3415 = vadd.f32 %v3391, %v3399
    %v3416 = vadd.f32 %v3392, %v3400
    %v3417 = vadd.f32 %v3393, %v3401
    %v3418 = vadd.f32 %v3394, %v3402
    %v3419 = vpack.c.bf16 %v3404, %v3403
    %v3420 = vpack.c.bf16 %v3406, %v3405
    %v3421 = vpack.c.bf16 %v3408, %v3407
    %v3422 = vpack.c.bf16 %v3410, %v3409
    %v3423 = vpack.c.bf16 %v3412, %v3411
    %v3424 = vpack.c.bf16 %v3414, %v3413
    %v3425 = vpack.c.bf16 %v3416, %v3415
    %v3426 = vpack.c.bf16 %v3418, %v3417
    %v3427 = vunpack.c.l.bf16 %v3419
    %v3428 = vunpack.c.h.bf16 %v3419
    %v3429 = vunpack.c.l.bf16 %v3420
    %v3430 = vunpack.c.h.bf16 %v3420
    %v3431 = vunpack.c.l.bf16 %v3421
    %v3432 = vunpack.c.h.bf16 %v3421
    %v3433 = vunpack.c.l.bf16 %v3422
    %v3434 = vunpack.c.h.bf16 %v3422
    %v3435 = vunpack.c.l.bf16 %v3423
    %v3436 = vunpack.c.h.bf16 %v3423
    %v3437 = vunpack.c.l.bf16 %v3424
    %v3438 = vunpack.c.h.bf16 %v3424
    %v3439 = vunpack.c.l.bf16 %v3425
    %v3440 = vunpack.c.h.bf16 %v3425
    %v3441 = vunpack.c.l.bf16 %v3426
    %v3442 = vunpack.c.h.bf16 %v3426
    %vm3443 = vcmp.gt.f32.partialorder %v3427, 0.0
    %vm3444 = vcmp.gt.f32.partialorder %v3428, 0.0
    %vm3445 = vcmp.gt.f32.partialorder %v3429, 0.0
    %vm3446 = vcmp.gt.f32.partialorder %v3430, 0.0
    %vm3447 = vcmp.gt.f32.partialorder %v3431, 0.0
    %vm3448 = vcmp.gt.f32.partialorder %v3432, 0.0
    %vm3449 = vcmp.gt.f32.partialorder %v3433, 0.0
    %vm3450 = vcmp.gt.f32.partialorder %v3434, 0.0
    %vm3451 = vcmp.gt.f32.partialorder %v3435, 0.0
    %vm3452 = vcmp.gt.f32.partialorder %v3436, 0.0
    %vm3453 = vcmp.gt.f32.partialorder %v3437, 0.0
    %vm3454 = vcmp.gt.f32.partialorder %v3438, 0.0
    %vm3455 = vcmp.gt.f32.partialorder %v3439, 0.0
    %vm3456 = vcmp.gt.f32.partialorder %v3440, 0.0
    %vm3457 = vcmp.gt.f32.partialorder %v3441, 0.0
    %vm3458 = vcmp.gt.f32.partialorder %v3442, 0.0
    %v3459 = vmul.f32 %v3427, 0.20019531
    %v3460 = vmul.f32 %v3428, 0.20019531
    %v3461 = vmul.f32 %v3429, 0.20019531
    %v3462 = vmul.f32 %v3430, 0.20019531
    %v3463 = vmul.f32 %v3431, 0.20019531
    %v3464 = vmul.f32 %v3432, 0.20019531
    %v3465 = vmul.f32 %v3433, 0.20019531
    %v3466 = vmul.f32 %v3434, 0.20019531
    %v3467 = vmul.f32 %v3435, 0.20019531
    %v3468 = vmul.f32 %v3436, 0.20019531
    %v3469 = vmul.f32 %v3437, 0.20019531
    %v3470 = vmul.f32 %v3438, 0.20019531
    %v3471 = vmul.f32 %v3439, 0.20019531
    %v3472 = vmul.f32 %v3440, 0.20019531
    %v3473 = vmul.f32 %v3441, 0.20019531
    %v3474 = vmul.f32 %v3442, 0.20019531
    %v3475 = vpack.c.bf16 %v3460, %v3459
    %v3476 = vpack.c.bf16 %v3462, %v3461
    %v3477 = vpack.c.bf16 %v3464, %v3463
    %v3478 = vpack.c.bf16 %v3466, %v3465
    %v3479 = vpack.c.bf16 %v3468, %v3467
    %v3480 = vpack.c.bf16 %v3470, %v3469
    %v3481 = vpack.c.bf16 %v3472, %v3471
    %v3482 = vpack.c.bf16 %v3474, %v3473
    %vm3483 = vmpackc.low %vm3444, %vm3443
    %vm3484 = vmpackc.low %vm3446, %vm3445
    %vm3485 = vmpackc.low %vm3448, %vm3447
    %vm3486 = vmpackc.low %vm3450, %vm3449
    %vm3487 = vmpackc.low %vm3452, %vm3451
    %vm3488 = vmpackc.low %vm3454, %vm3453
    %vm3489 = vmpackc.low %vm3456, %vm3455
    %vm3490 = vmpackc.low %vm3458, %vm3457
    %v3491 = vsel %vm3483, %v3419, %v3475
    %v3492 = vsel %vm3484, %v3420, %v3476
    %v3493 = vsel %vm3485, %v3421, %v3477
    %v3494 = vsel %vm3486, %v3422, %v3478
    %v3495 = vsel %vm3487, %v3423, %v3479
    %v3496 = vsel %vm3488, %v3424, %v3480
    %v3497 = vsel %vm3489, %v3425, %v3481
    %v3498 = vsel %vm3490, %v3426, %v3482
    %v3499 = vld [vmem:[#allocation6] sm:$0xff]
    %v3500 = vld [vmem:[#allocation6 + $0x8] sm:$0xff]
    %v3501 = vld [vmem:[#allocation6 + $0x10] sm:$0xff]
    %v3502 = vld [vmem:[#allocation6 + $0x18] sm:$0xff]
    %v3503 = vld [vmem:[#allocation6 + $0x20] sm:$0xff]
    %v3504 = vld [vmem:[#allocation6 + $0x28] sm:$0xff]
    %v3505 = vld [vmem:[#allocation6 + $0x30] sm:$0xff]
    %v3506 = vld [vmem:[#allocation6 + $0x38] sm:$0xff]
    %v3507 = vld [vmem:[#allocation6 + $0x40] sm:$0xff]
    %v3508 = vld [vmem:[#allocation6 + $0x48] sm:$0xff]
    %v3509 = vld [vmem:[#allocation6 + $0x50] sm:$0xff]
    %v3510 = vld [vmem:[#allocation6 + $0x58] sm:$0xff]
    %v3511 = vld [vmem:[#allocation6 + $0x60] sm:$0xff]
    %v3512 = vld [vmem:[#allocation6 + $0x68] sm:$0xff]
    %v3513 = vld [vmem:[#allocation6 + $0x70] sm:$0xff]
    %v3514 = vld [vmem:[#allocation6 + $0x78] sm:$0xff]
    %v3515 = vld [vmem:[#allocation6 + $0x80] sm:$0xff]
    %v3516 = vld [vmem:[#allocation6 + $0x88] sm:$0xff]
    %v3517 = vld [vmem:[#allocation6 + $0x90] sm:$0xff]
    %v3518 = vld [vmem:[#allocation6 + $0x98] sm:$0xff]
    %v3519 = vld [vmem:[#allocation6 + $0xa0] sm:$0xff]
    %v3520 = vld [vmem:[#allocation6 + $0xa8] sm:$0xff]
    %v3521 = vld [vmem:[#allocation6 + $0xb0] sm:$0xff]
    %v3522 = vld [vmem:[#allocation6 + $0xb8] sm:$0xff]
    %v3523 = vld [vmem:[#allocation6 + $0xc0] sm:$0xff]
    %v3524 = vld [vmem:[#allocation6 + $0xc8] sm:$0xff]
    %v3525 = vld [vmem:[#allocation6 + $0xd0] sm:$0xff]
    %v3526 = vld [vmem:[#allocation6 + $0xd8] sm:$0xff]
    %v3527 = vld [vmem:[#allocation6 + $0xe0] sm:$0xff]
    %v3528 = vld [vmem:[#allocation6 + $0xe8] sm:$0xff]
    %v3529 = vld [vmem:[#allocation6 + $0xf0] sm:$0xff]
    %v3530 = vld [vmem:[#allocation6 + $0xf8] sm:$0xff]
    %v3531 = vld [vmem:[#allocation6 + $0x100] sm:$0xff]
    %v3532 = vld [vmem:[#allocation6 + $0x108] sm:$0xff]
    %v3533 = vld [vmem:[#allocation6 + $0x110] sm:$0xff]
    %v3534 = vld [vmem:[#allocation6 + $0x118] sm:$0xff]
    %v3535 = vld [vmem:[#allocation6 + $0x120] sm:$0xff]
    %v3536 = vld [vmem:[#allocation6 + $0x128] sm:$0xff]
    %v3537 = vld [vmem:[#allocation6 + $0x130] sm:$0xff]
    %v3538 = vld [vmem:[#allocation6 + $0x138] sm:$0xff]
    %v3539 = vld [vmem:[#allocation6 + $0x140] sm:$0xff]
    %v3540 = vld [vmem:[#allocation6 + $0x148] sm:$0xff]
    %v3541 = vld [vmem:[#allocation6 + $0x150] sm:$0xff]
    %v3542 = vld [vmem:[#allocation6 + $0x158] sm:$0xff]
    %v3543 = vld [vmem:[#allocation6 + $0x160] sm:$0xff]
    %v3544 = vld [vmem:[#allocation6 + $0x168] sm:$0xff]
    %v3545 = vld [vmem:[#allocation6 + $0x170] sm:$0xff]
    %v3546 = vld [vmem:[#allocation6 + $0x178] sm:$0xff]
    %v3547 = vld [vmem:[#allocation6 + $0x180] sm:$0xff]
    %v3548 = vld [vmem:[#allocation6 + $0x188] sm:$0xff]
    %v3549 = vld [vmem:[#allocation6 + $0x190] sm:$0xff]
    %v3550 = vld [vmem:[#allocation6 + $0x198] sm:$0xff]
    %v3551 = vld [vmem:[#allocation6 + $0x1a0] sm:$0xff]
    %v3552 = vld [vmem:[#allocation6 + $0x1a8] sm:$0xff]
    %v3553 = vld [vmem:[#allocation6 + $0x1b0] sm:$0xff]
    %v3554 = vld [vmem:[#allocation6 + $0x1b8] sm:$0xff]
    %v3555 = vld [vmem:[#allocation6 + $0x1c0] sm:$0xff]
    %v3556 = vld [vmem:[#allocation6 + $0x1c8] sm:$0xff]
    %v3557 = vld [vmem:[#allocation6 + $0x1d0] sm:$0xff]
    %v3558 = vld [vmem:[#allocation6 + $0x1d8] sm:$0xff]
    %v3559 = vld [vmem:[#allocation6 + $0x1e0] sm:$0xff]
    %v3560 = vld [vmem:[#allocation6 + $0x1e8] sm:$0xff]
    %v3561 = vld [vmem:[#allocation6 + $0x1f0] sm:$0xff]
    %v3562 = vld [vmem:[#allocation6 + $0x1f8] sm:$0xff]
    %v3563 = vld [vmem:[#allocation6 + $0x200] sm:$0xff]
    %v3564 = vld [vmem:[#allocation6 + $0x208] sm:$0xff]
    %v3565 = vld [vmem:[#allocation6 + $0x210] sm:$0xff]
    %v3566 = vld [vmem:[#allocation6 + $0x218] sm:$0xff]
    %v3567 = vld [vmem:[#allocation6 + $0x220] sm:$0xff]
    %v3568 = vld [vmem:[#allocation6 + $0x228] sm:$0xff]
    %v3569 = vld [vmem:[#allocation6 + $0x230] sm:$0xff]
    %v3570 = vld [vmem:[#allocation6 + $0x238] sm:$0xff]
    %v3571 = vld [vmem:[#allocation6 + $0x240] sm:$0xff]
    %v3572 = vld [vmem:[#allocation6 + $0x248] sm:$0xff]
    %v3573 = vld [vmem:[#allocation6 + $0x250] sm:$0xff]
    %v3574 = vld [vmem:[#allocation6 + $0x258] sm:$0xff]
    %v3575 = vld [vmem:[#allocation6 + $0x260] sm:$0xff]
    %v3576 = vld [vmem:[#allocation6 + $0x268] sm:$0xff]
    %v3577 = vld [vmem:[#allocation6 + $0x270] sm:$0xff]
    %v3578 = vld [vmem:[#allocation6 + $0x278] sm:$0xff]
    %v3579 = vld [vmem:[#allocation6 + $0x280] sm:$0xff]
    %v3580 = vld [vmem:[#allocation6 + $0x288] sm:$0xff]
    %v3581 = vld [vmem:[#allocation6 + $0x290] sm:$0xff]
    %v3582 = vld [vmem:[#allocation6 + $0x298] sm:$0xff]
    %v3583 = vld [vmem:[#allocation6 + $0x2a0] sm:$0xff]
    %v3584 = vld [vmem:[#allocation6 + $0x2a8] sm:$0xff]
    %v3585 = vld [vmem:[#allocation6 + $0x2b0] sm:$0xff]
    %v3586 = vld [vmem:[#allocation6 + $0x2b8] sm:$0xff]
    %v3587 = vld [vmem:[#allocation6 + $0x2c0] sm:$0xff]
    %v3588 = vld [vmem:[#allocation6 + $0x2c8] sm:$0xff]
    %v3589 = vld [vmem:[#allocation6 + $0x2d0] sm:$0xff]
    %v3590 = vld [vmem:[#allocation6 + $0x2d8] sm:$0xff]
    %v3591 = vld [vmem:[#allocation6 + $0x2e0] sm:$0xff]
    %v3592 = vld [vmem:[#allocation6 + $0x2e8] sm:$0xff]
    %v3593 = vld [vmem:[#allocation6 + $0x2f0] sm:$0xff]
    %v3594 = vld [vmem:[#allocation6 + $0x2f8] sm:$0xff]
    %v3595 = vld [vmem:[#allocation6 + $0x300] sm:$0xff]
    %v3596 = vld [vmem:[#allocation6 + $0x308] sm:$0xff]
    %v3597 = vld [vmem:[#allocation6 + $0x310] sm:$0xff]
    %v3598 = vld [vmem:[#allocation6 + $0x318] sm:$0xff]
    %v3599 = vld [vmem:[#allocation6 + $0x320] sm:$0xff]
    %v3600 = vld [vmem:[#allocation6 + $0x328] sm:$0xff]
    %v3601 = vld [vmem:[#allocation6 + $0x330] sm:$0xff]
    %v3602 = vld [vmem:[#allocation6 + $0x338] sm:$0xff]
    %v3603 = vld [vmem:[#allocation6 + $0x340] sm:$0xff]
    %v3604 = vld [vmem:[#allocation6 + $0x348] sm:$0xff]
    %v3605 = vld [vmem:[#allocation6 + $0x350] sm:$0xff]
    %v3606 = vld [vmem:[#allocation6 + $0x358] sm:$0xff]
    %v3607 = vld [vmem:[#allocation6 + $0x360] sm:$0xff]
    %v3608 = vld [vmem:[#allocation6 + $0x368] sm:$0xff]
    %v3609 = vld [vmem:[#allocation6 + $0x370] sm:$0xff]
    %v3610 = vld [vmem:[#allocation6 + $0x378] sm:$0xff]
    %v3611 = vld [vmem:[#allocation6 + $0x380] sm:$0xff]
    %v3612 = vld [vmem:[#allocation6 + $0x388] sm:$0xff]
    %v3613 = vld [vmem:[#allocation6 + $0x390] sm:$0xff]
    %v3614 = vld [vmem:[#allocation6 + $0x398] sm:$0xff]
    %v3615 = vld [vmem:[#allocation6 + $0x3a0] sm:$0xff]
    %v3616 = vld [vmem:[#allocation6 + $0x3a8] sm:$0xff]
    %v3617 = vld [vmem:[#allocation6 + $0x3b0] sm:$0xff]
    %v3618 = vld [vmem:[#allocation6 + $0x3b8] sm:$0xff]
    %v3619 = vld [vmem:[#allocation6 + $0x3c0] sm:$0xff]
    %v3620 = vld [vmem:[#allocation6 + $0x3c8] sm:$0xff]
    %v3621 = vld [vmem:[#allocation6 + $0x3d0] sm:$0xff]
    %v3622 = vld [vmem:[#allocation6 + $0x3d8] sm:$0xff]
    %v3623 = vld [vmem:[#allocation6 + $0x3e0] sm:$0xff]
    %v3624 = vld [vmem:[#allocation6 + $0x3e8] sm:$0xff]
    %v3625 = vld [vmem:[#allocation6 + $0x3f0] sm:$0xff]
    %v3626 = vld [vmem:[#allocation6 + $0x3f8] sm:$0xff]
    %v3627 = vld [vmem:[#allocation6 + $0x400] sm:$0xff]
    %v3628 = vld [vmem:[#allocation6 + $0x408] sm:$0xff]
    %v3629 = vld [vmem:[#allocation6 + $0x410] sm:$0xff]
    %v3630 = vld [vmem:[#allocation6 + $0x418] sm:$0xff]
    %v3631 = vld [vmem:[#allocation6 + $0x420] sm:$0xff]
    %v3632 = vld [vmem:[#allocation6 + $0x428] sm:$0xff]
    %v3633 = vld [vmem:[#allocation6 + $0x430] sm:$0xff]
    %v3634 = vld [vmem:[#allocation6 + $0x438] sm:$0xff]
    %v3635 = vld [vmem:[#allocation6 + $0x440] sm:$0xff]
    %v3636 = vld [vmem:[#allocation6 + $0x448] sm:$0xff]
    %v3637 = vld [vmem:[#allocation6 + $0x450] sm:$0xff]
    %v3638 = vld [vmem:[#allocation6 + $0x458] sm:$0xff]
    %v3639 = vld [vmem:[#allocation6 + $0x460] sm:$0xff]
    %v3640 = vld [vmem:[#allocation6 + $0x468] sm:$0xff]
    %v3641 = vld [vmem:[#allocation6 + $0x470] sm:$0xff]
    %v3642 = vld [vmem:[#allocation6 + $0x478] sm:$0xff]
    %v3643 = vld [vmem:[#allocation6 + $0x480] sm:$0xff]
    %v3644 = vld [vmem:[#allocation6 + $0x488] sm:$0xff]
    %v3645 = vld [vmem:[#allocation6 + $0x490] sm:$0xff]
    %v3646 = vld [vmem:[#allocation6 + $0x498] sm:$0xff]
    %v3647 = vld [vmem:[#allocation6 + $0x4a0] sm:$0xff]
    %v3648 = vld [vmem:[#allocation6 + $0x4a8] sm:$0xff]
    %v3649 = vld [vmem:[#allocation6 + $0x4b0] sm:$0xff]
    %v3650 = vld [vmem:[#allocation6 + $0x4b8] sm:$0xff]
    %v3651 = vld [vmem:[#allocation6 + $0x4c0] sm:$0xff]
    %v3652 = vld [vmem:[#allocation6 + $0x4c8] sm:$0xff]
    %v3653 = vld [vmem:[#allocation6 + $0x4d0] sm:$0xff]
    %v3654 = vld [vmem:[#allocation6 + $0x4d8] sm:$0xff]
    %v3655 = vld [vmem:[#allocation6 + $0x4e0] sm:$0xff]
    %v3656 = vld [vmem:[#allocation6 + $0x4e8] sm:$0xff]
    %v3657 = vld [vmem:[#allocation6 + $0x4f0] sm:$0xff]
    %v3658 = vld [vmem:[#allocation6 + $0x4f8] sm:$0xff]
    %v3659 = vld [vmem:[#allocation6 + $0x500] sm:$0xff]
    %v3660 = vld [vmem:[#allocation6 + $0x508] sm:$0xff]
    %v3661 = vld [vmem:[#allocation6 + $0x510] sm:$0xff]
    %v3662 = vld [vmem:[#allocation6 + $0x518] sm:$0xff]
    %v3663 = vld [vmem:[#allocation6 + $0x520] sm:$0xff]
    %v3664 = vld [vmem:[#allocation6 + $0x528] sm:$0xff]
    %v3665 = vld [vmem:[#allocation6 + $0x530] sm:$0xff]
    %v3666 = vld [vmem:[#allocation6 + $0x538] sm:$0xff]
    %v3667 = vld [vmem:[#allocation6 + $0x540] sm:$0xff]
    %v3668 = vld [vmem:[#allocation6 + $0x548] sm:$0xff]
    %v3669 = vld [vmem:[#allocation6 + $0x550] sm:$0xff]
    %v3670 = vld [vmem:[#allocation6 + $0x558] sm:$0xff]
    %v3671 = vld [vmem:[#allocation6 + $0x560] sm:$0xff]
    %v3672 = vld [vmem:[#allocation6 + $0x568] sm:$0xff]
    %v3673 = vld [vmem:[#allocation6 + $0x570] sm:$0xff]
    %v3674 = vld [vmem:[#allocation6 + $0x578] sm:$0xff]
    %v3675 = vld [vmem:[#allocation6 + $0x580] sm:$0xff]
    %v3676 = vld [vmem:[#allocation6 + $0x588] sm:$0xff]
    %v3677 = vld [vmem:[#allocation6 + $0x590] sm:$0xff]
    %v3678 = vld [vmem:[#allocation6 + $0x598] sm:$0xff]
    %v3679 = vld [vmem:[#allocation6 + $0x5a0] sm:$0xff]
    %v3680 = vld [vmem:[#allocation6 + $0x5a8] sm:$0xff]
    %v3681 = vld [vmem:[#allocation6 + $0x5b0] sm:$0xff]
    %v3682 = vld [vmem:[#allocation6 + $0x5b8] sm:$0xff]
    %v3683 = vld [vmem:[#allocation6 + $0x5c0] sm:$0xff]
    %v3684 = vld [vmem:[#allocation6 + $0x5c8] sm:$0xff]
    %v3685 = vld [vmem:[#allocation6 + $0x5d0] sm:$0xff]
    %v3686 = vld [vmem:[#allocation6 + $0x5d8] sm:$0xff]
    %v3687 = vld [vmem:[#allocation6 + $0x5e0] sm:$0xff]
    %v3688 = vld [vmem:[#allocation6 + $0x5e8] sm:$0xff]
    %v3689 = vld [vmem:[#allocation6 + $0x5f0] sm:$0xff]
    %v3690 = vld [vmem:[#allocation6 + $0x5f8] sm:$0xff]
    %v3691 = vld [vmem:[#allocation6 + $0x600] sm:$0xff]
    %v3692 = vld [vmem:[#allocation6 + $0x608] sm:$0xff]
    %v3693 = vld [vmem:[#allocation6 + $0x610] sm:$0xff]
    %v3694 = vld [vmem:[#allocation6 + $0x618] sm:$0xff]
    %v3695 = vld [vmem:[#allocation6 + $0x620] sm:$0xff]
    %v3696 = vld [vmem:[#allocation6 + $0x628] sm:$0xff]
    %v3697 = vld [vmem:[#allocation6 + $0x630] sm:$0xff]
    %v3698 = vld [vmem:[#allocation6 + $0x638] sm:$0xff]
    %v3699 = vld [vmem:[#allocation6 + $0x640] sm:$0xff]
    %v3700 = vld [vmem:[#allocation6 + $0x648] sm:$0xff]
    %v3701 = vld [vmem:[#allocation6 + $0x650] sm:$0xff]
    %v3702 = vld [vmem:[#allocation6 + $0x658] sm:$0xff]
    %v3703 = vld [vmem:[#allocation6 + $0x660] sm:$0xff]
    %v3704 = vld [vmem:[#allocation6 + $0x668] sm:$0xff]
    %v3705 = vld [vmem:[#allocation6 + $0x670] sm:$0xff]
    %v3706 = vld [vmem:[#allocation6 + $0x678] sm:$0xff]
    %v3707 = vld [vmem:[#allocation6 + $0x680] sm:$0xff]
    %v3708 = vld [vmem:[#allocation6 + $0x688] sm:$0xff]
    %v3709 = vld [vmem:[#allocation6 + $0x690] sm:$0xff]
    %v3710 = vld [vmem:[#allocation6 + $0x698] sm:$0xff]
    %v3711 = vld [vmem:[#allocation6 + $0x6a0] sm:$0xff]
    %v3712 = vld [vmem:[#allocation6 + $0x6a8] sm:$0xff]
    %v3713 = vld [vmem:[#allocation6 + $0x6b0] sm:$0xff]
    %v3714 = vld [vmem:[#allocation6 + $0x6b8] sm:$0xff]
    %v3715 = vld [vmem:[#allocation6 + $0x6c0] sm:$0xff]
    %v3716 = vld [vmem:[#allocation6 + $0x6c8] sm:$0xff]
    %v3717 = vld [vmem:[#allocation6 + $0x6d0] sm:$0xff]
    %v3718 = vld [vmem:[#allocation6 + $0x6d8] sm:$0xff]
    %v3719 = vld [vmem:[#allocation6 + $0x6e0] sm:$0xff]
    %v3720 = vld [vmem:[#allocation6 + $0x6e8] sm:$0xff]
    %v3721 = vld [vmem:[#allocation6 + $0x6f0] sm:$0xff]
    %v3722 = vld [vmem:[#allocation6 + $0x6f8] sm:$0xff]
    %v3723 = vld [vmem:[#allocation6 + $0x700] sm:$0xff]
    %v3724 = vld [vmem:[#allocation6 + $0x708] sm:$0xff]
    %v3725 = vld [vmem:[#allocation6 + $0x710] sm:$0xff]
    %v3726 = vld [vmem:[#allocation6 + $0x718] sm:$0xff]
    %v3727 = vld [vmem:[#allocation6 + $0x720] sm:$0xff]
    %v3728 = vld [vmem:[#allocation6 + $0x728] sm:$0xff]
    %v3729 = vld [vmem:[#allocation6 + $0x730] sm:$0xff]
    %v3730 = vld [vmem:[#allocation6 + $0x738] sm:$0xff]
    %v3731 = vld [vmem:[#allocation6 + $0x740] sm:$0xff]
    %v3732 = vld [vmem:[#allocation6 + $0x748] sm:$0xff]
    %v3733 = vld [vmem:[#allocation6 + $0x750] sm:$0xff]
    %v3734 = vld [vmem:[#allocation6 + $0x758] sm:$0xff]
    %v3735 = vld [vmem:[#allocation6 + $0x760] sm:$0xff]
    %v3736 = vld [vmem:[#allocation6 + $0x768] sm:$0xff]
    %v3737 = vld [vmem:[#allocation6 + $0x770] sm:$0xff]
    %v3738 = vld [vmem:[#allocation6 + $0x778] sm:$0xff]
    %v3739 = vld [vmem:[#allocation6 + $0x780] sm:$0xff]
    %v3740 = vld [vmem:[#allocation6 + $0x788] sm:$0xff]
    %v3741 = vld [vmem:[#allocation6 + $0x790] sm:$0xff]
    %v3742 = vld [vmem:[#allocation6 + $0x798] sm:$0xff]
    %v3743 = vld [vmem:[#allocation6 + $0x7a0] sm:$0xff]
    %v3744 = vld [vmem:[#allocation6 + $0x7a8] sm:$0xff]
    %v3745 = vld [vmem:[#allocation6 + $0x7b0] sm:$0xff]
    %v3746 = vld [vmem:[#allocation6 + $0x7b8] sm:$0xff]
    %v3747 = vld [vmem:[#allocation6 + $0x7c0] sm:$0xff]
    %v3748 = vld [vmem:[#allocation6 + $0x7c8] sm:$0xff]
    %v3749 = vld [vmem:[#allocation6 + $0x7d0] sm:$0xff]
    %v3750 = vld [vmem:[#allocation6 + $0x7d8] sm:$0xff]
    %v3751 = vld [vmem:[#allocation6 + $0x7e0] sm:$0xff]
    %v3752 = vld [vmem:[#allocation6 + $0x7e8] sm:$0xff]
    %v3753 = vld [vmem:[#allocation6 + $0x7f0] sm:$0xff]
    %v3754 = vld [vmem:[#allocation6 + $0x7f8] sm:$0xff]
    %v3763 = vunpack.c.l.b16 %v3491
    %v3764 = vunpack.c.h.b16 %v3491
    %v3765 = vunpack.c.l.b16 %v3492
    %v3766 = vunpack.c.h.b16 %v3492
    %v3767 = vunpack.c.l.b16 %v3493
    %v3768 = vunpack.c.h.b16 %v3493
    %v3769 = vunpack.c.l.b16 %v3494
    %v3770 = vunpack.c.h.b16 %v3494
    %v3771 = vunpack.c.l.b16 %v3495
    %v3772 = vunpack.c.h.b16 %v3495
    %v3773 = vunpack.c.l.b16 %v3496
    %v3774 = vunpack.c.h.b16 %v3496
    %v3775 = vunpack.c.l.b16 %v3497
    %v3776 = vunpack.c.h.b16 %v3497
    %v3777 = vunpack.c.l.b16 %v3498
    %v3778 = vunpack.c.h.b16 %v3498
    %v3779 = vpack.c.b16 %v3771, %v3763
    %v3780 = vpack.c.b16 %v3772, %v3764
    %v3781 = vpack.c.b16 %v3773, %v3765
    %v3782 = vpack.c.b16 %v3774, %v3766
    %v3783 = vpack.c.b16 %v3775, %v3767
    %v3784 = vpack.c.b16 %v3776, %v3768
    %v3785 = vpack.c.b16 %v3777, %v3769
    %v3786 = vpack.c.b16 %v3778, %v3770
    %v4051 = vunpack.c.l.b16 %v3499
    %v4052 = vunpack.c.h.b16 %v3499
    %v4053 = vunpack.c.l.b16 %v3500
    %v4054 = vunpack.c.h.b16 %v3500
    %v4055 = vunpack.c.l.b16 %v3501
    %v4056 = vunpack.c.h.b16 %v3501
    %v4057 = vunpack.c.l.b16 %v3502
    %v4058 = vunpack.c.h.b16 %v3502
    %v4059 = vunpack.c.l.b16 %v3503
    %v4060 = vunpack.c.h.b16 %v3503
    %v4061 = vunpack.c.l.b16 %v3504
    %v4062 = vunpack.c.h.b16 %v3504
    %v4063 = vunpack.c.l.b16 %v3505
    %v4064 = vunpack.c.h.b16 %v3505
    %v4065 = vunpack.c.l.b16 %v3506
    %v4066 = vunpack.c.h.b16 %v3506
    %v4067 = vunpack.c.l.b16 %v3507
    %v4068 = vunpack.c.h.b16 %v3507
    %v4069 = vunpack.c.l.b16 %v3508
    %v4070 = vunpack.c.h.b16 %v3508
    %v4071 = vunpack.c.l.b16 %v3509
    %v4072 = vunpack.c.h.b16 %v3509
    %v4073 = vunpack.c.l.b16 %v3510
    %v4074 = vunpack.c.h.b16 %v3510
    %v4075 = vunpack.c.l.b16 %v3511
    %v4076 = vunpack.c.h.b16 %v3511
    %v4077 = vunpack.c.l.b16 %v3512
    %v4078 = vunpack.c.h.b16 %v3512
    %v4079 = vunpack.c.l.b16 %v3513
    %v4080 = vunpack.c.h.b16 %v3513
    %v4081 = vunpack.c.l.b16 %v3514
    %v4082 = vunpack.c.h.b16 %v3514
    %v4083 = vunpack.c.l.b16 %v3515
    %v4084 = vunpack.c.h.b16 %v3515
    %v4085 = vunpack.c.l.b16 %v3516
    %v4086 = vunpack.c.h.b16 %v3516
    %v4087 = vunpack.c.l.b16 %v3517
    %v4088 = vunpack.c.h.b16 %v3517
    %v4089 = vunpack.c.l.b16 %v3518
    %v4090 = vunpack.c.h.b16 %v3518
    %v4091 = vunpack.c.l.b16 %v3519
    %v4092 = vunpack.c.h.b16 %v3519
    %v4093 = vunpack.c.l.b16 %v3520
    %v4094 = vunpack.c.h.b16 %v3520
    %v4095 = vunpack.c.l.b16 %v3521
    %v4096 = vunpack.c.h.b16 %v3521
    %v4097 = vunpack.c.l.b16 %v3522
    %v4098 = vunpack.c.h.b16 %v3522
    %v4099 = vunpack.c.l.b16 %v3523
    %v4100 = vunpack.c.h.b16 %v3523
    %v4101 = vunpack.c.l.b16 %v3524
    %v4102 = vunpack.c.h.b16 %v3524
    %v4103 = vunpack.c.l.b16 %v3525
    %v4104 = vunpack.c.h.b16 %v3525
    %v4105 = vunpack.c.l.b16 %v3526
    %v4106 = vunpack.c.h.b16 %v3526
    %v4107 = vunpack.c.l.b16 %v3527
    %v4108 = vunpack.c.h.b16 %v3527
    %v4109 = vunpack.c.l.b16 %v3528
    %v4110 = vunpack.c.h.b16 %v3528
    %v4111 = vunpack.c.l.b16 %v3529
    %v4112 = vunpack.c.h.b16 %v3529
    %v4113 = vunpack.c.l.b16 %v3530
    %v4114 = vunpack.c.h.b16 %v3530
    %v4115 = vunpack.c.l.b16 %v3531
    %v4116 = vunpack.c.h.b16 %v3531
    %v4117 = vunpack.c.l.b16 %v3532
    %v4118 = vunpack.c.h.b16 %v3532
    %v4119 = vunpack.c.l.b16 %v3533
    %v4120 = vunpack.c.h.b16 %v3533
    %v4121 = vunpack.c.l.b16 %v3534
    %v4122 = vunpack.c.h.b16 %v3534
    %v4123 = vunpack.c.l.b16 %v3535
    %v4124 = vunpack.c.h.b16 %v3535
    %v4125 = vunpack.c.l.b16 %v3536
    %v4126 = vunpack.c.h.b16 %v3536
    %v4127 = vunpack.c.l.b16 %v3537
    %v4128 = vunpack.c.h.b16 %v3537
    %v4129 = vunpack.c.l.b16 %v3538
    %v4130 = vunpack.c.h.b16 %v3538
    %v4131 = vunpack.c.l.b16 %v3539
    %v4132 = vunpack.c.h.b16 %v3539
    %v4133 = vunpack.c.l.b16 %v3540
    %v4134 = vunpack.c.h.b16 %v3540
    %v4135 = vunpack.c.l.b16 %v3541
    %v4136 = vunpack.c.h.b16 %v3541
    %v4137 = vunpack.c.l.b16 %v3542
    %v4138 = vunpack.c.h.b16 %v3542
    %v4139 = vunpack.c.l.b16 %v3543
    %v4140 = vunpack.c.h.b16 %v3543
    %v4141 = vunpack.c.l.b16 %v3544
    %v4142 = vunpack.c.h.b16 %v3544
    %v4143 = vunpack.c.l.b16 %v3545
    %v4144 = vunpack.c.h.b16 %v3545
    %v4145 = vunpack.c.l.b16 %v3546
    %v4146 = vunpack.c.h.b16 %v3546
    %v4147 = vunpack.c.l.b16 %v3547
    %v4148 = vunpack.c.h.b16 %v3547
    %v4149 = vunpack.c.l.b16 %v3548
    %v4150 = vunpack.c.h.b16 %v3548
    %v4151 = vunpack.c.l.b16 %v3549
    %v4152 = vunpack.c.h.b16 %v3549
    %v4153 = vunpack.c.l.b16 %v3550
    %v4154 = vunpack.c.h.b16 %v3550
    %v4155 = vunpack.c.l.b16 %v3551
    %v4156 = vunpack.c.h.b16 %v3551
    %v4157 = vunpack.c.l.b16 %v3552
    %v4158 = vunpack.c.h.b16 %v3552
    %v4159 = vunpack.c.l.b16 %v3553
    %v4160 = vunpack.c.h.b16 %v3553
    %v4161 = vunpack.c.l.b16 %v3554
    %v4162 = vunpack.c.h.b16 %v3554
    %v4163 = vunpack.c.l.b16 %v3555
    %v4164 = vunpack.c.h.b16 %v3555
    %v4165 = vunpack.c.l.b16 %v3556
    %v4166 = vunpack.c.h.b16 %v3556
    %v4167 = vunpack.c.l.b16 %v3557
    %v4168 = vunpack.c.h.b16 %v3557
    %v4169 = vunpack.c.l.b16 %v3558
    %v4170 = vunpack.c.h.b16 %v3558
    %v4171 = vunpack.c.l.b16 %v3559
    %v4172 = vunpack.c.h.b16 %v3559
    %v4173 = vunpack.c.l.b16 %v3560
    %v4174 = vunpack.c.h.b16 %v3560
    %v4175 = vunpack.c.l.b16 %v3561
    %v4176 = vunpack.c.h.b16 %v3561
    %v4177 = vunpack.c.l.b16 %v3562
    %v4178 = vunpack.c.h.b16 %v3562
    %v4179 = vunpack.c.l.b16 %v3563
    %v4180 = vunpack.c.h.b16 %v3563
    %v4181 = vunpack.c.l.b16 %v3564
    %v4182 = vunpack.c.h.b16 %v3564
    %v4183 = vunpack.c.l.b16 %v3565
    %v4184 = vunpack.c.h.b16 %v3565
    %v4185 = vunpack.c.l.b16 %v3566
    %v4186 = vunpack.c.h.b16 %v3566
    %v4187 = vunpack.c.l.b16 %v3567
    %v4188 = vunpack.c.h.b16 %v3567
    %v4189 = vunpack.c.l.b16 %v3568
    %v4190 = vunpack.c.h.b16 %v3568
    %v4191 = vunpack.c.l.b16 %v3569
    %v4192 = vunpack.c.h.b16 %v3569
    %v4193 = vunpack.c.l.b16 %v3570
    %v4194 = vunpack.c.h.b16 %v3570
    %v4195 = vunpack.c.l.b16 %v3571
    %v4196 = vunpack.c.h.b16 %v3571
    %v4197 = vunpack.c.l.b16 %v3572
    %v4198 = vunpack.c.h.b16 %v3572
    %v4199 = vunpack.c.l.b16 %v3573
    %v4200 = vunpack.c.h.b16 %v3573
    %v4201 = vunpack.c.l.b16 %v3574
    %v4202 = vunpack.c.h.b16 %v3574
    %v4203 = vunpack.c.l.b16 %v3575
    %v4204 = vunpack.c.h.b16 %v3575
    %v4205 = vunpack.c.l.b16 %v3576
    %v4206 = vunpack.c.h.b16 %v3576
    %v4207 = vunpack.c.l.b16 %v3577
    %v4208 = vunpack.c.h.b16 %v3577
    %v4209 = vunpack.c.l.b16 %v3578
    %v4210 = vunpack.c.h.b16 %v3578
    %v4211 = vunpack.c.l.b16 %v3579
    %v4212 = vunpack.c.h.b16 %v3579
    %v4213 = vunpack.c.l.b16 %v3580
    %v4214 = vunpack.c.h.b16 %v3580
    %v4215 = vunpack.c.l.b16 %v3581
    %v4216 = vunpack.c.h.b16 %v3581
    %v4217 = vunpack.c.l.b16 %v3582
    %v4218 = vunpack.c.h.b16 %v3582
    %v4219 = vunpack.c.l.b16 %v3583
    %v4220 = vunpack.c.h.b16 %v3583
    %v4221 = vunpack.c.l.b16 %v3584
    %v4222 = vunpack.c.h.b16 %v3584
    %v4223 = vunpack.c.l.b16 %v3585
    %v4224 = vunpack.c.h.b16 %v3585
    %v4225 = vunpack.c.l.b16 %v3586
    %v4226 = vunpack.c.h.b16 %v3586
    %v4227 = vunpack.c.l.b16 %v3587
    %v4228 = vunpack.c.h.b16 %v3587
    %v4229 = vunpack.c.l.b16 %v3588
    %v4230 = vunpack.c.h.b16 %v3588
    %v4231 = vunpack.c.l.b16 %v3589
    %v4232 = vunpack.c.h.b16 %v3589
    %v4233 = vunpack.c.l.b16 %v3590
    %v4234 = vunpack.c.h.b16 %v3590
    %v4235 = vunpack.c.l.b16 %v3591
    %v4236 = vunpack.c.h.b16 %v3591
    %v4237 = vunpack.c.l.b16 %v3592
    %v4238 = vunpack.c.h.b16 %v3592
    %v4239 = vunpack.c.l.b16 %v3593
    %v4240 = vunpack.c.h.b16 %v3593
    %v4241 = vunpack.c.l.b16 %v3594
    %v4242 = vunpack.c.h.b16 %v3594
    %v4243 = vunpack.c.l.b16 %v3595
    %v4244 = vunpack.c.h.b16 %v3595
    %v4245 = vunpack.c.l.b16 %v3596
    %v4246 = vunpack.c.h.b16 %v3596
    %v4247 = vunpack.c.l.b16 %v3597
    %v4248 = vunpack.c.h.b16 %v3597
    %v4249 = vunpack.c.l.b16 %v3598
    %v4250 = vunpack.c.h.b16 %v3598
    %v4251 = vunpack.c.l.b16 %v3599
    %v4252 = vunpack.c.h.b16 %v3599
    %v4253 = vunpack.c.l.b16 %v3600
    %v4254 = vunpack.c.h.b16 %v3600
    %v4255 = vunpack.c.l.b16 %v3601
    %v4256 = vunpack.c.h.b16 %v3601
    %v4257 = vunpack.c.l.b16 %v3602
    %v4258 = vunpack.c.h.b16 %v3602
    %v4259 = vunpack.c.l.b16 %v3603
    %v4260 = vunpack.c.h.b16 %v3603
    %v4261 = vunpack.c.l.b16 %v3604
    %v4262 = vunpack.c.h.b16 %v3604
    %v4263 = vunpack.c.l.b16 %v3605
    %v4264 = vunpack.c.h.b16 %v3605
    %v4265 = vunpack.c.l.b16 %v3606
    %v4266 = vunpack.c.h.b16 %v3606
    %v4267 = vunpack.c.l.b16 %v3607
    %v4268 = vunpack.c.h.b16 %v3607
    %v4269 = vunpack.c.l.b16 %v3608
    %v4270 = vunpack.c.h.b16 %v3608
    %v4271 = vunpack.c.l.b16 %v3609
    %v4272 = vunpack.c.h.b16 %v3609
    %v4273 = vunpack.c.l.b16 %v3610
    %v4274 = vunpack.c.h.b16 %v3610
    %v4275 = vunpack.c.l.b16 %v3611
    %v4276 = vunpack.c.h.b16 %v3611
    %v4277 = vunpack.c.l.b16 %v3612
    %v4278 = vunpack.c.h.b16 %v3612
    %v4279 = vunpack.c.l.b16 %v3613
    %v4280 = vunpack.c.h.b16 %v3613
    %v4281 = vunpack.c.l.b16 %v3614
    %v4282 = vunpack.c.h.b16 %v3614
    %v4283 = vunpack.c.l.b16 %v3615
    %v4284 = vunpack.c.h.b16 %v3615
    %v4285 = vunpack.c.l.b16 %v3616
    %v4286 = vunpack.c.h.b16 %v3616
    %v4287 = vunpack.c.l.b16 %v3617
    %v4288 = vunpack.c.h.b16 %v3617
    %v4289 = vunpack.c.l.b16 %v3618
    %v4290 = vunpack.c.h.b16 %v3618
    %v4291 = vunpack.c.l.b16 %v3619
    %v4292 = vunpack.c.h.b16 %v3619
    %v4293 = vunpack.c.l.b16 %v3620
    %v4294 = vunpack.c.h.b16 %v3620
    %v4295 = vunpack.c.l.b16 %v3621
    %v4296 = vunpack.c.h.b16 %v3621
    %v4297 = vunpack.c.l.b16 %v3622
    %v4298 = vunpack.c.h.b16 %v3622
    %v4299 = vunpack.c.l.b16 %v3623
    %v4300 = vunpack.c.h.b16 %v3623
    %v4301 = vunpack.c.l.b16 %v3624
    %v4302 = vunpack.c.h.b16 %v3624
    %v4303 = vunpack.c.l.b16 %v3625
    %v4304 = vunpack.c.h.b16 %v3625
    %v4305 = vunpack.c.l.b16 %v3626
    %v4306 = vunpack.c.h.b16 %v3626
    %v4307 = vunpack.c.l.b16 %v3627
    %v4308 = vunpack.c.h.b16 %v3627
    %v4309 = vunpack.c.l.b16 %v3628
    %v4310 = vunpack.c.h.b16 %v3628
    %v4311 = vunpack.c.l.b16 %v3629
    %v4312 = vunpack.c.h.b16 %v3629
    %v4313 = vunpack.c.l.b16 %v3630
    %v4314 = vunpack.c.h.b16 %v3630
    %v4315 = vunpack.c.l.b16 %v3631
    %v4316 = vunpack.c.h.b16 %v3631
    %v4317 = vunpack.c.l.b16 %v3632
    %v4318 = vunpack.c.h.b16 %v3632
    %v4319 = vunpack.c.l.b16 %v3633
    %v4320 = vunpack.c.h.b16 %v3633
    %v4321 = vunpack.c.l.b16 %v3634
    %v4322 = vunpack.c.h.b16 %v3634
    %v4323 = vunpack.c.l.b16 %v3635
    %v4324 = vunpack.c.h.b16 %v3635
    %v4325 = vunpack.c.l.b16 %v3636
    %v4326 = vunpack.c.h.b16 %v3636
    %v4327 = vunpack.c.l.b16 %v3637
    %v4328 = vunpack.c.h.b16 %v3637
    %v4329 = vunpack.c.l.b16 %v3638
    %v4330 = vunpack.c.h.b16 %v3638
    %v4331 = vunpack.c.l.b16 %v3639
    %v4332 = vunpack.c.h.b16 %v3639
    %v4333 = vunpack.c.l.b16 %v3640
    %v4334 = vunpack.c.h.b16 %v3640
    %v4335 = vunpack.c.l.b16 %v3641
    %v4336 = vunpack.c.h.b16 %v3641
    %v4337 = vunpack.c.l.b16 %v3642
    %v4338 = vunpack.c.h.b16 %v3642
    %v4339 = vunpack.c.l.b16 %v3643
    %v4340 = vunpack.c.h.b16 %v3643
    %v4341 = vunpack.c.l.b16 %v3644
    %v4342 = vunpack.c.h.b16 %v3644
    %v4343 = vunpack.c.l.b16 %v3645
    %v4344 = vunpack.c.h.b16 %v3645
    %v4345 = vunpack.c.l.b16 %v3646
    %v4346 = vunpack.c.h.b16 %v3646
    %v4347 = vunpack.c.l.b16 %v3647
    %v4348 = vunpack.c.h.b16 %v3647
    %v4349 = vunpack.c.l.b16 %v3648
    %v4350 = vunpack.c.h.b16 %v3648
    %v4351 = vunpack.c.l.b16 %v3649
    %v4352 = vunpack.c.h.b16 %v3649
    %v4353 = vunpack.c.l.b16 %v3650
    %v4354 = vunpack.c.h.b16 %v3650
    %v4355 = vunpack.c.l.b16 %v3651
    %v4356 = vunpack.c.h.b16 %v3651
    %v4357 = vunpack.c.l.b16 %v3652
    %v4358 = vunpack.c.h.b16 %v3652
    %v4359 = vunpack.c.l.b16 %v3653
    %v4360 = vunpack.c.h.b16 %v3653
    %v4361 = vunpack.c.l.b16 %v3654
    %v4362 = vunpack.c.h.b16 %v3654
    %v4363 = vunpack.c.l.b16 %v3655
    %v4364 = vunpack.c.h.b16 %v3655
    %v4365 = vunpack.c.l.b16 %v3656
    %v4366 = vunpack.c.h.b16 %v3656
    %v4367 = vunpack.c.l.b16 %v3657
    %v4368 = vunpack.c.h.b16 %v3657
    %v4369 = vunpack.c.l.b16 %v3658
    %v4370 = vunpack.c.h.b16 %v3658
    %v4371 = vunpack.c.l.b16 %v3659
    %v4372 = vunpack.c.h.b16 %v3659
    %v4373 = vunpack.c.l.b16 %v3660
    %v4374 = vunpack.c.h.b16 %v3660
    %v4375 = vunpack.c.l.b16 %v3661
    %v4376 = vunpack.c.h.b16 %v3661
    %v4377 = vunpack.c.l.b16 %v3662
    %v4378 = vunpack.c.h.b16 %v3662
    %v4379 = vunpack.c.l.b16 %v3663
    %v4380 = vunpack.c.h.b16 %v3663
    %v4381 = vunpack.c.l.b16 %v3664
    %v4382 = vunpack.c.h.b16 %v3664
    %v4383 = vunpack.c.l.b16 %v3665
    %v4384 = vunpack.c.h.b16 %v3665
    %v4385 = vunpack.c.l.b16 %v3666
    %v4386 = vunpack.c.h.b16 %v3666
    %v4387 = vunpack.c.l.b16 %v3667
    %v4388 = vunpack.c.h.b16 %v3667
    %v4389 = vunpack.c.l.b16 %v3668
    %v4390 = vunpack.c.h.b16 %v3668
    %v4391 = vunpack.c.l.b16 %v3669
    %v4392 = vunpack.c.h.b16 %v3669
    %v4393 = vunpack.c.l.b16 %v3670
    %v4394 = vunpack.c.h.b16 %v3670
    %v4395 = vunpack.c.l.b16 %v3671
    %v4396 = vunpack.c.h.b16 %v3671
    %v4397 = vunpack.c.l.b16 %v3672
    %v4398 = vunpack.c.h.b16 %v3672
    %v4399 = vunpack.c.l.b16 %v3673
    %v4400 = vunpack.c.h.b16 %v3673
    %v4401 = vunpack.c.l.b16 %v3674
    %v4402 = vunpack.c.h.b16 %v3674
    %v4403 = vunpack.c.l.b16 %v3675
    %v4404 = vunpack.c.h.b16 %v3675
    %v4405 = vunpack.c.l.b16 %v3676
    %v4406 = vunpack.c.h.b16 %v3676
    %v4407 = vunpack.c.l.b16 %v3677
    %v4408 = vunpack.c.h.b16 %v3677
    %v4409 = vunpack.c.l.b16 %v3678
    %v4410 = vunpack.c.h.b16 %v3678
    %v4411 = vunpack.c.l.b16 %v3679
    %v4412 = vunpack.c.h.b16 %v3679
    %v4413 = vunpack.c.l.b16 %v3680
    %v4414 = vunpack.c.h.b16 %v3680
    %v4415 = vunpack.c.l.b16 %v3681
    %v4416 = vunpack.c.h.b16 %v3681
    %v4417 = vunpack.c.l.b16 %v3682
    %v4418 = vunpack.c.h.b16 %v3682
    %v4419 = vunpack.c.l.b16 %v3683
    %v4420 = vunpack.c.h.b16 %v3683
    %v4421 = vunpack.c.l.b16 %v3684
    %v4422 = vunpack.c.h.b16 %v3684
    %v4423 = vunpack.c.l.b16 %v3685
    %v4424 = vunpack.c.h.b16 %v3685
    %v4425 = vunpack.c.l.b16 %v3686
    %v4426 = vunpack.c.h.b16 %v3686
    %v4427 = vunpack.c.l.b16 %v3687
    %v4428 = vunpack.c.h.b16 %v3687
    %v4429 = vunpack.c.l.b16 %v3688
    %v4430 = vunpack.c.h.b16 %v3688
    %v4431 = vunpack.c.l.b16 %v3689
    %v4432 = vunpack.c.h.b16 %v3689
    %v4433 = vunpack.c.l.b16 %v3690
    %v4434 = vunpack.c.h.b16 %v3690
    %v4435 = vunpack.c.l.b16 %v3691
    %v4436 = vunpack.c.h.b16 %v3691
    %v4437 = vunpack.c.l.b16 %v3692
    %v4438 = vunpack.c.h.b16 %v3692
    %v4439 = vunpack.c.l.b16 %v3693
    %v4440 = vunpack.c.h.b16 %v3693
    %v4441 = vunpack.c.l.b16 %v3694
    %v4442 = vunpack.c.h.b16 %v3694
    %v4443 = vunpack.c.l.b16 %v3695
    %v4444 = vunpack.c.h.b16 %v3695
    %v4445 = vunpack.c.l.b16 %v3696
    %v4446 = vunpack.c.h.b16 %v3696
    %v4447 = vunpack.c.l.b16 %v3697
    %v4448 = vunpack.c.h.b16 %v3697
    %v4449 = vunpack.c.l.b16 %v3698
    %v4450 = vunpack.c.h.b16 %v3698
    %v4451 = vunpack.c.l.b16 %v3699
    %v4452 = vunpack.c.h.b16 %v3699
    %v4453 = vunpack.c.l.b16 %v3700
    %v4454 = vunpack.c.h.b16 %v3700
    %v4455 = vunpack.c.l.b16 %v3701
    %v4456 = vunpack.c.h.b16 %v3701
    %v4457 = vunpack.c.l.b16 %v3702
    %v4458 = vunpack.c.h.b16 %v3702
    %v4459 = vunpack.c.l.b16 %v3703
    %v4460 = vunpack.c.h.b16 %v3703
    %v4461 = vunpack.c.l.b16 %v3704
    %v4462 = vunpack.c.h.b16 %v3704
    %v4463 = vunpack.c.l.b16 %v3705
    %v4464 = vunpack.c.h.b16 %v3705
    %v4465 = vunpack.c.l.b16 %v3706
    %v4466 = vunpack.c.h.b16 %v3706
    %v4467 = vunpack.c.l.b16 %v3707
    %v4468 = vunpack.c.h.b16 %v3707
    %v4469 = vunpack.c.l.b16 %v3708
    %v4470 = vunpack.c.h.b16 %v3708
    %v4471 = vunpack.c.l.b16 %v3709
    %v4472 = vunpack.c.h.b16 %v3709
    %v4473 = vunpack.c.l.b16 %v3710
    %v4474 = vunpack.c.h.b16 %v3710
    %v4475 = vunpack.c.l.b16 %v3711
    %v4476 = vunpack.c.h.b16 %v3711
    %v4477 = vunpack.c.l.b16 %v3712
    %v4478 = vunpack.c.h.b16 %v3712
    %v4479 = vunpack.c.l.b16 %v3713
    %v4480 = vunpack.c.h.b16 %v3713
    %v4481 = vunpack.c.l.b16 %v3714
    %v4482 = vunpack.c.h.b16 %v3714
    %v4483 = vunpack.c.l.b16 %v3715
    %v4484 = vunpack.c.h.b16 %v3715
    %v4485 = vunpack.c.l.b16 %v3716
    %v4486 = vunpack.c.h.b16 %v3716
    %v4487 = vunpack.c.l.b16 %v3717
    %v4488 = vunpack.c.h.b16 %v3717
    %v4489 = vunpack.c.l.b16 %v3718
    %v4490 = vunpack.c.h.b16 %v3718
    %v4491 = vunpack.c.l.b16 %v3719
    %v4492 = vunpack.c.h.b16 %v3719
    %v4493 = vunpack.c.l.b16 %v3720
    %v4494 = vunpack.c.h.b16 %v3720
    %v4495 = vunpack.c.l.b16 %v3721
    %v4496 = vunpack.c.h.b16 %v3721
    %v4497 = vunpack.c.l.b16 %v3722
    %v4498 = vunpack.c.h.b16 %v3722
    %v4499 = vunpack.c.l.b16 %v3723
    %v4500 = vunpack.c.h.b16 %v3723
    %v4501 = vunpack.c.l.b16 %v3724
    %v4502 = vunpack.c.h.b16 %v3724
    %v4503 = vunpack.c.l.b16 %v3725
    %v4504 = vunpack.c.h.b16 %v3725
    %v4505 = vunpack.c.l.b16 %v3726
    %v4506 = vunpack.c.h.b16 %v3726
    %v4507 = vunpack.c.l.b16 %v3727
    %v4508 = vunpack.c.h.b16 %v3727
    %v4509 = vunpack.c.l.b16 %v3728
    %v4510 = vunpack.c.h.b16 %v3728
    %v4511 = vunpack.c.l.b16 %v3729
    %v4512 = vunpack.c.h.b16 %v3729
    %v4513 = vunpack.c.l.b16 %v3730
    %v4514 = vunpack.c.h.b16 %v3730
    %v4515 = vunpack.c.l.b16 %v3731
    %v4516 = vunpack.c.h.b16 %v3731
    %v4517 = vunpack.c.l.b16 %v3732
    %v4518 = vunpack.c.h.b16 %v3732
    %v4519 = vunpack.c.l.b16 %v3733
    %v4520 = vunpack.c.h.b16 %v3733
    %v4521 = vunpack.c.l.b16 %v3734
    %v4522 = vunpack.c.h.b16 %v3734
    %v4523 = vunpack.c.l.b16 %v3735
    %v4524 = vunpack.c.h.b16 %v3735
    %v4525 = vunpack.c.l.b16 %v3736
    %v4526 = vunpack.c.h.b16 %v3736
    %v4527 = vunpack.c.l.b16 %v3737
    %v4528 = vunpack.c.h.b16 %v3737
    %v4529 = vunpack.c.l.b16 %v3738
    %v4530 = vunpack.c.h.b16 %v3738
    %v4531 = vunpack.c.l.b16 %v3739
    %v4532 = vunpack.c.h.b16 %v3739
    %v4533 = vunpack.c.l.b16 %v3740
    %v4534 = vunpack.c.h.b16 %v3740
    %v4535 = vunpack.c.l.b16 %v3741
    %v4536 = vunpack.c.h.b16 %v3741
    %v4537 = vunpack.c.l.b16 %v3742
    %v4538 = vunpack.c.h.b16 %v3742
    %v4539 = vunpack.c.l.b16 %v3743
    %v4540 = vunpack.c.h.b16 %v3743
    %v4541 = vunpack.c.l.b16 %v3744
    %v4542 = vunpack.c.h.b16 %v3744
    %v4543 = vunpack.c.l.b16 %v3745
    %v4544 = vunpack.c.h.b16 %v3745
    %v4545 = vunpack.c.l.b16 %v3746
    %v4546 = vunpack.c.h.b16 %v3746
    %v4547 = vunpack.c.l.b16 %v3747
    %v4548 = vunpack.c.h.b16 %v3747
    %v4549 = vunpack.c.l.b16 %v3748
    %v4550 = vunpack.c.h.b16 %v3748
    %v4551 = vunpack.c.l.b16 %v3749
    %v4552 = vunpack.c.h.b16 %v3749
    %v4553 = vunpack.c.l.b16 %v3750
    %v4554 = vunpack.c.h.b16 %v3750
    %v4555 = vunpack.c.l.b16 %v3751
    %v4556 = vunpack.c.h.b16 %v3751
    %v4557 = vunpack.c.l.b16 %v3752
    %v4558 = vunpack.c.h.b16 %v3752
    %v4559 = vunpack.c.l.b16 %v3753
    %v4560 = vunpack.c.h.b16 %v3753
    %v4561 = vunpack.c.l.b16 %v3754
    %v4562 = vunpack.c.h.b16 %v3754
    %v4563 = vpack.c.b16 %v4055, %v4051
    %v4564 = vpack.c.b16 %v4056, %v4052
    %v4565 = vpack.c.b16 %v4057, %v4053
    %v4566 = vpack.c.b16 %v4058, %v4054
    %v4567 = vpack.c.b16 %v4063, %v4059
    %v4568 = vpack.c.b16 %v4064, %v4060
    %v4569 = vpack.c.b16 %v4065, %v4061
    %v4570 = vpack.c.b16 %v4066, %v4062
    %v4571 = vpack.c.b16 %v4071, %v4067
    %v4572 = vpack.c.b16 %v4072, %v4068
    %v4573 = vpack.c.b16 %v4073, %v4069
    %v4574 = vpack.c.b16 %v4074, %v4070
    %v4575 = vpack.c.b16 %v4079, %v4075
    %v4576 = vpack.c.b16 %v4080, %v4076
    %v4577 = vpack.c.b16 %v4081, %v4077
    %v4578 = vpack.c.b16 %v4082, %v4078
    %v4579 = vpack.c.b16 %v4087, %v4083
    %v4580 = vpack.c.b16 %v4088, %v4084
    %v4581 = vpack.c.b16 %v4089, %v4085
    %v4582 = vpack.c.b16 %v4090, %v4086
    %v4583 = vpack.c.b16 %v4095, %v4091
    %v4584 = vpack.c.b16 %v4096, %v4092
    %v4585 = vpack.c.b16 %v4097, %v4093
    %v4586 = vpack.c.b16 %v4098, %v4094
    %v4587 = vpack.c.b16 %v4103, %v4099
    %v4588 = vpack.c.b16 %v4104, %v4100
    %v4589 = vpack.c.b16 %v4105, %v4101
    %v4590 = vpack.c.b16 %v4106, %v4102
    %v4591 = vpack.c.b16 %v4111, %v4107
    %v4592 = vpack.c.b16 %v4112, %v4108
    %v4593 = vpack.c.b16 %v4113, %v4109
    %v4594 = vpack.c.b16 %v4114, %v4110
    %v4595 = vpack.c.b16 %v4119, %v4115
    %v4596 = vpack.c.b16 %v4120, %v4116
    %v4597 = vpack.c.b16 %v4121, %v4117
    %v4598 = vpack.c.b16 %v4122, %v4118
    %v4599 = vpack.c.b16 %v4127, %v4123
    %v4600 = vpack.c.b16 %v4128, %v4124
    %v4601 = vpack.c.b16 %v4129, %v4125
    %v4602 = vpack.c.b16 %v4130, %v4126
    %v4603 = vpack.c.b16 %v4135, %v4131
    %v4604 = vpack.c.b16 %v4136, %v4132
    %v4605 = vpack.c.b16 %v4137, %v4133
    %v4606 = vpack.c.b16 %v4138, %v4134
    %v4607 = vpack.c.b16 %v4143, %v4139
    %v4608 = vpack.c.b16 %v4144, %v4140
    %v4609 = vpack.c.b16 %v4145, %v4141
    %v4610 = vpack.c.b16 %v4146, %v4142
    %v4611 = vpack.c.b16 %v4151, %v4147
    %v4612 = vpack.c.b16 %v4152, %v4148
    %v4613 = vpack.c.b16 %v4153, %v4149
    %v4614 = vpack.c.b16 %v4154, %v4150
    %v4615 = vpack.c.b16 %v4159, %v4155
    %v4616 = vpack.c.b16 %v4160, %v4156
    %v4617 = vpack.c.b16 %v4161, %v4157
    %v4618 = vpack.c.b16 %v4162, %v4158
    %v4619 = vpack.c.b16 %v4167, %v4163
    %v4620 = vpack.c.b16 %v4168, %v4164
    %v4621 = vpack.c.b16 %v4169, %v4165
    %v4622 = vpack.c.b16 %v4170, %v4166
    %v4623 = vpack.c.b16 %v4175, %v4171
    %v4624 = vpack.c.b16 %v4176, %v4172
    %v4625 = vpack.c.b16 %v4177, %v4173
    %v4626 = vpack.c.b16 %v4178, %v4174
    %v4627 = vpack.c.b16 %v4183, %v4179
    %v4628 = vpack.c.b16 %v4184, %v4180
    %v4629 = vpack.c.b16 %v4185, %v4181
    %v4630 = vpack.c.b16 %v4186, %v4182
    %v4631 = vpack.c.b16 %v4191, %v4187
    %v4632 = vpack.c.b16 %v4192, %v4188
    %v4633 = vpack.c.b16 %v4193, %v4189
    %v4634 = vpack.c.b16 %v4194, %v4190
    %v4635 = vpack.c.b16 %v4199, %v4195
    %v4636 = vpack.c.b16 %v4200, %v4196
    %v4637 = vpack.c.b16 %v4201, %v4197
    %v4638 = vpack.c.b16 %v4202, %v4198
    %v4639 = vpack.c.b16 %v4207, %v4203
    %v4640 = vpack.c.b16 %v4208, %v4204
    %v4641 = vpack.c.b16 %v4209, %v4205
    %v4642 = vpack.c.b16 %v4210, %v4206
    %v4643 = vpack.c.b16 %v4215, %v4211
    %v4644 = vpack.c.b16 %v4216, %v4212
    %v4645 = vpack.c.b16 %v4217, %v4213
    %v4646 = vpack.c.b16 %v4218, %v4214
    %v4647 = vpack.c.b16 %v4223, %v4219
    %v4648 = vpack.c.b16 %v4224, %v4220
    %v4649 = vpack.c.b16 %v4225, %v4221
    %v4650 = vpack.c.b16 %v4226, %v4222
    %v4651 = vpack.c.b16 %v4231, %v4227
    %v4652 = vpack.c.b16 %v4232, %v4228
    %v4653 = vpack.c.b16 %v4233, %v4229
    %v4654 = vpack.c.b16 %v4234, %v4230
    %v4655 = vpack.c.b16 %v4239, %v4235
    %v4656 = vpack.c.b16 %v4240, %v4236
    %v4657 = vpack.c.b16 %v4241, %v4237
    %v4658 = vpack.c.b16 %v4242, %v4238
    %v4659 = vpack.c.b16 %v4247, %v4243
    %v4660 = vpack.c.b16 %v4248, %v4244
    %v4661 = vpack.c.b16 %v4249, %v4245
    %v4662 = vpack.c.b16 %v4250, %v4246
    %v4663 = vpack.c.b16 %v4255, %v4251
    %v4664 = vpack.c.b16 %v4256, %v4252
    %v4665 = vpack.c.b16 %v4257, %v4253
    %v4666 = vpack.c.b16 %v4258, %v4254
    %v4667 = vpack.c.b16 %v4263, %v4259
    %v4668 = vpack.c.b16 %v4264, %v4260
    %v4669 = vpack.c.b16 %v4265, %v4261
    %v4670 = vpack.c.b16 %v4266, %v4262
    %v4671 = vpack.c.b16 %v4271, %v4267
    %v4672 = vpack.c.b16 %v4272, %v4268
    %v4673 = vpack.c.b16 %v4273, %v4269
    %v4674 = vpack.c.b16 %v4274, %v4270
    %v4675 = vpack.c.b16 %v4279, %v4275
    %v4676 = vpack.c.b16 %v4280, %v4276
    %v4677 = vpack.c.b16 %v4281, %v4277
    %v4678 = vpack.c.b16 %v4282, %v4278
    %v4679 = vpack.c.b16 %v4287, %v4283
    %v4680 = vpack.c.b16 %v4288, %v4284
    %v4681 = vpack.c.b16 %v4289, %v4285
    %v4682 = vpack.c.b16 %v4290, %v4286
    %v4683 = vpack.c.b16 %v4295, %v4291
    %v4684 = vpack.c.b16 %v4296, %v4292
    %v4685 = vpack.c.b16 %v4297, %v4293
    %v4686 = vpack.c.b16 %v4298, %v4294
    %v4687 = vpack.c.b16 %v4303, %v4299
    %v4688 = vpack.c.b16 %v4304, %v4300
    %v4689 = vpack.c.b16 %v4305, %v4301
    %v4690 = vpack.c.b16 %v4306, %v4302
    %v4691 = vpack.c.b16 %v4311, %v4307
    %v4692 = vpack.c.b16 %v4312, %v4308
    %v4693 = vpack.c.b16 %v4313, %v4309
    %v4694 = vpack.c.b16 %v4314, %v4310
    %v4695 = vpack.c.b16 %v4319, %v4315
    %v4696 = vpack.c.b16 %v4320, %v4316
    %v4697 = vpack.c.b16 %v4321, %v4317
    %v4698 = vpack.c.b16 %v4322, %v4318
    %v4699 = vpack.c.b16 %v4327, %v4323
    %v4700 = vpack.c.b16 %v4328, %v4324
    %v4701 = vpack.c.b16 %v4329, %v4325
    %v4702 = vpack.c.b16 %v4330, %v4326
    %v4703 = vpack.c.b16 %v4335, %v4331
    %v4704 = vpack.c.b16 %v4336, %v4332
    %v4705 = vpack.c.b16 %v4337, %v4333
    %v4706 = vpack.c.b16 %v4338, %v4334
    %v4707 = vpack.c.b16 %v4343, %v4339
    %v4708 = vpack.c.b16 %v4344, %v4340
    %v4709 = vpack.c.b16 %v4345, %v4341
    %v4710 = vpack.c.b16 %v4346, %v4342
    %v4711 = vpack.c.b16 %v4351, %v4347
    %v4712 = vpack.c.b16 %v4352, %v4348
    %v4713 = vpack.c.b16 %v4353, %v4349
    %v4714 = vpack.c.b16 %v4354, %v4350
    %v4715 = vpack.c.b16 %v4359, %v4355
    %v4716 = vpack.c.b16 %v4360, %v4356
    %v4717 = vpack.c.b16 %v4361, %v4357
    %v4718 = vpack.c.b16 %v4362, %v4358
    %v4719 = vpack.c.b16 %v4367, %v4363
    %v4720 = vpack.c.b16 %v4368, %v4364
    %v4721 = vpack.c.b16 %v4369, %v4365
    %v4722 = vpack.c.b16 %v4370, %v4366
    %v4723 = vpack.c.b16 %v4375, %v4371
    %v4724 = vpack.c.b16 %v4376, %v4372
    %v4725 = vpack.c.b16 %v4377, %v4373
    %v4726 = vpack.c.b16 %v4378, %v4374
    %v4727 = vpack.c.b16 %v4383, %v4379
    %v4728 = vpack.c.b16 %v4384, %v4380
    %v4729 = vpack.c.b16 %v4385, %v4381
    %v4730 = vpack.c.b16 %v4386, %v4382
    %v4731 = vpack.c.b16 %v4391, %v4387
    %v4732 = vpack.c.b16 %v4392, %v4388
    %v4733 = vpack.c.b16 %v4393, %v4389
    %v4734 = vpack.c.b16 %v4394, %v4390
    %v4735 = vpack.c.b16 %v4399, %v4395
    %v4736 = vpack.c.b16 %v4400, %v4396
    %v4737 = vpack.c.b16 %v4401, %v4397
    %v4738 = vpack.c.b16 %v4402, %v4398
    %v4739 = vpack.c.b16 %v4407, %v4403
    %v4740 = vpack.c.b16 %v4408, %v4404
    %v4741 = vpack.c.b16 %v4409, %v4405
    %v4742 = vpack.c.b16 %v4410, %v4406
    %v4743 = vpack.c.b16 %v4415, %v4411
    %v4744 = vpack.c.b16 %v4416, %v4412
    %v4745 = vpack.c.b16 %v4417, %v4413
    %v4746 = vpack.c.b16 %v4418, %v4414
    %v4747 = vpack.c.b16 %v4423, %v4419
    %v4748 = vpack.c.b16 %v4424, %v4420
    %v4749 = vpack.c.b16 %v4425, %v4421
    %v4750 = vpack.c.b16 %v4426, %v4422
    %v4751 = vpack.c.b16 %v4431, %v4427
    %v4752 = vpack.c.b16 %v4432, %v4428
    %v4753 = vpack.c.b16 %v4433, %v4429
    %v4754 = vpack.c.b16 %v4434, %v4430
    %v4755 = vpack.c.b16 %v4439, %v4435
    %v4756 = vpack.c.b16 %v4440, %v4436
    %v4757 = vpack.c.b16 %v4441, %v4437
    %v4758 = vpack.c.b16 %v4442, %v4438
    %v4759 = vpack.c.b16 %v4447, %v4443
    %v4760 = vpack.c.b16 %v4448, %v4444
    %v4761 = vpack.c.b16 %v4449, %v4445
    %v4762 = vpack.c.b16 %v4450, %v4446
    %v4763 = vpack.c.b16 %v4455, %v4451
    %v4764 = vpack.c.b16 %v4456, %v4452
    %v4765 = vpack.c.b16 %v4457, %v4453
    %v4766 = vpack.c.b16 %v4458, %v4454
    %v4767 = vpack.c.b16 %v4463, %v4459
    %v4768 = vpack.c.b16 %v4464, %v4460
    %v4769 = vpack.c.b16 %v4465, %v4461
    %v4770 = vpack.c.b16 %v4466, %v4462
    %v4771 = vpack.c.b16 %v4471, %v4467
    %v4772 = vpack.c.b16 %v4472, %v4468
    %v4773 = vpack.c.b16 %v4473, %v4469
    %v4774 = vpack.c.b16 %v4474, %v4470
    %v4775 = vpack.c.b16 %v4479, %v4475
    %v4776 = vpack.c.b16 %v4480, %v4476
    %v4777 = vpack.c.b16 %v4481, %v4477
    %v4778 = vpack.c.b16 %v4482, %v4478
    %v4779 = vpack.c.b16 %v4487, %v4483
    %v4780 = vpack.c.b16 %v4488, %v4484
    %v4781 = vpack.c.b16 %v4489, %v4485
    %v4782 = vpack.c.b16 %v4490, %v4486
    %v4783 = vpack.c.b16 %v4495, %v4491
    %v4784 = vpack.c.b16 %v4496, %v4492
    %v4785 = vpack.c.b16 %v4497, %v4493
    %v4786 = vpack.c.b16 %v4498, %v4494
    %v4787 = vpack.c.b16 %v4503, %v4499
    %v4788 = vpack.c.b16 %v4504, %v4500
    %v4789 = vpack.c.b16 %v4505, %v4501
    %v4790 = vpack.c.b16 %v4506, %v4502
    %v4791 = vpack.c.b16 %v4511, %v4507
    %v4792 = vpack.c.b16 %v4512, %v4508
    %v4793 = vpack.c.b16 %v4513, %v4509
    %v4794 = vpack.c.b16 %v4514, %v4510
    %v4795 = vpack.c.b16 %v4519, %v4515
    %v4796 = vpack.c.b16 %v4520, %v4516
    %v4797 = vpack.c.b16 %v4521, %v4517
    %v4798 = vpack.c.b16 %v4522, %v4518
    %v4799 = vpack.c.b16 %v4527, %v4523
    %v4800 = vpack.c.b16 %v4528, %v4524
    %v4801 = vpack.c.b16 %v4529, %v4525
    %v4802 = vpack.c.b16 %v4530, %v4526
    %v4803 = vpack.c.b16 %v4535, %v4531
    %v4804 = vpack.c.b16 %v4536, %v4532
    %v4805 = vpack.c.b16 %v4537, %v4533
    %v4806 = vpack.c.b16 %v4538, %v4534
    %v4807 = vpack.c.b16 %v4543, %v4539
    %v4808 = vpack.c.b16 %v4544, %v4540
    %v4809 = vpack.c.b16 %v4545, %v4541
    %v4810 = vpack.c.b16 %v4546, %v4542
    %v4811 = vpack.c.b16 %v4551, %v4547
    %v4812 = vpack.c.b16 %v4552, %v4548
    %v4813 = vpack.c.b16 %v4553, %v4549
    %v4814 = vpack.c.b16 %v4554, %v4550
    %v4815 = vpack.c.b16 %v4559, %v4555
    %v4816 = vpack.c.b16 %v4560, %v4556
    %v4817 = vpack.c.b16 %v4561, %v4557
    %v4818 = vpack.c.b16 %v4562, %v4558
    %5075 = vmatpush.bf16.msra.mxu0 %v4591
    %5076 = vmatpush.bf16.msra.mxu0 %v4587
    %5077 = vmatpush.bf16.msra.mxu0 %v4583
    %5078 = vmatpush.bf16.msra.mxu0 %v4579
    %5079 = vmatpush.bf16.msra.mxu0 %v4575
    %5080 = vmatpush.bf16.msra.mxu0 %v4571
    %5081 = vmatpush.bf16.msra.mxu0 %v4567
    %5082 = vmatpush.bf16.msra.mxu0 %v4563
    %5083 = vmatmul.bf16.gmra.mxu0 %v3779
    %v5084 = vpop.f32.mrf.mxu0
    %v5085 = vadd.f32 0.0, %v5084
    %v5086 = vpop.f32.mrf.mxu0
    %v5087 = vadd.f32 0.0, %v5086
    %5088 = vdwg.mxu0
    %5089 = vmatpush.bf16.msra.mxu0 %v4623
    %5090 = vmatpush.bf16.msra.mxu0 %v4619
    %5091 = vmatpush.bf16.msra.mxu0 %v4615
    %5092 = vmatpush.bf16.msra.mxu0 %v4611
    %5093 = vmatpush.bf16.msra.mxu0 %v4607
    %5094 = vmatpush.bf16.msra.mxu0 %v4603
    %5095 = vmatpush.bf16.msra.mxu0 %v4599
    %5096 = vmatpush.bf16.msra.mxu0 %v4595
    %5097 = vmatmul.bf16.gmra.mxu0 %v3780
    %v5098 = vpop.f32.mrf.mxu0
    %v5099 = vadd.f32 %v5085, %v5098
    %v5100 = vpop.f32.mrf.mxu0
    %v5101 = vadd.f32 %v5087, %v5100
    %5102 = vdwg.mxu0
    %5103 = vmatpush.bf16.msra.mxu0 %v4655
    %5104 = vmatpush.bf16.msra.mxu0 %v4651
    %5105 = vmatpush.bf16.msra.mxu0 %v4647
    %5106 = vmatpush.bf16.msra.mxu0 %v4643
    %5107 = vmatpush.bf16.msra.mxu0 %v4639
    %5108 = vmatpush.bf16.msra.mxu0 %v4635
    %5109 = vmatpush.bf16.msra.mxu0 %v4631
    %5110 = vmatpush.bf16.msra.mxu0 %v4627
    %5111 = vmatmul.bf16.gmra.mxu0 %v3781
    %v5112 = vpop.f32.mrf.mxu0
    %v5113 = vadd.f32 %v5099, %v5112
    %v5114 = vpop.f32.mrf.mxu0
    %v5115 = vadd.f32 %v5101, %v5114
    %5116 = vdwg.mxu0
    %5117 = vmatpush.bf16.msra.mxu0 %v4687
    %5118 = vmatpush.bf16.msra.mxu0 %v4683
    %5119 = vmatpush.bf16.msra.mxu0 %v4679
    %5120 = vmatpush.bf16.msra.mxu0 %v4675
    %5121 = vmatpush.bf16.msra.mxu0 %v4671
    %5122 = vmatpush.bf16.msra.mxu0 %v4667
    %5123 = vmatpush.bf16.msra.mxu0 %v4663
    %5124 = vmatpush.bf16.msra.mxu0 %v4659
    %5125 = vmatmul.bf16.gmra.mxu0 %v3782
    %v5126 = vpop.f32.mrf.mxu0
    %v5127 = vadd.f32 %v5113, %v5126
    %v5128 = vpop.f32.mrf.mxu0
    %v5129 = vadd.f32 %v5115, %v5128
    %5130 = vdwg.mxu0
    %5131 = vmatpush.bf16.msra.mxu0 %v4719
    %5132 = vmatpush.bf16.msra.mxu0 %v4715
    %5133 = vmatpush.bf16.msra.mxu0 %v4711
    %5134 = vmatpush.bf16.msra.mxu0 %v4707
    %5135 = vmatpush.bf16.msra.mxu0 %v4703
    %5136 = vmatpush.bf16.msra.mxu0 %v4699
    %5137 = vmatpush.bf16.msra.mxu0 %v4695
    %5138 = vmatpush.bf16.msra.mxu0 %v4691
    %5139 = vmatmul.bf16.gmra.mxu0 %v3783
    %v5140 = vpop.f32.mrf.mxu0
    %v5141 = vadd.f32 %v5127, %v5140
    %v5142 = vpop.f32.mrf.mxu0
    %v5143 = vadd.f32 %v5129, %v5142
    %5144 = vdwg.mxu0
    %5145 = vmatpush.bf16.msra.mxu0 %v4751
    %5146 = vmatpush.bf16.msra.mxu0 %v4747
    %5147 = vmatpush.bf16.msra.mxu0 %v4743
    %5148 = vmatpush.bf16.msra.mxu0 %v4739
    %5149 = vmatpush.bf16.msra.mxu0 %v4735
    %5150 = vmatpush.bf16.msra.mxu0 %v4731
    %5151 = vmatpush.bf16.msra.mxu0 %v4727
    %5152 = vmatpush.bf16.msra.mxu0 %v4723
    %5153 = vmatmul.bf16.gmra.mxu0 %v3784
    %v5154 = vpop.f32.mrf.mxu0
    %v5155 = vadd.f32 %v5141, %v5154
    %v5156 = vpop.f32.mrf.mxu0
    %v5157 = vadd.f32 %v5143, %v5156
    %5158 = vdwg.mxu0
    %5159 = vmatpush.bf16.msra.mxu0 %v4783
    %5160 = vmatpush.bf16.msra.mxu0 %v4779
    %5161 = vmatpush.bf16.msra.mxu0 %v4775
    %5162 = vmatpush.bf16.msra.mxu0 %v4771
    %5163 = vmatpush.bf16.msra.mxu0 %v4767
    %5164 = vmatpush.bf16.msra.mxu0 %v4763
    %5165 = vmatpush.bf16.msra.mxu0 %v4759
    %5166 = vmatpush.bf16.msra.mxu0 %v4755
    %5167 = vmatmul.bf16.gmra.mxu0 %v3785
    %v5168 = vpop.f32.mrf.mxu0
    %v5169 = vadd.f32 %v5155, %v5168
    %v5170 = vpop.f32.mrf.mxu0
    %v5171 = vadd.f32 %v5157, %v5170
    %5172 = vdwg.mxu0
    %5173 = vmatpush.bf16.msra.mxu0 %v4815
    %5174 = vmatpush.bf16.msra.mxu0 %v4811
    %5175 = vmatpush.bf16.msra.mxu0 %v4807
    %5176 = vmatpush.bf16.msra.mxu0 %v4803
    %5177 = vmatpush.bf16.msra.mxu0 %v4799
    %5178 = vmatpush.bf16.msra.mxu0 %v4795
    %5179 = vmatpush.bf16.msra.mxu0 %v4791
    %5180 = vmatpush.bf16.msra.mxu0 %v4787
    %5181 = vmatmul.bf16.gmra.mxu0 %v3786
    %v5182 = vpop.f32.mrf.mxu0
    %v5183 = vadd.f32 %v5169, %v5182
    %v5184 = vpop.f32.mrf.mxu0
    %v5185 = vadd.f32 %v5171, %v5184
    %5186 = vdwg.mxu0
    %5187 = vmatpush.bf16.msra.mxu0 %v4592
    %5188 = vmatpush.bf16.msra.mxu0 %v4588
    %5189 = vmatpush.bf16.msra.mxu0 %v4584
    %5190 = vmatpush.bf16.msra.mxu0 %v4580
    %5191 = vmatpush.bf16.msra.mxu0 %v4576
    %5192 = vmatpush.bf16.msra.mxu0 %v4572
    %5193 = vmatpush.bf16.msra.mxu0 %v4568
    %5194 = vmatpush.bf16.msra.mxu0 %v4564
    %5195 = vmatmul.bf16.gmra.mxu0 %v3779
    %v5196 = vpop.f32.mrf.mxu0
    %v5197 = vadd.f32 0.0, %v5196
    %v5198 = vpop.f32.mrf.mxu0
    %v5199 = vadd.f32 0.0, %v5198
    %5200 = vdwg.mxu0
    %5201 = vmatpush.bf16.msra.mxu0 %v4624
    %5202 = vmatpush.bf16.msra.mxu0 %v4620
    %5203 = vmatpush.bf16.msra.mxu0 %v4616
    %5204 = vmatpush.bf16.msra.mxu0 %v4612
    %5205 = vmatpush.bf16.msra.mxu0 %v4608
    %5206 = vmatpush.bf16.msra.mxu0 %v4604
    %5207 = vmatpush.bf16.msra.mxu0 %v4600
    %5208 = vmatpush.bf16.msra.mxu0 %v4596
    %5209 = vmatmul.bf16.gmra.mxu0 %v3780
    %v5210 = vpop.f32.mrf.mxu0
    %v5211 = vadd.f32 %v5197, %v5210
    %v5212 = vpop.f32.mrf.mxu0
    %v5213 = vadd.f32 %v5199, %v5212
    %5214 = vdwg.mxu0
    %5215 = vmatpush.bf16.msra.mxu0 %v4656
    %5216 = vmatpush.bf16.msra.mxu0 %v4652
    %5217 = vmatpush.bf16.msra.mxu0 %v4648
    %5218 = vmatpush.bf16.msra.mxu0 %v4644
    %5219 = vmatpush.bf16.msra.mxu0 %v4640
    %5220 = vmatpush.bf16.msra.mxu0 %v4636
    %5221 = vmatpush.bf16.msra.mxu0 %v4632
    %5222 = vmatpush.bf16.msra.mxu0 %v4628
    %5223 = vmatmul.bf16.gmra.mxu0 %v3781
    %v5224 = vpop.f32.mrf.mxu0
    %v5225 = vadd.f32 %v5211, %v5224
    %v5226 = vpop.f32.mrf.mxu0
    %v5227 = vadd.f32 %v5213, %v5226
    %5228 = vdwg.mxu0
    %5229 = vmatpush.bf16.msra.mxu0 %v4688
    %5230 = vmatpush.bf16.msra.mxu0 %v4684
    %5231 = vmatpush.bf16.msra.mxu0 %v4680
    %5232 = vmatpush.bf16.msra.mxu0 %v4676
    %5233 = vmatpush.bf16.msra.mxu0 %v4672
    %5234 = vmatpush.bf16.msra.mxu0 %v4668
    %5235 = vmatpush.bf16.msra.mxu0 %v4664
    %5236 = vmatpush.bf16.msra.mxu0 %v4660
    %5237 = vmatmul.bf16.gmra.mxu0 %v3782
    %v5238 = vpop.f32.mrf.mxu0
    %v5239 = vadd.f32 %v5225, %v5238
    %v5240 = vpop.f32.mrf.mxu0
    %v5241 = vadd.f32 %v5227, %v5240
    %5242 = vdwg.mxu0
    %5243 = vmatpush.bf16.msra.mxu0 %v4720
    %5244 = vmatpush.bf16.msra.mxu0 %v4716
    %5245 = vmatpush.bf16.msra.mxu0 %v4712
    %5246 = vmatpush.bf16.msra.mxu0 %v4708
    %5247 = vmatpush.bf16.msra.mxu0 %v4704
    %5248 = vmatpush.bf16.msra.mxu0 %v4700
    %5249 = vmatpush.bf16.msra.mxu0 %v4696
    %5250 = vmatpush.bf16.msra.mxu0 %v4692
    %5251 = vmatmul.bf16.gmra.mxu0 %v3783
    %v5252 = vpop.f32.mrf.mxu0
    %v5253 = vadd.f32 %v5239, %v5252
    %v5254 = vpop.f32.mrf.mxu0
    %v5255 = vadd.f32 %v5241, %v5254
    %5256 = vdwg.mxu0
    %5257 = vmatpush.bf16.msra.mxu0 %v4752
    %5258 = vmatpush.bf16.msra.mxu0 %v4748
    %5259 = vmatpush.bf16.msra.mxu0 %v4744
    %5260 = vmatpush.bf16.msra.mxu0 %v4740
    %5261 = vmatpush.bf16.msra.mxu0 %v4736
    %5262 = vmatpush.bf16.msra.mxu0 %v4732
    %5263 = vmatpush.bf16.msra.mxu0 %v4728
    %5264 = vmatpush.bf16.msra.mxu0 %v4724
    %5265 = vmatmul.bf16.gmra.mxu0 %v3784
    %v5266 = vpop.f32.mrf.mxu0
    %v5267 = vadd.f32 %v5253, %v5266
    %v5268 = vpop.f32.mrf.mxu0
    %v5269 = vadd.f32 %v5255, %v5268
    %5270 = vdwg.mxu0
    %5271 = vmatpush.bf16.msra.mxu0 %v4784
    %5272 = vmatpush.bf16.msra.mxu0 %v4780
    %5273 = vmatpush.bf16.msra.mxu0 %v4776
    %5274 = vmatpush.bf16.msra.mxu0 %v4772
    %5275 = vmatpush.bf16.msra.mxu0 %v4768
    %5276 = vmatpush.bf16.msra.mxu0 %v4764
    %5277 = vmatpush.bf16.msra.mxu0 %v4760
    %5278 = vmatpush.bf16.msra.mxu0 %v4756
    %5279 = vmatmul.bf16.gmra.mxu0 %v3785
    %v5280 = vpop.f32.mrf.mxu0
    %v5281 = vadd.f32 %v5267, %v5280
    %v5282 = vpop.f32.mrf.mxu0
    %v5283 = vadd.f32 %v5269, %v5282
    %5284 = vdwg.mxu0
    %5285 = vmatpush.bf16.msra.mxu0 %v4816
    %5286 = vmatpush.bf16.msra.mxu0 %v4812
    %5287 = vmatpush.bf16.msra.mxu0 %v4808
    %5288 = vmatpush.bf16.msra.mxu0 %v4804
    %5289 = vmatpush.bf16.msra.mxu0 %v4800
    %5290 = vmatpush.bf16.msra.mxu0 %v4796
    %5291 = vmatpush.bf16.msra.mxu0 %v4792
    %5292 = vmatpush.bf16.msra.mxu0 %v4788
    %5293 = vmatmul.bf16.gmra.mxu0 %v3786
    %v5294 = vpop.f32.mrf.mxu0
    %v5295 = vadd.f32 %v5281, %v5294
    %v5296 = vpop.f32.mrf.mxu0
    %v5297 = vadd.f32 %v5283, %v5296
    %5298 = vdwg.mxu0
    %5299 = vmatpush.bf16.msra.mxu0 %v4593
    %5300 = vmatpush.bf16.msra.mxu0 %v4589
    %5301 = vmatpush.bf16.msra.mxu0 %v4585
    %5302 = vmatpush.bf16.msra.mxu0 %v4581
    %5303 = vmatpush.bf16.msra.mxu0 %v4577
    %5304 = vmatpush.bf16.msra.mxu0 %v4573
    %5305 = vmatpush.bf16.msra.mxu0 %v4569
    %5306 = vmatpush.bf16.msra.mxu0 %v4565
    %5307 = vmatmul.bf16.gmra.mxu0 %v3779
    %v5308 = vpop.f32.mrf.mxu0
    %v5309 = vadd.f32 0.0, %v5308
    %v5310 = vpop.f32.mrf.mxu0
    %v5311 = vadd.f32 0.0, %v5310
    %5312 = vdwg.mxu0
    %5313 = vmatpush.bf16.msra.mxu0 %v4625
    %5314 = vmatpush.bf16.msra.mxu0 %v4621
    %5315 = vmatpush.bf16.msra.mxu0 %v4617
    %5316 = vmatpush.bf16.msra.mxu0 %v4613
    %5317 = vmatpush.bf16.msra.mxu0 %v4609
    %5318 = vmatpush.bf16.msra.mxu0 %v4605
    %5319 = vmatpush.bf16.msra.mxu0 %v4601
    %5320 = vmatpush.bf16.msra.mxu0 %v4597
    %5321 = vmatmul.bf16.gmra.mxu0 %v3780
    %v5322 = vpop.f32.mrf.mxu0
    %v5323 = vadd.f32 %v5309, %v5322
    %v5324 = vpop.f32.mrf.mxu0
    %v5325 = vadd.f32 %v5311, %v5324
    %5326 = vdwg.mxu0
    %5327 = vmatpush.bf16.msra.mxu0 %v4657
    %5328 = vmatpush.bf16.msra.mxu0 %v4653
    %5329 = vmatpush.bf16.msra.mxu0 %v4649
    %5330 = vmatpush.bf16.msra.mxu0 %v4645
    %5331 = vmatpush.bf16.msra.mxu0 %v4641
    %5332 = vmatpush.bf16.msra.mxu0 %v4637
    %5333 = vmatpush.bf16.msra.mxu0 %v4633
    %5334 = vmatpush.bf16.msra.mxu0 %v4629
    %5335 = vmatmul.bf16.gmra.mxu0 %v3781
    %v5336 = vpop.f32.mrf.mxu0
    %v5337 = vadd.f32 %v5323, %v5336
    %v5338 = vpop.f32.mrf.mxu0
    %v5339 = vadd.f32 %v5325, %v5338
    %5340 = vdwg.mxu0
    %5341 = vmatpush.bf16.msra.mxu0 %v4689
    %5342 = vmatpush.bf16.msra.mxu0 %v4685
    %5343 = vmatpush.bf16.msra.mxu0 %v4681
    %5344 = vmatpush.bf16.msra.mxu0 %v4677
    %5345 = vmatpush.bf16.msra.mxu0 %v4673
    %5346 = vmatpush.bf16.msra.mxu0 %v4669
    %5347 = vmatpush.bf16.msra.mxu0 %v4665
    %5348 = vmatpush.bf16.msra.mxu0 %v4661
    %5349 = vmatmul.bf16.gmra.mxu0 %v3782
    %v5350 = vpop.f32.mrf.mxu0
    %v5351 = vadd.f32 %v5337, %v5350
    %v5352 = vpop.f32.mrf.mxu0
    %v5353 = vadd.f32 %v5339, %v5352
    %5354 = vdwg.mxu0
    %5355 = vmatpush.bf16.msra.mxu0 %v4721
    %5356 = vmatpush.bf16.msra.mxu0 %v4717
    %5357 = vmatpush.bf16.msra.mxu0 %v4713
    %5358 = vmatpush.bf16.msra.mxu0 %v4709
    %5359 = vmatpush.bf16.msra.mxu0 %v4705
    %5360 = vmatpush.bf16.msra.mxu0 %v4701
    %5361 = vmatpush.bf16.msra.mxu0 %v4697
    %5362 = vmatpush.bf16.msra.mxu0 %v4693
    %5363 = vmatmul.bf16.gmra.mxu0 %v3783
    %v5364 = vpop.f32.mrf.mxu0
    %v5365 = vadd.f32 %v5351, %v5364
    %v5366 = vpop.f32.mrf.mxu0
    %v5367 = vadd.f32 %v5353, %v5366
    %5368 = vdwg.mxu0
    %5369 = vmatpush.bf16.msra.mxu0 %v4753
    %5370 = vmatpush.bf16.msra.mxu0 %v4749
    %5371 = vmatpush.bf16.msra.mxu0 %v4745
    %5372 = vmatpush.bf16.msra.mxu0 %v4741
    %5373 = vmatpush.bf16.msra.mxu0 %v4737
    %5374 = vmatpush.bf16.msra.mxu0 %v4733
    %5375 = vmatpush.bf16.msra.mxu0 %v4729
    %5376 = vmatpush.bf16.msra.mxu0 %v4725
    %5377 = vmatmul.bf16.gmra.mxu0 %v3784
    %v5378 = vpop.f32.mrf.mxu0
    %v5379 = vadd.f32 %v5365, %v5378
    %v5380 = vpop.f32.mrf.mxu0
    %v5381 = vadd.f32 %v5367, %v5380
    %5382 = vdwg.mxu0
    %5383 = vmatpush.bf16.msra.mxu0 %v4785
    %5384 = vmatpush.bf16.msra.mxu0 %v4781
    %5385 = vmatpush.bf16.msra.mxu0 %v4777
    %5386 = vmatpush.bf16.msra.mxu0 %v4773
    %5387 = vmatpush.bf16.msra.mxu0 %v4769
    %5388 = vmatpush.bf16.msra.mxu0 %v4765
    %5389 = vmatpush.bf16.msra.mxu0 %v4761
    %5390 = vmatpush.bf16.msra.mxu0 %v4757
    %5391 = vmatmul.bf16.gmra.mxu0 %v3785
    %v5392 = vpop.f32.mrf.mxu0
    %v5393 = vadd.f32 %v5379, %v5392
    %v5394 = vpop.f32.mrf.mxu0
    %v5395 = vadd.f32 %v5381, %v5394
    %5396 = vdwg.mxu0
    %5397 = vmatpush.bf16.msra.mxu0 %v4817
    %5398 = vmatpush.bf16.msra.mxu0 %v4813
    %5399 = vmatpush.bf16.msra.mxu0 %v4809
    %5400 = vmatpush.bf16.msra.mxu0 %v4805
    %5401 = vmatpush.bf16.msra.mxu0 %v4801
    %5402 = vmatpush.bf16.msra.mxu0 %v4797
    %5403 = vmatpush.bf16.msra.mxu0 %v4793
    %5404 = vmatpush.bf16.msra.mxu0 %v4789
    %5405 = vmatmul.bf16.gmra.mxu0 %v3786
    %v5406 = vpop.f32.mrf.mxu0
    %v5407 = vadd.f32 %v5393, %v5406
    %v5408 = vpop.f32.mrf.mxu0
    %v5409 = vadd.f32 %v5395, %v5408
    %5410 = vdwg.mxu0
    %5411 = vmatpush.bf16.msra.mxu0 %v4594
    %5412 = vmatpush.bf16.msra.mxu0 %v4590
    %5413 = vmatpush.bf16.msra.mxu0 %v4586
    %5414 = vmatpush.bf16.msra.mxu0 %v4582
    %5415 = vmatpush.bf16.msra.mxu0 %v4578
    %5416 = vmatpush.bf16.msra.mxu0 %v4574
    %5417 = vmatpush.bf16.msra.mxu0 %v4570
    %5418 = vmatpush.bf16.msra.mxu0 %v4566
    %5419 = vmatmul.bf16.gmra.mxu0 %v3779
    %v5420 = vpop.f32.mrf.mxu0
    %v5421 = vadd.f32 0.0, %v5420
    %v5422 = vpop.f32.mrf.mxu0
    %v5423 = vadd.f32 0.0, %v5422
    %5424 = vdwg.mxu0
    %5425 = vmatpush.bf16.msra.mxu0 %v4626
    %5426 = vmatpush.bf16.msra.mxu0 %v4622
    %5427 = vmatpush.bf16.msra.mxu0 %v4618
    %5428 = vmatpush.bf16.msra.mxu0 %v4614
    %5429 = vmatpush.bf16.msra.mxu0 %v4610
    %5430 = vmatpush.bf16.msra.mxu0 %v4606
    %5431 = vmatpush.bf16.msra.mxu0 %v4602
    %5432 = vmatpush.bf16.msra.mxu0 %v4598
    %5433 = vmatmul.bf16.gmra.mxu0 %v3780
    %v5434 = vpop.f32.mrf.mxu0
    %v5435 = vadd.f32 %v5421, %v5434
    %v5436 = vpop.f32.mrf.mxu0
    %v5437 = vadd.f32 %v5423, %v5436
    %5438 = vdwg.mxu0
    %5439 = vmatpush.bf16.msra.mxu0 %v4658
    %5440 = vmatpush.bf16.msra.mxu0 %v4654
    %5441 = vmatpush.bf16.msra.mxu0 %v4650
    %5442 = vmatpush.bf16.msra.mxu0 %v4646
    %5443 = vmatpush.bf16.msra.mxu0 %v4642
    %5444 = vmatpush.bf16.msra.mxu0 %v4638
    %5445 = vmatpush.bf16.msra.mxu0 %v4634
    %5446 = vmatpush.bf16.msra.mxu0 %v4630
    %5447 = vmatmul.bf16.gmra.mxu0 %v3781
    %v5448 = vpop.f32.mrf.mxu0
    %v5449 = vadd.f32 %v5435, %v5448
    %v5450 = vpop.f32.mrf.mxu0
    %v5451 = vadd.f32 %v5437, %v5450
    %5452 = vdwg.mxu0
    %5453 = vmatpush.bf16.msra.mxu0 %v4690
    %5454 = vmatpush.bf16.msra.mxu0 %v4686
    %5455 = vmatpush.bf16.msra.mxu0 %v4682
    %5456 = vmatpush.bf16.msra.mxu0 %v4678
    %5457 = vmatpush.bf16.msra.mxu0 %v4674
    %5458 = vmatpush.bf16.msra.mxu0 %v4670
    %5459 = vmatpush.bf16.msra.mxu0 %v4666
    %5460 = vmatpush.bf16.msra.mxu0 %v4662
    %5461 = vmatmul.bf16.gmra.mxu0 %v3782
    %v5462 = vpop.f32.mrf.mxu0
    %v5463 = vadd.f32 %v5449, %v5462
    %v5464 = vpop.f32.mrf.mxu0
    %v5465 = vadd.f32 %v5451, %v5464
    %5466 = vdwg.mxu0
    %5467 = vmatpush.bf16.msra.mxu0 %v4722
    %5468 = vmatpush.bf16.msra.mxu0 %v4718
    %5469 = vmatpush.bf16.msra.mxu0 %v4714
    %5470 = vmatpush.bf16.msra.mxu0 %v4710
    %5471 = vmatpush.bf16.msra.mxu0 %v4706
    %5472 = vmatpush.bf16.msra.mxu0 %v4702
    %5473 = vmatpush.bf16.msra.mxu0 %v4698
    %5474 = vmatpush.bf16.msra.mxu0 %v4694
    %5475 = vmatmul.bf16.gmra.mxu0 %v3783
    %v5476 = vpop.f32.mrf.mxu0
    %v5477 = vadd.f32 %v5463, %v5476
    %v5478 = vpop.f32.mrf.mxu0
    %v5479 = vadd.f32 %v5465, %v5478
    %5480 = vdwg.mxu0
    %5481 = vmatpush.bf16.msra.mxu0 %v4754
    %5482 = vmatpush.bf16.msra.mxu0 %v4750
    %5483 = vmatpush.bf16.msra.mxu0 %v4746
    %5484 = vmatpush.bf16.msra.mxu0 %v4742
    %5485 = vmatpush.bf16.msra.mxu0 %v4738
    %5486 = vmatpush.bf16.msra.mxu0 %v4734
    %5487 = vmatpush.bf16.msra.mxu0 %v4730
    %5488 = vmatpush.bf16.msra.mxu0 %v4726
    %5489 = vmatmul.bf16.gmra.mxu0 %v3784
    %v5490 = vpop.f32.mrf.mxu0
    %v5491 = vadd.f32 %v5477, %v5490
    %v5492 = vpop.f32.mrf.mxu0
    %v5493 = vadd.f32 %v5479, %v5492
    %5494 = vdwg.mxu0
    %5495 = vmatpush.bf16.msra.mxu0 %v4786
    %5496 = vmatpush.bf16.msra.mxu0 %v4782
    %5497 = vmatpush.bf16.msra.mxu0 %v4778
    %5498 = vmatpush.bf16.msra.mxu0 %v4774
    %5499 = vmatpush.bf16.msra.mxu0 %v4770
    %5500 = vmatpush.bf16.msra.mxu0 %v4766
    %5501 = vmatpush.bf16.msra.mxu0 %v4762
    %5502 = vmatpush.bf16.msra.mxu0 %v4758
    %5503 = vmatmul.bf16.gmra.mxu0 %v3785
    %v5504 = vpop.f32.mrf.mxu0
    %v5505 = vadd.f32 %v5491, %v5504
    %v5506 = vpop.f32.mrf.mxu0
    %v5507 = vadd.f32 %v5493, %v5506
    %5508 = vdwg.mxu0
    %5509 = vmatpush.bf16.msra.mxu0 %v4818
    %5510 = vmatpush.bf16.msra.mxu0 %v4814
    %5511 = vmatpush.bf16.msra.mxu0 %v4810
    %5512 = vmatpush.bf16.msra.mxu0 %v4806
    %5513 = vmatpush.bf16.msra.mxu0 %v4802
    %5514 = vmatpush.bf16.msra.mxu0 %v4798
    %5515 = vmatpush.bf16.msra.mxu0 %v4794
    %5516 = vmatpush.bf16.msra.mxu0 %v4790
    %5517 = vmatmul.bf16.gmra.mxu0 %v3786
    %v5518 = vpop.f32.mrf.mxu0
    %v5519 = vadd.f32 %v5505, %v5518
    %v5520 = vpop.f32.mrf.mxu0
    %v5521 = vadd.f32 %v5507, %v5520
    %5522 = vdwg.mxu0
    %v5523 = vpack.c.bf16 %v5295, %v5183
    %v5524 = vpack.c.bf16 %v5519, %v5407
    %v5525 = vpack.c.bf16 %v5297, %v5185
    %v5526 = vpack.c.bf16 %v5521, %v5409
    %v5529 = vunpack.c.l.b16 %v169
    %v5530 = vunpack.c.h.b16 %v169
    %v5531 = vunpack.c.l.b16 %v170
    %v5532 = vunpack.c.h.b16 %v170
    %v5533 = vpack.c.b16 %v5529, %v5529
    %v5534 = vpack.c.b16 %v5530, %v5530
    %v5535 = vpack.c.b16 %v5531, %v5531
    %v5536 = vpack.c.b16 %v5532, %v5532
    %v5538 = vpack.i.b16 %v5533, %v5533
    %v5540 = vperm.slane %v5538, 0
    %v5542 = vpack.i.b16 %v5534, %v5534
    %v5544 = vperm.slane %v5542, 0
    %v5546 = vpack.i.b16 %v5535, %v5535
    %v5548 = vperm.slane %v5546, 0
    %v5550 = vpack.i.b16 %v5536, %v5536
    %v5552 = vperm.slane %v5550, 0
    %v5553 = vunpack.c.l.bf16 %v5523
    %v5554 = vunpack.c.h.bf16 %v5523
    %v5555 = vunpack.c.l.bf16 %v5524
    %v5556 = vunpack.c.h.bf16 %v5524
    %v5557 = vunpack.c.l.bf16 %v5525
    %v5558 = vunpack.c.h.bf16 %v5525
    %v5559 = vunpack.c.l.bf16 %v5526
    %v5560 = vunpack.c.h.bf16 %v5526
    %v5561 = vunpack.c.l.bf16 %v5540
    %v5562 = vunpack.c.l.bf16 %v5544
    %v5563 = vunpack.c.l.bf16 %v5548
    %v5564 = vunpack.c.l.bf16 %v5552
    %v5565 = vadd.f32 %v5553, %v5561
    %v5566 = vadd.f32 %v5554, %v5562
    %v5567 = vadd.f32 %v5555, %v5563
    %v5568 = vadd.f32 %v5556, %v5564
    %v5569 = vadd.f32 %v5557, %v5561
    %v5570 = vadd.f32 %v5558, %v5562
    %v5571 = vadd.f32 %v5559, %v5563
    %v5572 = vadd.f32 %v5560, %v5564
    %v5573 = vpack.c.bf16 %v5566, %v5565
    %v5574 = vpack.c.bf16 %v5568, %v5567
    %v5575 = vpack.c.bf16 %v5570, %v5569
    %v5576 = vpack.c.bf16 %v5572, %v5571
    %v5577 = vunpack.c.l.bf16 %v5573
    %v5578 = vunpack.c.h.bf16 %v5573
    %v5579 = vunpack.c.l.bf16 %v5574
    %v5580 = vunpack.c.h.bf16 %v5574
    %v5581 = vunpack.c.l.bf16 %v5575
    %v5582 = vunpack.c.h.bf16 %v5575
    %v5583 = vunpack.c.l.bf16 %v5576
    %v5584 = vunpack.c.h.bf16 %v5576
    %vm5585 = vcmp.gt.f32.partialorder %v5577, 0.0
    %vm5586 = vcmp.gt.f32.partialorder %v5578, 0.0
    %vm5587 = vcmp.gt.f32.partialorder %v5579, 0.0
    %vm5588 = vcmp.gt.f32.partialorder %v5580, 0.0
    %vm5589 = vcmp.gt.f32.partialorder %v5581, 0.0
    %vm5590 = vcmp.gt.f32.partialorder %v5582, 0.0
    %vm5591 = vcmp.gt.f32.partialorder %v5583, 0.0
    %vm5592 = vcmp.gt.f32.partialorder %v5584, 0.0
    %v5593 = vmul.f32 %v5577, 0.20019531
    %v5594 = vmul.f32 %v5578, 0.20019531
    %v5595 = vmul.f32 %v5579, 0.20019531
    %v5596 = vmul.f32 %v5580, 0.20019531
    %v5597 = vmul.f32 %v5581, 0.20019531
    %v5598 = vmul.f32 %v5582, 0.20019531
    %v5599 = vmul.f32 %v5583, 0.20019531
    %v5600 = vmul.f32 %v5584, 0.20019531
    %v5601 = vpack.c.bf16 %v5594, %v5593
    %v5602 = vpack.c.bf16 %v5596, %v5595
    %v5603 = vpack.c.bf16 %v5598, %v5597
    %v5604 = vpack.c.bf16 %v5600, %v5599
    %vm5605 = vmpackc.low %vm5586, %vm5585
    %vm5606 = vmpackc.low %vm5588, %vm5587
    %vm5607 = vmpackc.low %vm5590, %vm5589
    %vm5608 = vmpackc.low %vm5592, %vm5591
    %v5609 = vsel %vm5605, %v5573, %v5601
    %v5610 = vsel %vm5606, %v5574, %v5602
    %v5611 = vsel %vm5607, %v5575, %v5603
    %v5612 = vsel %vm5608, %v5576, %v5604
    %v5613 = vld [vmem:[#allocation7] sm:$0xff]
    %v5614 = vld [vmem:[#allocation7 + $0x8] sm:$0xff]
    %v5615 = vld [vmem:[#allocation7 + $0x10] sm:$0xff]
    %v5616 = vld [vmem:[#allocation7 + $0x18] sm:$0xff]
    %v5617 = vld [vmem:[#allocation7 + $0x20] sm:$0xff]
    %v5618 = vld [vmem:[#allocation7 + $0x28] sm:$0xff]
    %v5619 = vld [vmem:[#allocation7 + $0x30] sm:$0xff]
    %v5620 = vld [vmem:[#allocation7 + $0x38] sm:$0xff]
    %v5621 = vld [vmem:[#allocation7 + $0x40] sm:$0xff]
    %v5622 = vld [vmem:[#allocation7 + $0x48] sm:$0xff]
    %v5623 = vld [vmem:[#allocation7 + $0x50] sm:$0xff]
    %v5624 = vld [vmem:[#allocation7 + $0x58] sm:$0xff]
    %v5625 = vld [vmem:[#allocation7 + $0x60] sm:$0xff]
    %v5626 = vld [vmem:[#allocation7 + $0x68] sm:$0xff]
    %v5627 = vld [vmem:[#allocation7 + $0x70] sm:$0xff]
    %v5628 = vld [vmem:[#allocation7 + $0x78] sm:$0xff]
    %v5629 = vld [vmem:[#allocation7 + $0x80] sm:$0xff]
    %v5630 = vld [vmem:[#allocation7 + $0x88] sm:$0xff]
    %v5631 = vld [vmem:[#allocation7 + $0x90] sm:$0xff]
    %v5632 = vld [vmem:[#allocation7 + $0x98] sm:$0xff]
    %v5633 = vld [vmem:[#allocation7 + $0xa0] sm:$0xff]
    %v5634 = vld [vmem:[#allocation7 + $0xa8] sm:$0xff]
    %v5635 = vld [vmem:[#allocation7 + $0xb0] sm:$0xff]
    %v5636 = vld [vmem:[#allocation7 + $0xb8] sm:$0xff]
    %v5637 = vld [vmem:[#allocation7 + $0xc0] sm:$0xff]
    %v5638 = vld [vmem:[#allocation7 + $0xc8] sm:$0xff]
    %v5639 = vld [vmem:[#allocation7 + $0xd0] sm:$0xff]
    %v5640 = vld [vmem:[#allocation7 + $0xd8] sm:$0xff]
    %v5641 = vld [vmem:[#allocation7 + $0xe0] sm:$0xff]
    %v5642 = vld [vmem:[#allocation7 + $0xe8] sm:$0xff]
    %v5643 = vld [vmem:[#allocation7 + $0xf0] sm:$0xff]
    %v5644 = vld [vmem:[#allocation7 + $0xf8] sm:$0xff]
    %v5645 = vld [vmem:[#allocation7 + $0x100] sm:$0xff]
    %v5646 = vld [vmem:[#allocation7 + $0x108] sm:$0xff]
    %v5647 = vld [vmem:[#allocation7 + $0x110] sm:$0xff]
    %v5648 = vld [vmem:[#allocation7 + $0x118] sm:$0xff]
    %v5649 = vld [vmem:[#allocation7 + $0x120] sm:$0xff]
    %v5650 = vld [vmem:[#allocation7 + $0x128] sm:$0xff]
    %v5651 = vld [vmem:[#allocation7 + $0x130] sm:$0xff]
    %v5652 = vld [vmem:[#allocation7 + $0x138] sm:$0xff]
    %v5653 = vld [vmem:[#allocation7 + $0x140] sm:$0xff]
    %v5654 = vld [vmem:[#allocation7 + $0x148] sm:$0xff]
    %v5655 = vld [vmem:[#allocation7 + $0x150] sm:$0xff]
    %v5656 = vld [vmem:[#allocation7 + $0x158] sm:$0xff]
    %v5657 = vld [vmem:[#allocation7 + $0x160] sm:$0xff]
    %v5658 = vld [vmem:[#allocation7 + $0x168] sm:$0xff]
    %v5659 = vld [vmem:[#allocation7 + $0x170] sm:$0xff]
    %v5660 = vld [vmem:[#allocation7 + $0x178] sm:$0xff]
    %v5661 = vld [vmem:[#allocation7 + $0x180] sm:$0xff]
    %v5662 = vld [vmem:[#allocation7 + $0x188] sm:$0xff]
    %v5663 = vld [vmem:[#allocation7 + $0x190] sm:$0xff]
    %v5664 = vld [vmem:[#allocation7 + $0x198] sm:$0xff]
    %v5665 = vld [vmem:[#allocation7 + $0x1a0] sm:$0xff]
    %v5666 = vld [vmem:[#allocation7 + $0x1a8] sm:$0xff]
    %v5667 = vld [vmem:[#allocation7 + $0x1b0] sm:$0xff]
    %v5668 = vld [vmem:[#allocation7 + $0x1b8] sm:$0xff]
    %v5669 = vld [vmem:[#allocation7 + $0x1c0] sm:$0xff]
    %v5670 = vld [vmem:[#allocation7 + $0x1c8] sm:$0xff]
    %v5671 = vld [vmem:[#allocation7 + $0x1d0] sm:$0xff]
    %v5672 = vld [vmem:[#allocation7 + $0x1d8] sm:$0xff]
    %v5673 = vld [vmem:[#allocation7 + $0x1e0] sm:$0xff]
    %v5674 = vld [vmem:[#allocation7 + $0x1e8] sm:$0xff]
    %v5675 = vld [vmem:[#allocation7 + $0x1f0] sm:$0xff]
    %v5676 = vld [vmem:[#allocation7 + $0x1f8] sm:$0xff]
    %v5681 = vunpack.c.l.b16 %v5609
    %v5682 = vunpack.c.h.b16 %v5609
    %v5683 = vunpack.c.l.b16 %v5610
    %v5684 = vunpack.c.h.b16 %v5610
    %v5685 = vunpack.c.l.b16 %v5611
    %v5686 = vunpack.c.h.b16 %v5611
    %v5687 = vunpack.c.l.b16 %v5612
    %v5688 = vunpack.c.h.b16 %v5612
    %v5689 = vpack.c.b16 %v5685, %v5681
    %v5690 = vpack.c.b16 %v5686, %v5682
    %v5691 = vpack.c.b16 %v5687, %v5683
    %v5692 = vpack.c.b16 %v5688, %v5684
    %v5761 = vunpack.c.l.b16 %v5613
    %v5762 = vunpack.c.h.b16 %v5613
    %v5763 = vunpack.c.l.b16 %v5614
    %v5764 = vunpack.c.h.b16 %v5614
    %v5765 = vunpack.c.l.b16 %v5615
    %v5766 = vunpack.c.h.b16 %v5615
    %v5767 = vunpack.c.l.b16 %v5616
    %v5768 = vunpack.c.h.b16 %v5616
    %v5769 = vunpack.c.l.b16 %v5617
    %v5770 = vunpack.c.h.b16 %v5617
    %v5771 = vunpack.c.l.b16 %v5618
    %v5772 = vunpack.c.h.b16 %v5618
    %v5773 = vunpack.c.l.b16 %v5619
    %v5774 = vunpack.c.h.b16 %v5619
    %v5775 = vunpack.c.l.b16 %v5620
    %v5776 = vunpack.c.h.b16 %v5620
    %v5777 = vunpack.c.l.b16 %v5621
    %v5778 = vunpack.c.h.b16 %v5621
    %v5779 = vunpack.c.l.b16 %v5622
    %v5780 = vunpack.c.h.b16 %v5622
    %v5781 = vunpack.c.l.b16 %v5623
    %v5782 = vunpack.c.h.b16 %v5623
    %v5783 = vunpack.c.l.b16 %v5624
    %v5784 = vunpack.c.h.b16 %v5624
    %v5785 = vunpack.c.l.b16 %v5625
    %v5786 = vunpack.c.h.b16 %v5625
    %v5787 = vunpack.c.l.b16 %v5626
    %v5788 = vunpack.c.h.b16 %v5626
    %v5789 = vunpack.c.l.b16 %v5627
    %v5790 = vunpack.c.h.b16 %v5627
    %v5791 = vunpack.c.l.b16 %v5628
    %v5792 = vunpack.c.h.b16 %v5628
    %v5793 = vunpack.c.l.b16 %v5629
    %v5794 = vunpack.c.h.b16 %v5629
    %v5795 = vunpack.c.l.b16 %v5630
    %v5796 = vunpack.c.h.b16 %v5630
    %v5797 = vunpack.c.l.b16 %v5631
    %v5798 = vunpack.c.h.b16 %v5631
    %v5799 = vunpack.c.l.b16 %v5632
    %v5800 = vunpack.c.h.b16 %v5632
    %v5801 = vunpack.c.l.b16 %v5633
    %v5802 = vunpack.c.h.b16 %v5633
    %v5803 = vunpack.c.l.b16 %v5634
    %v5804 = vunpack.c.h.b16 %v5634
    %v5805 = vunpack.c.l.b16 %v5635
    %v5806 = vunpack.c.h.b16 %v5635
    %v5807 = vunpack.c.l.b16 %v5636
    %v5808 = vunpack.c.h.b16 %v5636
    %v5809 = vunpack.c.l.b16 %v5637
    %v5810 = vunpack.c.h.b16 %v5637
    %v5811 = vunpack.c.l.b16 %v5638
    %v5812 = vunpack.c.h.b16 %v5638
    %v5813 = vunpack.c.l.b16 %v5639
    %v5814 = vunpack.c.h.b16 %v5639
    %v5815 = vunpack.c.l.b16 %v5640
    %v5816 = vunpack.c.h.b16 %v5640
    %v5817 = vunpack.c.l.b16 %v5641
    %v5818 = vunpack.c.h.b16 %v5641
    %v5819 = vunpack.c.l.b16 %v5642
    %v5820 = vunpack.c.h.b16 %v5642
    %v5821 = vunpack.c.l.b16 %v5643
    %v5822 = vunpack.c.h.b16 %v5643
    %v5823 = vunpack.c.l.b16 %v5644
    %v5824 = vunpack.c.h.b16 %v5644
    %v5825 = vunpack.c.l.b16 %v5645
    %v5826 = vunpack.c.h.b16 %v5645
    %v5827 = vunpack.c.l.b16 %v5646
    %v5828 = vunpack.c.h.b16 %v5646
    %v5829 = vunpack.c.l.b16 %v5647
    %v5830 = vunpack.c.h.b16 %v5647
    %v5831 = vunpack.c.l.b16 %v5648
    %v5832 = vunpack.c.h.b16 %v5648
    %v5833 = vunpack.c.l.b16 %v5649
    %v5834 = vunpack.c.h.b16 %v5649
    %v5835 = vunpack.c.l.b16 %v5650
    %v5836 = vunpack.c.h.b16 %v5650
    %v5837 = vunpack.c.l.b16 %v5651
    %v5838 = vunpack.c.h.b16 %v5651
    %v5839 = vunpack.c.l.b16 %v5652
    %v5840 = vunpack.c.h.b16 %v5652
    %v5841 = vunpack.c.l.b16 %v5653
    %v5842 = vunpack.c.h.b16 %v5653
    %v5843 = vunpack.c.l.b16 %v5654
    %v5844 = vunpack.c.h.b16 %v5654
    %v5845 = vunpack.c.l.b16 %v5655
    %v5846 = vunpack.c.h.b16 %v5655
    %v5847 = vunpack.c.l.b16 %v5656
    %v5848 = vunpack.c.h.b16 %v5656
    %v5849 = vunpack.c.l.b16 %v5657
    %v5850 = vunpack.c.h.b16 %v5657
    %v5851 = vunpack.c.l.b16 %v5658
    %v5852 = vunpack.c.h.b16 %v5658
    %v5853 = vunpack.c.l.b16 %v5659
    %v5854 = vunpack.c.h.b16 %v5659
    %v5855 = vunpack.c.l.b16 %v5660
    %v5856 = vunpack.c.h.b16 %v5660
    %v5857 = vunpack.c.l.b16 %v5661
    %v5858 = vunpack.c.h.b16 %v5661
    %v5859 = vunpack.c.l.b16 %v5662
    %v5860 = vunpack.c.h.b16 %v5662
    %v5861 = vunpack.c.l.b16 %v5663
    %v5862 = vunpack.c.h.b16 %v5663
    %v5863 = vunpack.c.l.b16 %v5664
    %v5864 = vunpack.c.h.b16 %v5664
    %v5865 = vunpack.c.l.b16 %v5665
    %v5866 = vunpack.c.h.b16 %v5665
    %v5867 = vunpack.c.l.b16 %v5666
    %v5868 = vunpack.c.h.b16 %v5666
    %v5869 = vunpack.c.l.b16 %v5667
    %v5870 = vunpack.c.h.b16 %v5667
    %v5871 = vunpack.c.l.b16 %v5668
    %v5872 = vunpack.c.h.b16 %v5668
    %v5873 = vunpack.c.l.b16 %v5669
    %v5874 = vunpack.c.h.b16 %v5669
    %v5875 = vunpack.c.l.b16 %v5670
    %v5876 = vunpack.c.h.b16 %v5670
    %v5877 = vunpack.c.l.b16 %v5671
    %v5878 = vunpack.c.h.b16 %v5671
    %v5879 = vunpack.c.l.b16 %v5672
    %v5880 = vunpack.c.h.b16 %v5672
    %v5881 = vunpack.c.l.b16 %v5673
    %v5882 = vunpack.c.h.b16 %v5673
    %v5883 = vunpack.c.l.b16 %v5674
    %v5884 = vunpack.c.h.b16 %v5674
    %v5885 = vunpack.c.l.b16 %v5675
    %v5886 = vunpack.c.h.b16 %v5675
    %v5887 = vunpack.c.l.b16 %v5676
    %v5888 = vunpack.c.h.b16 %v5676
    %v5889 = vpack.c.b16 %v5763, %v5761
    %v5890 = vpack.c.b16 %v5764, %v5762
    %v5891 = vpack.c.b16 %v5767, %v5765
    %v5892 = vpack.c.b16 %v5768, %v5766
    %v5893 = vpack.c.b16 %v5771, %v5769
    %v5894 = vpack.c.b16 %v5772, %v5770
    %v5895 = vpack.c.b16 %v5775, %v5773
    %v5896 = vpack.c.b16 %v5776, %v5774
    %v5897 = vpack.c.b16 %v5779, %v5777
    %v5898 = vpack.c.b16 %v5780, %v5778
    %v5899 = vpack.c.b16 %v5783, %v5781
    %v5900 = vpack.c.b16 %v5784, %v5782
    %v5901 = vpack.c.b16 %v5787, %v5785
    %v5902 = vpack.c.b16 %v5788, %v5786
    %v5903 = vpack.c.b16 %v5791, %v5789
    %v5904 = vpack.c.b16 %v5792, %v5790
    %v5905 = vpack.c.b16 %v5795, %v5793
    %v5906 = vpack.c.b16 %v5796, %v5794
    %v5907 = vpack.c.b16 %v5799, %v5797
    %v5908 = vpack.c.b16 %v5800, %v5798
    %v5909 = vpack.c.b16 %v5803, %v5801
    %v5910 = vpack.c.b16 %v5804, %v5802
    %v5911 = vpack.c.b16 %v5807, %v5805
    %v5912 = vpack.c.b16 %v5808, %v5806
    %v5913 = vpack.c.b16 %v5811, %v5809
    %v5914 = vpack.c.b16 %v5812, %v5810
    %v5915 = vpack.c.b16 %v5815, %v5813
    %v5916 = vpack.c.b16 %v5816, %v5814
    %v5917 = vpack.c.b16 %v5819, %v5817
    %v5918 = vpack.c.b16 %v5820, %v5818
    %v5919 = vpack.c.b16 %v5823, %v5821
    %v5920 = vpack.c.b16 %v5824, %v5822
    %v5921 = vpack.c.b16 %v5827, %v5825
    %v5922 = vpack.c.b16 %v5828, %v5826
    %v5923 = vpack.c.b16 %v5831, %v5829
    %v5924 = vpack.c.b16 %v5832, %v5830
    %v5925 = vpack.c.b16 %v5835, %v5833
    %v5926 = vpack.c.b16 %v5836, %v5834
    %v5927 = vpack.c.b16 %v5839, %v5837
    %v5928 = vpack.c.b16 %v5840, %v5838
    %v5929 = vpack.c.b16 %v5843, %v5841
    %v5930 = vpack.c.b16 %v5844, %v5842
    %v5931 = vpack.c.b16 %v5847, %v5845
    %v5932 = vpack.c.b16 %v5848, %v5846
    %v5933 = vpack.c.b16 %v5851, %v5849
    %v5934 = vpack.c.b16 %v5852, %v5850
    %v5935 = vpack.c.b16 %v5855, %v5853
    %v5936 = vpack.c.b16 %v5856, %v5854
    %v5937 = vpack.c.b16 %v5859, %v5857
    %v5938 = vpack.c.b16 %v5860, %v5858
    %v5939 = vpack.c.b16 %v5863, %v5861
    %v5940 = vpack.c.b16 %v5864, %v5862
    %v5941 = vpack.c.b16 %v5867, %v5865
    %v5942 = vpack.c.b16 %v5868, %v5866
    %v5943 = vpack.c.b16 %v5871, %v5869
    %v5944 = vpack.c.b16 %v5872, %v5870
    %v5945 = vpack.c.b16 %v5875, %v5873
    %v5946 = vpack.c.b16 %v5876, %v5874
    %v5947 = vpack.c.b16 %v5879, %v5877
    %v5948 = vpack.c.b16 %v5880, %v5878
    %v5949 = vpack.c.b16 %v5883, %v5881
    %v5950 = vpack.c.b16 %v5884, %v5882
    %v5951 = vpack.c.b16 %v5887, %v5885
    %v5952 = vpack.c.b16 %v5888, %v5886
    %6017 = vmatpush.bf16.msra.mxu0 %v5903
    %6018 = vmatpush.bf16.msra.mxu0 %v5901
    %6019 = vmatpush.bf16.msra.mxu0 %v5899
    %6020 = vmatpush.bf16.msra.mxu0 %v5897
    %6021 = vmatpush.bf16.msra.mxu0 %v5895
    %6022 = vmatpush.bf16.msra.mxu0 %v5893
    %6023 = vmatpush.bf16.msra.mxu0 %v5891
    %6024 = vmatpush.bf16.msra.mxu0 %v5889
    %6025 = vmatmul.bf16.gmra.mxu0 %v5689
    %v6026 = vpop.f32.mrf.mxu0
    %v6027 = vadd.f32 0.0, %v6026
    %v6028 = vpop.f32.mrf.mxu0
    %v6029 = vadd.f32 0.0, %v6028
    %6030 = vdwg.mxu0
    %6031 = vmatpush.bf16.msra.mxu0 %v5919
    %6032 = vmatpush.bf16.msra.mxu0 %v5917
    %6033 = vmatpush.bf16.msra.mxu0 %v5915
    %6034 = vmatpush.bf16.msra.mxu0 %v5913
    %6035 = vmatpush.bf16.msra.mxu0 %v5911
    %6036 = vmatpush.bf16.msra.mxu0 %v5909
    %6037 = vmatpush.bf16.msra.mxu0 %v5907
    %6038 = vmatpush.bf16.msra.mxu0 %v5905
    %6039 = vmatmul.bf16.gmra.mxu0 %v5690
    %v6040 = vpop.f32.mrf.mxu0
    %v6041 = vadd.f32 %v6027, %v6040
    %v6042 = vpop.f32.mrf.mxu0
    %v6043 = vadd.f32 %v6029, %v6042
    %6044 = vdwg.mxu0
    %6045 = vmatpush.bf16.msra.mxu0 %v5935
    %6046 = vmatpush.bf16.msra.mxu0 %v5933
    %6047 = vmatpush.bf16.msra.mxu0 %v5931
    %6048 = vmatpush.bf16.msra.mxu0 %v5929
    %6049 = vmatpush.bf16.msra.mxu0 %v5927
    %6050 = vmatpush.bf16.msra.mxu0 %v5925
    %6051 = vmatpush.bf16.msra.mxu0 %v5923
    %6052 = vmatpush.bf16.msra.mxu0 %v5921
    %6053 = vmatmul.bf16.gmra.mxu0 %v5691
    %v6054 = vpop.f32.mrf.mxu0
    %v6055 = vadd.f32 %v6041, %v6054
    %v6056 = vpop.f32.mrf.mxu0
    %v6057 = vadd.f32 %v6043, %v6056
    %6058 = vdwg.mxu0
    %6059 = vmatpush.bf16.msra.mxu0 %v5951
    %6060 = vmatpush.bf16.msra.mxu0 %v5949
    %6061 = vmatpush.bf16.msra.mxu0 %v5947
    %6062 = vmatpush.bf16.msra.mxu0 %v5945
    %6063 = vmatpush.bf16.msra.mxu0 %v5943
    %6064 = vmatpush.bf16.msra.mxu0 %v5941
    %6065 = vmatpush.bf16.msra.mxu0 %v5939
    %6066 = vmatpush.bf16.msra.mxu0 %v5937
    %6067 = vmatmul.bf16.gmra.mxu0 %v5692
    %v6068 = vpop.f32.mrf.mxu0
    %v6069 = vadd.f32 %v6055, %v6068
    %v6070 = vpop.f32.mrf.mxu0
    %v6071 = vadd.f32 %v6057, %v6070
    %6072 = vdwg.mxu0
    %6073 = vmatpush.bf16.msra.mxu0 %v5904
    %6074 = vmatpush.bf16.msra.mxu0 %v5902
    %6075 = vmatpush.bf16.msra.mxu0 %v5900
    %6076 = vmatpush.bf16.msra.mxu0 %v5898
    %6077 = vmatpush.bf16.msra.mxu0 %v5896
    %6078 = vmatpush.bf16.msra.mxu0 %v5894
    %6079 = vmatpush.bf16.msra.mxu0 %v5892
    %6080 = vmatpush.bf16.msra.mxu0 %v5890
    %6081 = vmatmul.bf16.gmra.mxu0 %v5689
    %v6082 = vpop.f32.mrf.mxu0
    %v6083 = vadd.f32 0.0, %v6082
    %v6084 = vpop.f32.mrf.mxu0
    %v6085 = vadd.f32 0.0, %v6084
    %6086 = vdwg.mxu0
    %6087 = vmatpush.bf16.msra.mxu0 %v5920
    %6088 = vmatpush.bf16.msra.mxu0 %v5918
    %6089 = vmatpush.bf16.msra.mxu0 %v5916
    %6090 = vmatpush.bf16.msra.mxu0 %v5914
    %6091 = vmatpush.bf16.msra.mxu0 %v5912
    %6092 = vmatpush.bf16.msra.mxu0 %v5910
    %6093 = vmatpush.bf16.msra.mxu0 %v5908
    %6094 = vmatpush.bf16.msra.mxu0 %v5906
    %6095 = vmatmul.bf16.gmra.mxu0 %v5690
    %v6096 = vpop.f32.mrf.mxu0
    %v6097 = vadd.f32 %v6083, %v6096
    %v6098 = vpop.f32.mrf.mxu0
    %v6099 = vadd.f32 %v6085, %v6098
    %6100 = vdwg.mxu0
    %6101 = vmatpush.bf16.msra.mxu0 %v5936
    %6102 = vmatpush.bf16.msra.mxu0 %v5934
    %6103 = vmatpush.bf16.msra.mxu0 %v5932
    %6104 = vmatpush.bf16.msra.mxu0 %v5930
    %6105 = vmatpush.bf16.msra.mxu0 %v5928
    %6106 = vmatpush.bf16.msra.mxu0 %v5926
    %6107 = vmatpush.bf16.msra.mxu0 %v5924
    %6108 = vmatpush.bf16.msra.mxu0 %v5922
    %6109 = vmatmul.bf16.gmra.mxu0 %v5691
    %v6110 = vpop.f32.mrf.mxu0
    %v6111 = vadd.f32 %v6097, %v6110
    %v6112 = vpop.f32.mrf.mxu0
    %v6113 = vadd.f32 %v6099, %v6112
    %6114 = vdwg.mxu0
    %6115 = vmatpush.bf16.msra.mxu0 %v5952
    %6116 = vmatpush.bf16.msra.mxu0 %v5950
    %6117 = vmatpush.bf16.msra.mxu0 %v5948
    %6118 = vmatpush.bf16.msra.mxu0 %v5946
    %6119 = vmatpush.bf16.msra.mxu0 %v5944
    %6120 = vmatpush.bf16.msra.mxu0 %v5942
    %6121 = vmatpush.bf16.msra.mxu0 %v5940
    %6122 = vmatpush.bf16.msra.mxu0 %v5938
    %6123 = vmatmul.bf16.gmra.mxu0 %v5692
    %v6124 = vpop.f32.mrf.mxu0
    %v6125 = vadd.f32 %v6111, %v6124
    %v6126 = vpop.f32.mrf.mxu0
    %v6127 = vadd.f32 %v6113, %v6126
    %6128 = vdwg.mxu0
    %v6129 = vpack.c.bf16 %v6125, %v6069
    %v6130 = vpack.c.bf16 %v6127, %v6071
    %v6132 = vunpack.c.l.b16 %v177
    %v6133 = vunpack.c.h.b16 %v177
    %v6134 = vpack.c.b16 %v6132, %v6132
    %v6135 = vpack.c.b16 %v6133, %v6133
    %v6137 = vpack.i.b16 %v6134, %v6134
    %v6139 = vperm.slane %v6137, 0
    %v6141 = vpack.i.b16 %v6135, %v6135
    %v6143 = vperm.slane %v6141, 0
    %v6144 = vunpack.c.l.bf16 %v6129
    %v6145 = vunpack.c.h.bf16 %v6129
    %v6146 = vunpack.c.l.bf16 %v6130
    %v6147 = vunpack.c.h.bf16 %v6130
    %v6148 = vunpack.c.l.bf16 %v6139
    %v6149 = vunpack.c.l.bf16 %v6143
    %v6150 = vadd.f32 %v6144, %v6148
    %v6151 = vadd.f32 %v6145, %v6149
    %v6152 = vadd.f32 %v6146, %v6148
    %v6153 = vadd.f32 %v6147, %v6149
    %v6154 = vpack.c.bf16 %v6151, %v6150
    %v6155 = vpack.c.bf16 %v6153, %v6152
    %v6156 = vunpack.c.l.bf16 %v6154
    %v6157 = vunpack.c.h.bf16 %v6154
    %v6158 = vunpack.c.l.bf16 %v6155
    %v6159 = vunpack.c.h.bf16 %v6155
    %vm6160 = vcmp.gt.f32.partialorder %v6156, 0.0
    %vm6161 = vcmp.gt.f32.partialorder %v6157, 0.0
    %vm6162 = vcmp.gt.f32.partialorder %v6158, 0.0
    %vm6163 = vcmp.gt.f32.partialorder %v6159, 0.0
    %v6164 = vmul.f32 %v6156, 0.20019531
    %v6165 = vmul.f32 %v6157, 0.20019531
    %v6166 = vmul.f32 %v6158, 0.20019531
    %v6167 = vmul.f32 %v6159, 0.20019531
    %v6168 = vpack.c.bf16 %v6165, %v6164
    %v6169 = vpack.c.bf16 %v6167, %v6166
    %vm6170 = vmpackc.low %vm6161, %vm6160
    %vm6171 = vmpackc.low %vm6163, %vm6162
    %v6172 = vsel %vm6170, %v6154, %v6168
    %v6173 = vsel %vm6171, %v6155, %v6169
    %v6174 = vld [vmem:[#allocation9] sm:$0xf]
    %v6175 = vld [vmem:[#allocation9 + $0x4] sm:$0xf]
    %v6176 = vld [vmem:[#allocation9 + $0x8] sm:$0xf]
    %v6177 = vld [vmem:[#allocation9 + $0xc] sm:$0xf]
    %v6178 = vld [vmem:[#allocation9 + $0x10] sm:$0xf]
    %v6179 = vld [vmem:[#allocation9 + $0x14] sm:$0xf]
    %v6180 = vld [vmem:[#allocation9 + $0x18] sm:$0xf]
    %v6181 = vld [vmem:[#allocation9 + $0x1c] sm:$0xf]
    %v6182 = vld [vmem:[#allocation9 + $0x20] sm:$0xf]
    %v6183 = vld [vmem:[#allocation9 + $0x24] sm:$0xf]
    %v6184 = vld [vmem:[#allocation9 + $0x28] sm:$0xf]
    %v6185 = vld [vmem:[#allocation9 + $0x2c] sm:$0xf]
    %v6186 = vld [vmem:[#allocation9 + $0x30] sm:$0xf]
    %v6187 = vld [vmem:[#allocation9 + $0x34] sm:$0xf]
    %v6188 = vld [vmem:[#allocation9 + $0x38] sm:$0xf]
    %v6189 = vld [vmem:[#allocation9 + $0x3c] sm:$0xf]
    %v6190 = vld [vmem:[#allocation9 + $0x40] sm:$0xf]
    %v6191 = vld [vmem:[#allocation9 + $0x44] sm:$0xf]
    %v6192 = vld [vmem:[#allocation9 + $0x48] sm:$0xf]
    %v6193 = vld [vmem:[#allocation9 + $0x4c] sm:$0xf]
    %v6194 = vld [vmem:[#allocation9 + $0x50] sm:$0xf]
    %v6195 = vld [vmem:[#allocation9 + $0x54] sm:$0xf]
    %v6196 = vld [vmem:[#allocation9 + $0x58] sm:$0xf]
    %v6197 = vld [vmem:[#allocation9 + $0x5c] sm:$0xf]
    %v6198 = vld [vmem:[#allocation9 + $0x60] sm:$0xf]
    %v6199 = vld [vmem:[#allocation9 + $0x64] sm:$0xf]
    %v6200 = vld [vmem:[#allocation9 + $0x68] sm:$0xf]
    %v6201 = vld [vmem:[#allocation9 + $0x6c] sm:$0xf]
    %v6202 = vld [vmem:[#allocation9 + $0x70] sm:$0xf]
    %v6203 = vld [vmem:[#allocation9 + $0x74] sm:$0xf]
    %v6204 = vld [vmem:[#allocation9 + $0x78] sm:$0xf]
    %v6205 = vld [vmem:[#allocation9 + $0x7c] sm:$0xf]
    %v6207 = vperm.slane %v178, 0
    %v6211 = vunpack.c.l.b16 %v6172
    %v6212 = vunpack.c.h.b16 %v6172
    %v6213 = vunpack.c.l.b16 %v6173
    %v6214 = vunpack.c.h.b16 %v6173
    %v6215 = vpack.c.b16 %v6213, %v6211
    %v6216 = vpack.c.b16 %v6214, %v6212
    %v6251 = vunpack.c.l.b16 %v6174
    %v6252 = vunpack.c.l.b16 %v6175
    %v6253 = vunpack.c.l.b16 %v6176
    %v6254 = vunpack.c.l.b16 %v6177
    %v6255 = vunpack.c.l.b16 %v6178
    %v6256 = vunpack.c.l.b16 %v6179
    %v6257 = vunpack.c.l.b16 %v6180
    %v6258 = vunpack.c.l.b16 %v6181
    %v6259 = vunpack.c.l.b16 %v6182
    %v6260 = vunpack.c.l.b16 %v6183
    %v6261 = vunpack.c.l.b16 %v6184
    %v6262 = vunpack.c.l.b16 %v6185
    %v6263 = vunpack.c.l.b16 %v6186
    %v6264 = vunpack.c.l.b16 %v6187
    %v6265 = vunpack.c.l.b16 %v6188
    %v6266 = vunpack.c.l.b16 %v6189
    %v6267 = vunpack.c.l.b16 %v6190
    %v6268 = vunpack.c.l.b16 %v6191
    %v6269 = vunpack.c.l.b16 %v6192
    %v6270 = vunpack.c.l.b16 %v6193
    %v6271 = vunpack.c.l.b16 %v6194
    %v6272 = vunpack.c.l.b16 %v6195
    %v6273 = vunpack.c.l.b16 %v6196
    %v6274 = vunpack.c.l.b16 %v6197
    %v6275 = vunpack.c.l.b16 %v6198
    %v6276 = vunpack.c.l.b16 %v6199
    %v6277 = vunpack.c.l.b16 %v6200
    %v6278 = vunpack.c.l.b16 %v6201
    %v6279 = vunpack.c.l.b16 %v6202
    %v6280 = vunpack.c.l.b16 %v6203
    %v6281 = vunpack.c.l.b16 %v6204
    %v6282 = vunpack.c.l.b16 %v6205
    %v6283 = vpack.c.b16 %v6252, %v6251
    %v6284 = vpack.c.b16 %v6254, %v6253
    %v6285 = vpack.c.b16 %v6256, %v6255
    %v6286 = vpack.c.b16 %v6258, %v6257
    %v6287 = vpack.c.b16 %v6260, %v6259
    %v6288 = vpack.c.b16 %v6262, %v6261
    %v6289 = vpack.c.b16 %v6264, %v6263
    %v6290 = vpack.c.b16 %v6266, %v6265
    %v6291 = vpack.c.b16 %v6268, %v6267
    %v6292 = vpack.c.b16 %v6270, %v6269
    %v6293 = vpack.c.b16 %v6272, %v6271
    %v6294 = vpack.c.b16 %v6274, %v6273
    %v6295 = vpack.c.b16 %v6276, %v6275
    %v6296 = vpack.c.b16 %v6278, %v6277
    %v6297 = vpack.c.b16 %v6280, %v6279
    %v6298 = vpack.c.b16 %v6282, %v6281
    %6315 = vmatpush.bf16.msra.mxu0 %v6290
    %6316 = vmatpush.bf16.msra.mxu0 %v6289
    %6317 = vmatpush.bf16.msra.mxu0 %v6288
    %6318 = vmatpush.bf16.msra.mxu0 %v6287
    %6319 = vmatpush.bf16.msra.mxu0 %v6286
    %6320 = vmatpush.bf16.msra.mxu0 %v6285
    %6321 = vmatpush.bf16.msra.mxu0 %v6284
    %6322 = vmatpush.bf16.msra.mxu0 %v6283
    %6323 = vmatmul.bf16.gmra.mxu0 %v6215
    %v6324 = vpop.f32.mrf.mxu0
    %v6325 = vadd.f32 %v6207, %v6324
    %v6326 = vpop.f32.mrf.mxu0
    %v6327 = vadd.f32 %v6207, %v6326
    %6328 = vdwg.mxu0
    %6329 = vmatpush.bf16.msra.mxu0 %v6298
    %6330 = vmatpush.bf16.msra.mxu0 %v6297
    %6331 = vmatpush.bf16.msra.mxu0 %v6296
    %6332 = vmatpush.bf16.msra.mxu0 %v6295
    %6333 = vmatpush.bf16.msra.mxu0 %v6294
    %6334 = vmatpush.bf16.msra.mxu0 %v6293
    %6335 = vmatpush.bf16.msra.mxu0 %v6292
    %6336 = vmatpush.bf16.msra.mxu0 %v6291
    %6337 = vmatmul.bf16.gmra.mxu0 %v6216
    %v6338 = vpop.f32.mrf.mxu0
    %v6339 = vadd.f32 %v6325, %v6338
    %v6340 = vpop.f32.mrf.mxu0
    %v6341 = vadd.f32 %v6327, %v6340
    %6342 = vdwg.mxu0
    %6343 = vst [vmem:[%s6] sm:$0xff] %v6339
    %6344 = vst [vmem:[%s6 + $0x8] sm:$0xff] %v6341
    // Predicated region
    $region50: #{_forward_jit.1} parent=1 // pred_check
      _
    $region51: #{_forward_jit.1} parent=1 // pred_check_branch
      %6346 = sbr.rel (0) target = $region53
    $region52: #{_forward_jit.1} parent=1 // pred_region
      _
    $region53: #{_forward_jit.1} parent=1 // pred_fallthru
      _
    // Predicated region
    $region54: #{_forward_jit.1} parent=1 // pred_check
      _
    $region55: #{_forward_jit.1} parent=1 // pred_check_branch
      %6348 = sbr.rel (0) target = $region57
    $region56: #{_forward_jit.1} parent=1 // pred_region
      _
    $region57: #{_forward_jit.1} parent=1 // pred_fallthru
      _
    %6349 = vsyncpa [#allocation3], 1
    %6350 = vsyncpa [#allocation5], 1
    %6351 = vsyncpa [#allocation8], 1
    %6352 = vsyncpa [#allocation11], 1

</llo_original>
